<compile_context>
chip_gen: v5e
topology: v5e:2x2
jax: 0.10.0
libtpu: 0.0.40
codegen_flags: <defaults>
</compile_context>

<pallas_src>
import jax
import jax.numpy as jnp
import numpy as np
from jax import lax
from jax.experimental import pallas as pl
from jax.experimental.pallas import tpu as pltpu


# ---------------------------------------------------------------------------
# Fast path: VMEM-resident (transposed) tables, gather via exact one-hot matmul.
# ---------------------------------------------------------------------------
def _bpr_vmem_kernel(ids_ref, utab_t_ref, itab_t_ref, out_ref):
    """ids_ref    : (3, tb) int32  -- rows: user ids, pos item ids, neg item ids
       utab_t_ref : (rank, num_users) VMEM-resident user table (transposed)
       itab_t_ref : (rank, num_items) VMEM-resident item table (transposed)
       out_ref    : (2, tb) f32    -- row 0 = pos scores, row 1 = neg scores
    """
    num_users = utab_t_ref.shape[1]
    num_items = itab_t_ref.shape[1]
    tb = ids_ref.shape[1]

    ids = ids_ref[...]
    uid = ids[0:1, :]                      # (1, tb)
    pid = ids[1:2, :]
    nid = ids[2:3, :]

    # One-hot selection matrices with the batch on the lane axis (no transposes).
    u_oh = (lax.broadcasted_iota(jnp.int32, (num_users, tb), 0) == uid).astype(jnp.float32)
    p_oh = (lax.broadcasted_iota(jnp.int32, (num_items, tb), 0) == pid).astype(jnp.float32)
    n_oh = (lax.broadcasted_iota(jnp.int32, (num_items, tb), 0) == nid).astype(jnp.float32)

    ut = utab_t_ref[...].astype(jnp.float32)   # (rank, num_users)
    it = itab_t_ref[...].astype(jnp.float32)   # (rank, num_items)

    hi = jax.lax.Precision.HIGHEST             # keep one-hot gather bit-exact
    ug = jnp.dot(ut, u_oh, precision=hi, preferred_element_type=jnp.float32)  # (rank, tb)
    pg = jnp.dot(it, p_oh, precision=hi, preferred_element_type=jnp.float32)
    ng = jnp.dot(it, n_oh, precision=hi, preferred_element_type=jnp.float32)

    out_ref[0:1, :] = jnp.sum(ug * pg, axis=0, keepdims=True)
    out_ref[1:2, :] = jnp.sum(ug * ng, axis=0, keepdims=True)


# ---------------------------------------------------------------------------
# General path: tables stay in HBM, per-row DMA gather into VMEM scratch.
# ---------------------------------------------------------------------------
def _bpr_hbm_kernel(uid_ref, pid_ref, nid_ref, utab_ref, itab_ref, out_ref,
                    u_buf, p_buf, n_buf, sem):
    """uid/pid/nid_ref : (B_pad,) int32 in SMEM (scalar prefetch)
       utab/itab_ref   : full embedding tables, left in HBM (pl.ANY)
       out_ref         : (2, tb) f32 VMEM block (row 0 = pos, row 1 = neg)
       u/p/n_buf       : (tb, rank) VMEM gather scratch
       sem             : (3,) DMA semaphores, one per gather buffer
    """
    tb = u_buf.shape[0]
    t = pl.program_id(0)
    base = t * tb

    # Issue exactly 3*tb single-row gather DMAs back-to-back.  ids are padded
    # with 0 (a valid row), so no tail clamping is needed and the scratch is
    # fully overwritten every tile.
    def issue(j, carry):
        u_id = uid_ref[base + j]
        p_id = pid_ref[base + j]
        n_id = nid_ref[base + j]
        pltpu.make_async_copy(utab_ref.at[pl.ds(u_id, 1)],
                              u_buf.at[pl.ds(j, 1)], sem.at[0]).start()
        pltpu.make_async_copy(itab_ref.at[pl.ds(p_id, 1)],
                              p_buf.at[pl.ds(j, 1)], sem.at[1]).start()
        pltpu.make_async_copy(itab_ref.at[pl.ds(n_id, 1)],
                              n_buf.at[pl.ds(j, 1)], sem.at[2]).start()
        return carry

    lax.fori_loop(0, tb, issue, 0, unroll=4)

    # Drain: ONE wait per semaphore.  Each semaphore accumulated tb row copies
    # == the byte size of one full (tb, rank) buffer, so a single dummy
    # full-buffer descriptor accounts for all of them at once.
    pltpu.make_async_copy(u_buf, u_buf, sem.at[0]).wait()
    pltpu.make_async_copy(p_buf, p_buf, sem.at[1]).wait()
    pltpu.make_async_copy(n_buf, n_buf, sem.at[2]).wait()

    u = u_buf[...].astype(jnp.float32)
    p = p_buf[...].astype(jnp.float32)
    n = n_buf[...].astype(jnp.float32)

    pos = jnp.sum(u * p, axis=-1, keepdims=True)   # (tb, 1)
    neg = jnp.sum(u * n, axis=-1, keepdims=True)   # (tb, 1)
    out_ref[0:1, :] = pos.T                        # lane-dense (1, tb) stores
    out_ref[1:2, :] = neg.T


# ---------------------------------------------------------------------------
# Wrapper
# ---------------------------------------------------------------------------
def bpr_forward(user_table, item_table, user_ids, pos_items, neg_items, *,
                batch_tile=512, force_path=None):
    """Returns (pos_scores, neg_scores), each shape (B,), float32.

    force_path: None (auto), "vmem" (resident-table fast path) or "hbm"
                (DMA-gather path).
    """
    assert user_table.shape[1] == item_table.shape[1], "rank mismatch"
    b = user_ids.shape[0]
    num_users, rank = user_table.shape
    num_items = item_table.shape[0]
    dtype_bytes = jnp.dtype(user_table.dtype).itemsize

    # Batch tile: multiple of 128; keep the gather scratch under ~12 MiB so the
    # default scoped-VMEM limit holds on v5e/v6e/v7x.
    tb = max(128, (int(batch_tile) // 128) * 128)
    max_tb = max(128, ((12 * 1024 * 1024) // (3 * rank * dtype_bytes)) // 128 * 128)
    tb = min(tb, max_tb)
    num_tiles = pl.cdiv(b, tb)
    b_pad = num_tiles * tb
    pad = b_pad - b

    uid = jnp.pad(user_ids.astype(jnp.int32), (0, pad))
    pid = jnp.pad(pos_items.astype(jnp.int32), (0, pad))
    nid = jnp.pad(neg_items.astype(jnp.int32), (0, pad))

    # Path selection: resident-table one-hot gather when the whole per-tile
    # working set (tables + one-hots + gathered rows) is comfortably small.
    table_bytes = (num_users + num_items) * rank * dtype_bytes
    onehot_bytes = (num_users + 2 * num_items) * tb * 4
    gathered_bytes = 3 * rank * tb * 4
    vmem_ok = (table_bytes + onehot_bytes + gathered_bytes) <= (10 * 1024 * 1024)
    use_vmem = vmem_ok if force_path is None else (force_path == "vmem")

    cost = pl.CostEstimate(
        flops=4 * b * rank,
        transcendentals=0,
        bytes_accessed=3 * b * rank * dtype_bytes + 3 * b * 4 + 2 * b * 4,
    )
    cparams = pltpu.CompilerParams(dimension_semantics=("parallel",))
    out_shape = jax.ShapeDtypeStruct((2, b_pad), jnp.float32)

    if use_vmem:
        ids = jnp.stack([uid, pid, nid], axis=0)          # (3, b_pad) int32
        utab_t = jnp.transpose(user_table)                # (rank, num_users)
        itab_t = jnp.transpose(item_table)                # (rank, num_items)
        grid_spec = pltpu.PrefetchScalarGridSpec(
            num_scalar_prefetch=0,
            grid=(num_tiles,),
            in_specs=[
                pl.BlockSpec((3, tb), lambda t: (0, t)),                  # ids
                pl.BlockSpec((rank, num_users), lambda t: (0, 0)),        # resident
                pl.BlockSpec((rank, num_items), lambda t: (0, 0)),        # resident
            ],
            out_specs=pl.BlockSpec((2, tb), lambda t: (0, t)),
        )
        out = pl.pallas_call(
            _bpr_vmem_kernel,
            out_shape=out_shape,
            grid_spec=grid_spec,
            compiler_params=cparams,
            cost_estimate=cost,
        )(ids, utab_t, itab_t)
    else:
        grid_spec = pltpu.PrefetchScalarGridSpec(
            num_scalar_prefetch=3,                      # uid, pid, nid -> SMEM
            grid=(num_tiles,),
            in_specs=[
                pl.BlockSpec(memory_space=pl.ANY),      # user table stays in HBM
                pl.BlockSpec(memory_space=pl.ANY),      # item table stays in HBM
            ],
            out_specs=pl.BlockSpec((2, tb), lambda t, u, p, n: (0, t)),
            scratch_shapes=[
                pltpu.VMEM((tb, rank), user_table.dtype),
                pltpu.VMEM((tb, rank), item_table.dtype),
                pltpu.VMEM((tb, rank), item_table.dtype),
                pltpu.SemaphoreType.DMA((3,)),
            ],
        )
        out = pl.pallas_call(
            _bpr_hbm_kernel,
            out_shape=out_shape,
            grid_spec=grid_spec,
            compiler_params=cparams,
            cost_estimate=cost,
        )(uid, pid, nid, user_table, item_table)

    return out[0, :b], out[1, :b]


def bpr_loss(pos_scores, neg_scores):
    # -log(sigmoid(pos - neg)).mean()  (plain-JAX glue, matches the PyTorch method)
    return jnp.mean(-jax.nn.log_sigmoid(pos_scores - neg_scores))


if __name__ == "__main__":
    num_users, num_items, rank = 32, 64, 32
    batch = 8

    key = jax.random.PRNGKey(0)
    k_u, k_i, k_uid, k_pid, k_nid = jax.random.split(key, 5)

    # Deterministic parameter init (nn.Embedding default: N(0, 1)).
    user_table = jax.random.normal(k_u, (num_users, rank), dtype=jnp.float32)
    item_table = jax.random.normal(k_i, (num_items, rank), dtype=jnp.float32)

    user_ids = jax.random.randint(k_uid, (batch,), 0, num_users, dtype=jnp.int32)
    pos_items = jax.random.randint(k_pid, (batch,), 0, num_items, dtype=jnp.int32)
    neg_items = jax.random.randint(k_nid, (batch,), 0, num_items, dtype=jnp.int32)

    fwd = jax.jit(bpr_forward, static_argnames=("batch_tile", "force_path"))

    # Pure-JAX reference.
    ref_pos = jnp.sum(user_table[user_ids] * item_table[pos_items], axis=-1)
    ref_neg = jnp.sum(user_table[user_ids] * item_table[neg_items], axis=-1)

    # Exercise BOTH paths so each kernel is verified on-device.
    for path in ("vmem", "hbm"):
        pos_scores, neg_scores = fwd(user_table, item_table,
                                     user_ids, pos_items, neg_items,
                                     force_path=path)
        jax.block_until_ready((pos_scores, neg_scores))
        np.testing.assert_allclose(np.asarray(pos_scores), np.asarray(ref_pos),
                                   rtol=1e-5, atol=1e-5)
        np.testing.assert_allclose(np.asarray(neg_scores), np.asarray(ref_neg),
                                   rtol=1e-5, atol=1e-5)

    _ = jax.block_until_ready(bpr_loss(pos_scores, neg_scores))
    print("KERNEL_OK")
</pallas_src>

<mosaic_0001>
module attributes {stable_mosaic.version = 11 : i64} {
  func.func @_bpr_vmem_kernel(%arg0: i32, %arg1: memref<3x512xi32, #tpu.memory_space<vmem>>, %arg2: memref<32x32xf32, #tpu.memory_space<vmem>>, %arg3: memref<32x64xf32, #tpu.memory_space<vmem>>, %arg4: memref<2x512xf32, #tpu.memory_space<vmem>>) attributes {dimension_semantics = [#tpu.dimension_semantics<parallel>], iteration_bounds = array<i64: 1>, scalar_prefetch = 0 : i64, scratch_operands = 0 : i64, tpu.core_type = #tpu.core_type<tc>, window_params = [{transform_indices = @transform_0, window_bounds = array<i64: 3, 512>}, {pipeline_mode = #tpu.pipeline_mode<synchronous>, transform_indices = @transform_1, window_bounds = array<i64: 32, 32>}, {pipeline_mode = #tpu.pipeline_mode<synchronous>, transform_indices = @transform_2, window_bounds = array<i64: 32, 64>}, {transform_indices = @transform_3, window_bounds = array<i64: 2, 512>}]} {
    %c0 = arith.constant 0 : index
    %c0_0 = arith.constant 0 : index
    %0 = vector.load %arg1[%c0, %c0_0] : memref<3x512xi32, #tpu.memory_space<vmem>>, vector<3x512xi32>
    %1 = vector.extract_strided_slice %0 {offsets = [0, 0], sizes = [1, 512], strides = [1, 1]} : vector<3x512xi32> to vector<1x512xi32>
    %2 = vector.extract_strided_slice %0 {offsets = [1, 0], sizes = [1, 512], strides = [1, 1]} : vector<3x512xi32> to vector<1x512xi32>
    %3 = vector.extract_strided_slice %0 {offsets = [2, 0], sizes = [1, 512], strides = [1, 1]} : vector<3x512xi32> to vector<1x512xi32>
    %4 = tpu.iota {dimensions = array<i32: 0>} : vector<32x512xi32>
    %5 = vector.broadcast %1 : vector<1x512xi32> to vector<32x512xi32>
    %6 = arith.cmpi eq, %4, %5 : vector<32x512xi32>
    %7 = arith.extui %6 : vector<32x512xi1> to vector<32x512xi32>
    %8 = arith.sitofp %7 : vector<32x512xi32> to vector<32x512xf32>
    %9 = tpu.iota {dimensions = array<i32: 0>} : vector<64x512xi32>
    %10 = vector.broadcast %2 : vector<1x512xi32> to vector<64x512xi32>
    %11 = arith.cmpi eq, %9, %10 : vector<64x512xi32>
    %12 = arith.extui %11 : vector<64x512xi1> to vector<64x512xi32>
    %13 = arith.sitofp %12 : vector<64x512xi32> to vector<64x512xf32>
    %14 = tpu.iota {dimensions = array<i32: 0>} : vector<64x512xi32>
    %15 = vector.broadcast %3 : vector<1x512xi32> to vector<64x512xi32>
    %16 = arith.cmpi eq, %14, %15 : vector<64x512xi32>
    %17 = arith.extui %16 : vector<64x512xi1> to vector<64x512xi32>
    %18 = arith.sitofp %17 : vector<64x512xi32> to vector<64x512xf32>
    %c0_1 = arith.constant 0 : index
    %c0_2 = arith.constant 0 : index
    %19 = vector.load %arg2[%c0_1, %c0_2] : memref<32x32xf32, #tpu.memory_space<vmem>>, vector<32x32xf32>
    %c0_3 = arith.constant 0 : index
    %c0_4 = arith.constant 0 : index
    %20 = vector.load %arg3[%c0_3, %c0_4] : memref<32x64xf32, #tpu.memory_space<vmem>>, vector<32x64xf32>
    %cst = arith.constant dense<0.000000e+00> : vector<32x512xf32>
    %21 = tpu.matmul %19, %8, %cst {dimension_numbers = #tpu.dot_dimension_numbers<[1], [0], [0], [1], [0, 0, 1, 1], [], []>, precision = #tpu.contract_precision<fp32>} : vector<32x32xf32>, vector<32x512xf32>, vector<32x512xf32> -> vector<32x512xf32>
    %cst_5 = arith.constant dense<0.000000e+00> : vector<32x512xf32>
    %22 = tpu.matmul %20, %13, %cst_5 {dimension_numbers = #tpu.dot_dimension_numbers<[1], [0], [0], [1], [0, 0, 1, 1], [], []>, precision = #tpu.contract_precision<fp32>} : vector<32x64xf32>, vector<64x512xf32>, vector<32x512xf32> -> vector<32x512xf32>
    %cst_6 = arith.constant dense<0.000000e+00> : vector<32x512xf32>
    %23 = tpu.matmul %20, %18, %cst_6 {dimension_numbers = #tpu.dot_dimension_numbers<[1], [0], [0], [1], [0, 0, 1, 1], [], []>, precision = #tpu.contract_precision<fp32>} : vector<32x64xf32>, vector<64x512xf32>, vector<32x512xf32> -> vector<32x512xf32>
    %24 = arith.mulf %21, %22 : vector<32x512xf32>
    %cst_7 = arith.constant dense<0.000000e+00> : vector<512xf32>
    %25 = vector.multi_reduction <add>, %24, %cst_7 [0] : vector<32x512xf32> to vector<512xf32>
    %26 = vector.shape_cast %25 : vector<512xf32> to vector<1x512xf32>
    %c0_8 = arith.constant 0 : index
    %c0_9 = arith.constant 0 : index
    %27 = vector.load %arg4[%c0_8, %c0_9] : memref<2x512xf32, #tpu.memory_space<vmem>>, vector<1x512xf32>
    tpu.vector_store %arg4[%c0_8, %c0_9], %26 {strides = array<i32>} : memref<2x512xf32, #tpu.memory_space<vmem>>, vector<1x512xf32>,
    %28 = arith.mulf %21, %23 : vector<32x512xf32>
    %cst_10 = arith.constant dense<0.000000e+00> : vector<512xf32>
    %29 = vector.multi_reduction <add>, %28, %cst_10 [0] : vector<32x512xf32> to vector<512xf32>
    %30 = vector.shape_cast %29 : vector<512xf32> to vector<1x512xf32>
    %c1 = arith.constant 1 : index
    %c0_11 = arith.constant 0 : index
    %31 = vector.load %arg4[%c1, %c0_11] : memref<2x512xf32, #tpu.memory_space<vmem>>, vector<1x512xf32>
    tpu.vector_store %arg4[%c1, %c0_11], %30 {strides = array<i32>} : memref<2x512xf32, #tpu.memory_space<vmem>>, vector<1x512xf32>,
    return
  }
  func.func @transform_0(%arg0: i32) -> (i32, i32) {
    %c0_i32 = arith.constant 0 : i32
    %c0_i32_0 = arith.constant 0 : i32
    return %c0_i32, %arg0 : i32, i32
  }
  func.func @transform_1(%arg0: i32) -> (i32, i32) {
    %c0_i32 = arith.constant 0 : i32
    %c0_i32_0 = arith.constant 0 : i32
    %c0_i32_1 = arith.constant 0 : i32
    return %c0_i32, %c0_i32_0 : i32, i32
  }
  func.func @transform_2(%arg0: i32) -> (i32, i32) {
    %c0_i32 = arith.constant 0 : i32
    %c0_i32_0 = arith.constant 0 : i32
    %c0_i32_1 = arith.constant 0 : i32
    return %c0_i32, %c0_i32_0 : i32, i32
  }
  func.func @transform_3(%arg0: i32) -> (i32, i32) {
    %c0_i32 = arith.constant 0 : i32
    %c0_i32_0 = arith.constant 0 : i32
    return %c0_i32, %arg0 : i32, i32
  }
}

</mosaic_0001>

<llo_original>
// kernel: bpr_forward.1
$region0: #{bpr_forward.1}
  #allocation0 [shape = 'u32[]', space=smem, size = 0x4, offset = 0x4, fixed_abs, tag = 'smem constant byte address 0x4 - core index']
  #allocation1 [shape = 'u32[72,128]{1,0:T(1,128)}', space=vmem, size = 0x9000, scoped, tag = 'internal scratch']
  %s0 = inlined_call_operand.vmem [shape: s32[3,512], index: 0, kind: input, shape index: {}]
  %s1 = inlined_call_operand.vmem [shape: f32[32,32], index: 1, kind: input, shape index: {}]
  %s2 = inlined_call_operand.vmem [shape: f32[32,64], index: 2, kind: input, shape index: {}]
  %s3 = inlined_call_operand.vmem [shape: f32[2,512], index: 3, kind: output, shape index: {}]
  %s4 = sld [smem:[#allocation0]]
  $region22: #{bpr_forward.1} parent=0
    _
  %s6 = ssub.s32 1, %s4
  %s7 = scalar_select 0, %s6, %s4
  // Predicated region
  $region2: #{bpr_forward.1} parent=0 // pred_check
    _
  $region3: #{bpr_forward.1} parent=0 // pred_check_branch
    %9 = sbr.rel (0) target = $region5
  $region4: #{bpr_forward.1} parent=0 // pred_region
    _
  $region5: #{bpr_forward.1} parent=0 // pred_fallthru
    _
  // Predicated region
  $region6: #{bpr_forward.1} parent=0 // pred_check
    _
  $region7: #{bpr_forward.1} parent=0 // pred_check_branch
    %11 = sbr.rel (0) target = $region9
  $region8: #{bpr_forward.1} parent=0 // pred_region
    _
  $region9: #{bpr_forward.1} parent=0 // pred_fallthru
    _
  // Predicated region
  $region10: #{bpr_forward.1} parent=0 // pred_check
    _
  $region11: #{bpr_forward.1} parent=0 // pred_check_branch
    %13 = sbr.rel (0) target = $region13
  $region12: #{bpr_forward.1} parent=0 // pred_region
    _
  $region13: #{bpr_forward.1} parent=0 // pred_fallthru
    _
  %v14 = vld [vmem:[%s0] sm:$0x77]
  %v15 = vld [vmem:[%s0 + $0x8] sm:$0x77]
  %v16 = vlaneseq
  %v17 = vshrl.u32 %v16, 7
  %v18 = vadd.s32 %v17, 8
  %v19 = vadd.s32 %v17, 16
  %v20 = vadd.s32 %v17, 24
  %v21 = vperm.slane %v14, 0
  %v22 = vperm.slane %v14, 4
  %v23 = vperm.slane %v15, 0
  %v24 = vperm.slane %v15, 4
  %v25 = vperm.slane %v21, 0
  %v26 = vperm.slane %v22, 0
  %v27 = vperm.slane %v23, 0
  %v28 = vperm.slane %v24, 0
  %vm29 = vcmp.eq.s32.totalorder %v17, %v25
  %vm30 = vcmp.eq.s32.totalorder %v17, %v26
  %vm31 = vcmp.eq.s32.totalorder %v17, %v27
  %vm32 = vcmp.eq.s32.totalorder %v17, %v28
  %vm33 = vcmp.eq.s32.totalorder %v18, %v25
  %vm34 = vcmp.eq.s32.totalorder %v18, %v26
  %vm35 = vcmp.eq.s32.totalorder %v18, %v27
  %vm36 = vcmp.eq.s32.totalorder %v18, %v28
  %vm37 = vcmp.eq.s32.totalorder %v19, %v25
  %vm38 = vcmp.eq.s32.totalorder %v19, %v26
  %vm39 = vcmp.eq.s32.totalorder %v19, %v27
  %vm40 = vcmp.eq.s32.totalorder %v19, %v28
  %vm41 = vcmp.eq.s32.totalorder %v20, %v25
  %vm42 = vcmp.eq.s32.totalorder %v20, %v26
  %vm43 = vcmp.eq.s32.totalorder %v20, %v27
  %vm44 = vcmp.eq.s32.totalorder %v20, %v28
  %v45 = vsel %vm29, 1, 0
  %v46 = vsel %vm30, 1, 0
  %v47 = vsel %vm31, 1, 0
  %v48 = vsel %vm32, 1, 0
  %v49 = vsel %vm33, 1, 0
  %v50 = vsel %vm34, 1, 0
  %v51 = vsel %vm35, 1, 0
  %v52 = vsel %vm36, 1, 0
  %v53 = vsel %vm37, 1, 0
  %v54 = vsel %vm38, 1, 0
  %v55 = vsel %vm39, 1, 0
  %v56 = vsel %vm40, 1, 0
  %v57 = vsel %vm41, 1, 0
  %v58 = vsel %vm42, 1, 0
  %v59 = vsel %vm43, 1, 0
  %v60 = vsel %vm44, 1, 0
  %v61 = vcvt.s32.f32 %v45
  %v62 = vcvt.s32.f32 %v46
  %v63 = vcvt.s32.f32 %v47
  %v64 = vcvt.s32.f32 %v48
  %v65 = vcvt.s32.f32 %v49
  %v66 = vcvt.s32.f32 %v50
  %v67 = vcvt.s32.f32 %v51
  %v68 = vcvt.s32.f32 %v52
  %v69 = vcvt.s32.f32 %v53
  %v70 = vcvt.s32.f32 %v54
  %v71 = vcvt.s32.f32 %v55
  %v72 = vcvt.s32.f32 %v56
  %v73 = vcvt.s32.f32 %v57
  %v74 = vcvt.s32.f32 %v58
  %v75 = vcvt.s32.f32 %v59
  %v76 = vcvt.s32.f32 %v60
  %v77 = vadd.s32 %v17, 32
  %v78 = vadd.s32 %v17, 40
  %v79 = vadd.s32 %v17, 48
  %v80 = vadd.s32 %v17, 56
  %v81 = vperm.slane %v14, 1
  %v82 = vperm.slane %v14, 5
  %v83 = vperm.slane %v15, 1
  %v84 = vperm.slane %v15, 5
  %v85 = vperm.slane %v81, 1
  %v86 = vperm.slane %v82, 1
  %v87 = vperm.slane %v83, 1
  %v88 = vperm.slane %v84, 1
  %vm89 = vcmp.eq.s32.totalorder %v17, %v85
  %vm90 = vcmp.eq.s32.totalorder %v17, %v86
  %vm91 = vcmp.eq.s32.totalorder %v17, %v87
  %vm92 = vcmp.eq.s32.totalorder %v17, %v88
  %vm93 = vcmp.eq.s32.totalorder %v18, %v85
  %vm94 = vcmp.eq.s32.totalorder %v18, %v86
  %vm95 = vcmp.eq.s32.totalorder %v18, %v87
  %vm96 = vcmp.eq.s32.totalorder %v18, %v88
  %vm97 = vcmp.eq.s32.totalorder %v19, %v85
  %vm98 = vcmp.eq.s32.totalorder %v19, %v86
  %vm99 = vcmp.eq.s32.totalorder %v19, %v87
  %vm100 = vcmp.eq.s32.totalorder %v19, %v88
  %vm101 = vcmp.eq.s32.totalorder %v20, %v85
  %vm102 = vcmp.eq.s32.totalorder %v20, %v86
  %vm103 = vcmp.eq.s32.totalorder %v20, %v87
  %vm104 = vcmp.eq.s32.totalorder %v20, %v88
  %vm105 = vcmp.eq.s32.totalorder %v77, %v85
  %vm106 = vcmp.eq.s32.totalorder %v77, %v86
  %vm107 = vcmp.eq.s32.totalorder %v77, %v87
  %vm108 = vcmp.eq.s32.totalorder %v77, %v88
  %vm109 = vcmp.eq.s32.totalorder %v78, %v85
  %vm110 = vcmp.eq.s32.totalorder %v78, %v86
  %vm111 = vcmp.eq.s32.totalorder %v78, %v87
  %vm112 = vcmp.eq.s32.totalorder %v78, %v88
  %vm113 = vcmp.eq.s32.totalorder %v79, %v85
  %vm114 = vcmp.eq.s32.totalorder %v79, %v86
  %vm115 = vcmp.eq.s32.totalorder %v79, %v87
  %vm116 = vcmp.eq.s32.totalorder %v79, %v88
  %vm117 = vcmp.eq.s32.totalorder %v80, %v85
  %vm118 = vcmp.eq.s32.totalorder %v80, %v86
  %vm119 = vcmp.eq.s32.totalorder %v80, %v87
  %vm120 = vcmp.eq.s32.totalorder %v80, %v88
  %v121 = vsel %vm89, 1, 0
  %v122 = vsel %vm90, 1, 0
  %v123 = vsel %vm91, 1, 0
  %v124 = vsel %vm92, 1, 0
  %v125 = vsel %vm93, 1, 0
  %v126 = vsel %vm94, 1, 0
  %v127 = vsel %vm95, 1, 0
  %v128 = vsel %vm96, 1, 0
  %v129 = vsel %vm97, 1, 0
  %v130 = vsel %vm98, 1, 0
  %v131 = vsel %vm99, 1, 0
  %v132 = vsel %vm100, 1, 0
  %v133 = vsel %vm101, 1, 0
  %v134 = vsel %vm102, 1, 0
  %v135 = vsel %vm103, 1, 0
  %v136 = vsel %vm104, 1, 0
  %v137 = vsel %vm105, 1, 0
  %v138 = vsel %vm106, 1, 0
  %v139 = vsel %vm107, 1, 0
  %v140 = vsel %vm108, 1, 0
  %v141 = vsel %vm109, 1, 0
  %v142 = vsel %vm110, 1, 0
  %v143 = vsel %vm111, 1, 0
  %v144 = vsel %vm112, 1, 0
  %v145 = vsel %vm113, 1, 0
  %v146 = vsel %vm114, 1, 0
  %v147 = vsel %vm115, 1, 0
  %v148 = vsel %vm116, 1, 0
  %v149 = vsel %vm117, 1, 0
  %v150 = vsel %vm118, 1, 0
  %v151 = vsel %vm119, 1, 0
  %v152 = vsel %vm120, 1, 0
  %v153 = vcvt.s32.f32 %v121
  %v154 = vcvt.s32.f32 %v122
  %v155 = vcvt.s32.f32 %v123
  %v156 = vcvt.s32.f32 %v124
  %v157 = vcvt.s32.f32 %v125
  %v158 = vcvt.s32.f32 %v126
  %v159 = vcvt.s32.f32 %v127
  %v160 = vcvt.s32.f32 %v128
  %v161 = vcvt.s32.f32 %v129
  %v162 = vcvt.s32.f32 %v130
  %v163 = vcvt.s32.f32 %v131
  %v164 = vcvt.s32.f32 %v132
  %v165 = vcvt.s32.f32 %v133
  %v166 = vcvt.s32.f32 %v134
  %v167 = vcvt.s32.f32 %v135
  %v168 = vcvt.s32.f32 %v136
  %v169 = vcvt.s32.f32 %v137
  %v170 = vcvt.s32.f32 %v138
  %v171 = vcvt.s32.f32 %v139
  %v172 = vcvt.s32.f32 %v140
  %v173 = vcvt.s32.f32 %v141
  %v174 = vcvt.s32.f32 %v142
  %v175 = vcvt.s32.f32 %v143
  %v176 = vcvt.s32.f32 %v144
  %v177 = vcvt.s32.f32 %v145
  %v178 = vcvt.s32.f32 %v146
  %v179 = vcvt.s32.f32 %v147
  %v180 = vcvt.s32.f32 %v148
  %v181 = vcvt.s32.f32 %v149
  %v182 = vcvt.s32.f32 %v150
  %v183 = vcvt.s32.f32 %v151
  %v184 = vcvt.s32.f32 %v152
  %v185 = vperm.slane %v14, 2
  %v186 = vperm.slane %v14, 6
  %v187 = vperm.slane %v15, 2
  %v188 = vperm.slane %v15, 6
  %v189 = vperm.slane %v185, 2
  %v190 = vperm.slane %v186, 2
  %v191 = vperm.slane %v187, 2
  %v192 = vperm.slane %v188, 2
  %vm193 = vcmp.eq.s32.totalorder %v17, %v189
  %vm194 = vcmp.eq.s32.totalorder %v17, %v190
  %vm195 = vcmp.eq.s32.totalorder %v17, %v191
  %vm196 = vcmp.eq.s32.totalorder %v17, %v192
  %vm197 = vcmp.eq.s32.totalorder %v18, %v189
  %vm198 = vcmp.eq.s32.totalorder %v18, %v190
  %vm199 = vcmp.eq.s32.totalorder %v18, %v191
  %vm200 = vcmp.eq.s32.totalorder %v18, %v192
  %vm201 = vcmp.eq.s32.totalorder %v19, %v189
  %vm202 = vcmp.eq.s32.totalorder %v19, %v190
  %vm203 = vcmp.eq.s32.totalorder %v19, %v191
  %vm204 = vcmp.eq.s32.totalorder %v19, %v192
  %vm205 = vcmp.eq.s32.totalorder %v20, %v189
  %vm206 = vcmp.eq.s32.totalorder %v20, %v190
  %vm207 = vcmp.eq.s32.totalorder %v20, %v191
  %vm208 = vcmp.eq.s32.totalorder %v20, %v192
  %vm209 = vcmp.eq.s32.totalorder %v77, %v189
  %vm210 = vcmp.eq.s32.totalorder %v77, %v190
  %vm211 = vcmp.eq.s32.totalorder %v77, %v191
  %vm212 = vcmp.eq.s32.totalorder %v77, %v192
  %vm213 = vcmp.eq.s32.totalorder %v78, %v189
  %vm214 = vcmp.eq.s32.totalorder %v78, %v190
  %vm215 = vcmp.eq.s32.totalorder %v78, %v191
  %vm216 = vcmp.eq.s32.totalorder %v78, %v192
  %vm217 = vcmp.eq.s32.totalorder %v79, %v189
  %vm218 = vcmp.eq.s32.totalorder %v79, %v190
  %vm219 = vcmp.eq.s32.totalorder %v79, %v191
  %vm220 = vcmp.eq.s32.totalorder %v79, %v192
  %vm221 = vcmp.eq.s32.totalorder %v80, %v189
  %vm222 = vcmp.eq.s32.totalorder %v80, %v190
  %vm223 = vcmp.eq.s32.totalorder %v80, %v191
  %vm224 = vcmp.eq.s32.totalorder %v80, %v192
  %v225 = vsel %vm193, 1, 0
  %v226 = vsel %vm194, 1, 0
  %v227 = vsel %vm195, 1, 0
  %v228 = vsel %vm196, 1, 0
  %v229 = vsel %vm197, 1, 0
  %v230 = vsel %vm198, 1, 0
  %v231 = vsel %vm199, 1, 0
  %v232 = vsel %vm200, 1, 0
  %v233 = vsel %vm201, 1, 0
  %v234 = vsel %vm202, 1, 0
  %v235 = vsel %vm203, 1, 0
  %v236 = vsel %vm204, 1, 0
  %v237 = vsel %vm205, 1, 0
  %v238 = vsel %vm206, 1, 0
  %v239 = vsel %vm207, 1, 0
  %v240 = vsel %vm208, 1, 0
  %v241 = vsel %vm209, 1, 0
  %v242 = vsel %vm210, 1, 0
  %v243 = vsel %vm211, 1, 0
  %v244 = vsel %vm212, 1, 0
  %v245 = vsel %vm213, 1, 0
  %v246 = vsel %vm214, 1, 0
  %v247 = vsel %vm215, 1, 0
  %v248 = vsel %vm216, 1, 0
  %v249 = vsel %vm217, 1, 0
  %v250 = vsel %vm218, 1, 0
  %v251 = vsel %vm219, 1, 0
  %v252 = vsel %vm220, 1, 0
  %v253 = vsel %vm221, 1, 0
  %v254 = vsel %vm222, 1, 0
  %v255 = vsel %vm223, 1, 0
  %v256 = vsel %vm224, 1, 0
  %v257 = vcvt.s32.f32 %v225
  %v258 = vcvt.s32.f32 %v226
  %v259 = vcvt.s32.f32 %v227
  %v260 = vcvt.s32.f32 %v228
  %v261 = vcvt.s32.f32 %v229
  %v262 = vcvt.s32.f32 %v230
  %v263 = vcvt.s32.f32 %v231
  %v264 = vcvt.s32.f32 %v232
  %v265 = vcvt.s32.f32 %v233
  %v266 = vcvt.s32.f32 %v234
  %v267 = vcvt.s32.f32 %v235
  %v268 = vcvt.s32.f32 %v236
  %v269 = vcvt.s32.f32 %v237
  %v270 = vcvt.s32.f32 %v238
  %v271 = vcvt.s32.f32 %v239
  %v272 = vcvt.s32.f32 %v240
  %v273 = vcvt.s32.f32 %v241
  %v274 = vcvt.s32.f32 %v242
  %v275 = vcvt.s32.f32 %v243
  %v276 = vcvt.s32.f32 %v244
  %v277 = vcvt.s32.f32 %v245
  %v278 = vcvt.s32.f32 %v246
  %v279 = vcvt.s32.f32 %v247
  %v280 = vcvt.s32.f32 %v248
  %v281 = vcvt.s32.f32 %v249
  %v282 = vcvt.s32.f32 %v250
  %v283 = vcvt.s32.f32 %v251
  %v284 = vcvt.s32.f32 %v252
  %v285 = vcvt.s32.f32 %v253
  %v286 = vcvt.s32.f32 %v254
  %v287 = vcvt.s32.f32 %v255
  %v288 = vcvt.s32.f32 %v256
  %v289 = vld [vmem:[%s1] sm:$0xff]
  %v290 = vld [vmem:[%s1 + $0x8] sm:$0xff]
  %v291 = vld [vmem:[%s1 + $0x10] sm:$0xff]
  %v292 = vld [vmem:[%s1 + $0x18] sm:$0xff]
  %v293 = vld [vmem:[%s2] sm:$0xff]
  %v294 = vld [vmem:[%s2 + $0x8] sm:$0xff]
  %v295 = vld [vmem:[%s2 + $0x10] sm:$0xff]
  %v296 = vld [vmem:[%s2 + $0x18] sm:$0xff]
  %vm297 = vcmask 261120
  %v299 = vsel %vm297, %v289, 0
  %v302 = vsel %vm297, %v290, 0
  %v305 = vsel %vm297, %v291, 0
  %v308 = vsel %vm297, %v292, 0
  %310 = vmatpush.msra.mxu0 0.0
  %311 = vmatpush.msra.mxu0 0.0
  %312 = vmatpush.msra.mxu0 0.0
  %313 = vmatpush.msra.mxu0 0.0
  %314 = vmatpush.msra.mxu0 0.0
  %315 = vmatpush.msra.mxu0 0.0
  %316 = vmatpush.msra.mxu0 0.0
  %317 = vmatpush.msra.mxu0 0.0
  %318 = vmatpush.msra.mxu0 0.0
  %319 = vmatpush.msra.mxu0 0.0
  %320 = vmatpush.msra.mxu0 0.0
  %321 = vmatpush.msra.mxu0 0.0
  %v322 = vand.u32 %v73, 4294901760
  %323 = vmatpush.msra.mxu0 %v322
  %v324 = vand.u32 %v69, 4294901760
  %325 = vmatpush.msra.mxu0 %v324
  %v326 = vand.u32 %v65, 4294901760
  %327 = vmatpush.msra.mxu0 %v326
  %v328 = vand.u32 %v61, 4294901760
  %329 = vmatpush.msra.mxu0 %v328
  %v330 = vand.u32 %v299, 4294901760
  %v331 = vsub.f32 %v299, %v330
  %v332 = vand.u32 %v331, 4294901760
  %v333 = vsub.f32 %v331, %v332
  %v334 = vand.u32 %v333, 4294901760
  %335 = vmatmul.f32.gmra.mxu0 %v334
  %v336 = vpop.f32.mrf.mxu0
  %v337 = vadd.f32 0.0, %v336
  %v338 = vand.u32 %v302, 4294901760
  %v339 = vsub.f32 %v302, %v338
  %v340 = vand.u32 %v339, 4294901760
  %v341 = vsub.f32 %v339, %v340
  %v342 = vand.u32 %v341, 4294901760
  %343 = vmatmul.f32.gmra.mxu0 %v342
  %v344 = vpop.f32.mrf.mxu0
  %v345 = vadd.f32 0.0, %v344
  %v346 = vand.u32 %v305, 4294901760
  %v347 = vsub.f32 %v305, %v346
  %v348 = vand.u32 %v347, 4294901760
  %v349 = vsub.f32 %v347, %v348
  %v350 = vand.u32 %v349, 4294901760
  %351 = vmatmul.f32.gmra.mxu0 %v350
  %v352 = vpop.f32.mrf.mxu0
  %v353 = vadd.f32 0.0, %v352
  %v354 = vand.u32 %v308, 4294901760
  %v355 = vsub.f32 %v308, %v354
  %v356 = vand.u32 %v355, 4294901760
  %v357 = vsub.f32 %v355, %v356
  %v358 = vand.u32 %v357, 4294901760
  %359 = vmatmul.f32.gmra.mxu0 %v358
  %v360 = vpop.f32.mrf.mxu0
  %v361 = vadd.f32 0.0, %v360
  %362 = vdwg.mxu0
  %363 = vmatpush.msra.mxu0 0.0
  %364 = vmatpush.msra.mxu0 0.0
  %365 = vmatpush.msra.mxu0 0.0
  %366 = vmatpush.msra.mxu0 0.0
  %367 = vmatpush.msra.mxu0 0.0
  %368 = vmatpush.msra.mxu0 0.0
  %369 = vmatpush.msra.mxu0 0.0
  %370 = vmatpush.msra.mxu0 0.0
  %371 = vmatpush.msra.mxu0 0.0
  %372 = vmatpush.msra.mxu0 0.0
  %373 = vmatpush.msra.mxu0 0.0
  %374 = vmatpush.msra.mxu0 0.0
  %v375 = vand.u32 %v73, 4294901760
  %v376 = vsub.f32 %v73, %v375
  %v377 = vand.u32 %v376, 4294901760
  %v378 = vsub.f32 %v376, %v377
  %v379 = vand.u32 %v378, 4294901760
  %380 = vmatpush.msra.mxu0 %v379
  %v381 = vand.u32 %v69, 4294901760
  %v382 = vsub.f32 %v69, %v381
  %v383 = vand.u32 %v382, 4294901760
  %v384 = vsub.f32 %v382, %v383
  %v385 = vand.u32 %v384, 4294901760
  %386 = vmatpush.msra.mxu0 %v385
  %v387 = vand.u32 %v65, 4294901760
  %v388 = vsub.f32 %v65, %v387
  %v389 = vand.u32 %v388, 4294901760
  %v390 = vsub.f32 %v388, %v389
  %v391 = vand.u32 %v390, 4294901760
  %392 = vmatpush.msra.mxu0 %v391
  %v393 = vand.u32 %v61, 4294901760
  %v394 = vsub.f32 %v61, %v393
  %v395 = vand.u32 %v394, 4294901760
  %v396 = vsub.f32 %v394, %v395
  %v397 = vand.u32 %v396, 4294901760
  %398 = vmatpush.msra.mxu0 %v397
  %v399 = vand.u32 %v299, 4294901760
  %400 = vmatmul.f32.gmra.mxu0 %v399
  %v401 = vpop.f32.mrf.mxu0
  %v402 = vadd.f32 %v337, %v401
  %v403 = vand.u32 %v302, 4294901760
  %404 = vmatmul.f32.gmra.mxu0 %v403
  %v405 = vpop.f32.mrf.mxu0
  %v406 = vadd.f32 %v345, %v405
  %v407 = vand.u32 %v305, 4294901760
  %408 = vmatmul.f32.gmra.mxu0 %v407
  %v409 = vpop.f32.mrf.mxu0
  %v410 = vadd.f32 %v353, %v409
  %v411 = vand.u32 %v308, 4294901760
  %412 = vmatmul.f32.gmra.mxu0 %v411
  %v413 = vpop.f32.mrf.mxu0
  %v414 = vadd.f32 %v361, %v413
  %415 = vdwg.mxu0
  %416 = vmatpush.msra.mxu0 0.0
  %417 = vmatpush.msra.mxu0 0.0
  %418 = vmatpush.msra.mxu0 0.0
  %419 = vmatpush.msra.mxu0 0.0
  %420 = vmatpush.msra.mxu0 0.0
  %421 = vmatpush.msra.mxu0 0.0
  %422 = vmatpush.msra.mxu0 0.0
  %423 = vmatpush.msra.mxu0 0.0
  %424 = vmatpush.msra.mxu0 0.0
  %425 = vmatpush.msra.mxu0 0.0
  %426 = vmatpush.msra.mxu0 0.0
  %427 = vmatpush.msra.mxu0 0.0
  %v428 = vand.u32 %v73, 4294901760
  %v429 = vsub.f32 %v73, %v428
  %430 = vmatpush.msra.mxu0 %v429
  %v431 = vand.u32 %v69, 4294901760
  %v432 = vsub.f32 %v69, %v431
  %433 = vmatpush.msra.mxu0 %v432
  %v434 = vand.u32 %v65, 4294901760
  %v435 = vsub.f32 %v65, %v434
  %436 = vmatpush.msra.mxu0 %v435
  %v437 = vand.u32 %v61, 4294901760
  %v438 = vsub.f32 %v61, %v437
  %439 = vmatpush.msra.mxu0 %v438
  %v440 = vand.u32 %v299, 4294901760
  %v441 = vsub.f32 %v299, %v440
  %442 = vmatmul.f32.gmra.mxu0 %v441
  %v443 = vpop.f32.mrf.mxu0
  %v444 = vadd.f32 %v402, %v443
  %v445 = vand.u32 %v302, 4294901760
  %v446 = vsub.f32 %v302, %v445
  %447 = vmatmul.f32.gmra.mxu0 %v446
  %v448 = vpop.f32.mrf.mxu0
  %v449 = vadd.f32 %v406, %v448
  %v450 = vand.u32 %v305, 4294901760
  %v451 = vsub.f32 %v305, %v450
  %452 = vmatmul.f32.gmra.mxu0 %v451
  %v453 = vpop.f32.mrf.mxu0
  %v454 = vadd.f32 %v410, %v453
  %v455 = vand.u32 %v308, 4294901760
  %v456 = vsub.f32 %v308, %v455
  %457 = vmatmul.f32.gmra.mxu0 %v456
  %v458 = vpop.f32.mrf.mxu0
  %v459 = vadd.f32 %v414, %v458
  %460 = vdwg.mxu0
  %461 = vmatpush.msra.mxu0 0.0
  %462 = vmatpush.msra.mxu0 0.0
  %463 = vmatpush.msra.mxu0 0.0
  %464 = vmatpush.msra.mxu0 0.0
  %465 = vmatpush.msra.mxu0 0.0
  %466 = vmatpush.msra.mxu0 0.0
  %467 = vmatpush.msra.mxu0 0.0
  %468 = vmatpush.msra.mxu0 0.0
  %469 = vmatpush.msra.mxu0 0.0
  %470 = vmatpush.msra.mxu0 0.0
  %471 = vmatpush.msra.mxu0 0.0
  %472 = vmatpush.msra.mxu0 0.0
  %v473 = vand.u32 %v73, 4294901760
  %474 = vmatpush.msra.mxu0 %v473
  %v475 = vand.u32 %v69, 4294901760
  %476 = vmatpush.msra.mxu0 %v475
  %v477 = vand.u32 %v65, 4294901760
  %478 = vmatpush.msra.mxu0 %v477
  %v479 = vand.u32 %v61, 4294901760
  %480 = vmatpush.msra.mxu0 %v479
  %v481 = vand.u32 %v299, 4294901760
  %v482 = vsub.f32 %v299, %v481
  %v483 = vand.u32 %v482, 4294901760
  %484 = vmatmul.f32.gmra.mxu0 %v483
  %v485 = vpop.f32.mrf.mxu0
  %v486 = vadd.f32 %v444, %v485
  %v487 = vand.u32 %v302, 4294901760
  %v488 = vsub.f32 %v302, %v487
  %v489 = vand.u32 %v488, 4294901760
  %490 = vmatmul.f32.gmra.mxu0 %v489
  %v491 = vpop.f32.mrf.mxu0
  %v492 = vadd.f32 %v449, %v491
  %v493 = vand.u32 %v305, 4294901760
  %v494 = vsub.f32 %v305, %v493
  %v495 = vand.u32 %v494, 4294901760
  %496 = vmatmul.f32.gmra.mxu0 %v495
  %v497 = vpop.f32.mrf.mxu0
  %v498 = vadd.f32 %v454, %v497
  %v499 = vand.u32 %v308, 4294901760
  %v500 = vsub.f32 %v308, %v499
  %v501 = vand.u32 %v500, 4294901760
  %502 = vmatmul.f32.gmra.mxu0 %v501
  %v503 = vpop.f32.mrf.mxu0
  %v504 = vadd.f32 %v459, %v503
  %505 = vdwg.mxu0
  %506 = vmatpush.msra.mxu0 0.0
  %507 = vmatpush.msra.mxu0 0.0
  %508 = vmatpush.msra.mxu0 0.0
  %509 = vmatpush.msra.mxu0 0.0
  %510 = vmatpush.msra.mxu0 0.0
  %511 = vmatpush.msra.mxu0 0.0
  %512 = vmatpush.msra.mxu0 0.0
  %513 = vmatpush.msra.mxu0 0.0
  %514 = vmatpush.msra.mxu0 0.0
  %515 = vmatpush.msra.mxu0 0.0
  %516 = vmatpush.msra.mxu0 0.0
  %517 = vmatpush.msra.mxu0 0.0
  %v518 = vand.u32 %v73, 4294901760
  %v519 = vsub.f32 %v73, %v518
  %v520 = vand.u32 %v519, 4294901760
  %521 = vmatpush.msra.mxu0 %v520
  %v522 = vand.u32 %v69, 4294901760
  %v523 = vsub.f32 %v69, %v522
  %v524 = vand.u32 %v523, 4294901760
  %525 = vmatpush.msra.mxu0 %v524
  %v526 = vand.u32 %v65, 4294901760
  %v527 = vsub.f32 %v65, %v526
  %v528 = vand.u32 %v527, 4294901760
  %529 = vmatpush.msra.mxu0 %v528
  %v530 = vand.u32 %v61, 4294901760
  %v531 = vsub.f32 %v61, %v530
  %v532 = vand.u32 %v531, 4294901760
  %533 = vmatpush.msra.mxu0 %v532
  %v534 = vand.u32 %v299, 4294901760
  %535 = vmatmul.f32.gmra.mxu0 %v534
  %v536 = vpop.f32.mrf.mxu0
  %v537 = vadd.f32 %v486, %v536
  %v538 = vand.u32 %v302, 4294901760
  %539 = vmatmul.f32.gmra.mxu0 %v538
  %v540 = vpop.f32.mrf.mxu0
  %v541 = vadd.f32 %v492, %v540
  %v542 = vand.u32 %v305, 4294901760
  %543 = vmatmul.f32.gmra.mxu0 %v542
  %v544 = vpop.f32.mrf.mxu0
  %v545 = vadd.f32 %v498, %v544
  %v546 = vand.u32 %v308, 4294901760
  %547 = vmatmul.f32.gmra.mxu0 %v546
  %v548 = vpop.f32.mrf.mxu0
  %v549 = vadd.f32 %v504, %v548
  %550 = vdwg.mxu0
  %551 = vmatpush.msra.mxu0 0.0
  %552 = vmatpush.msra.mxu0 0.0
  %553 = vmatpush.msra.mxu0 0.0
  %554 = vmatpush.msra.mxu0 0.0
  %555 = vmatpush.msra.mxu0 0.0
  %556 = vmatpush.msra.mxu0 0.0
  %557 = vmatpush.msra.mxu0 0.0
  %558 = vmatpush.msra.mxu0 0.0
  %559 = vmatpush.msra.mxu0 0.0
  %560 = vmatpush.msra.mxu0 0.0
  %561 = vmatpush.msra.mxu0 0.0
  %562 = vmatpush.msra.mxu0 0.0
  %v563 = vand.u32 %v73, 4294901760
  %564 = vmatpush.msra.mxu0 %v563
  %v565 = vand.u32 %v69, 4294901760
  %566 = vmatpush.msra.mxu0 %v565
  %v567 = vand.u32 %v65, 4294901760
  %568 = vmatpush.msra.mxu0 %v567
  %v569 = vand.u32 %v61, 4294901760
  %570 = vmatpush.msra.mxu0 %v569
  %v571 = vand.u32 %v299, 4294901760
  %572 = vmatmul.f32.gmra.mxu0 %v571
  %v573 = vpop.f32.mrf.mxu0
  %v574 = vadd.f32 %v537, %v573
  %v575 = vand.u32 %v302, 4294901760
  %576 = vmatmul.f32.gmra.mxu0 %v575
  %v577 = vpop.f32.mrf.mxu0
  %v578 = vadd.f32 %v541, %v577
  %v579 = vand.u32 %v305, 4294901760
  %580 = vmatmul.f32.gmra.mxu0 %v579
  %v581 = vpop.f32.mrf.mxu0
  %v582 = vadd.f32 %v545, %v581
  %v583 = vand.u32 %v308, 4294901760
  %584 = vmatmul.f32.gmra.mxu0 %v583
  %v585 = vpop.f32.mrf.mxu0
  %v586 = vadd.f32 %v549, %v585
  %587 = vdwg.mxu0
  %588 = vmatpush.msra.mxu0 0.0
  %589 = vmatpush.msra.mxu0 0.0
  %590 = vmatpush.msra.mxu0 0.0
  %591 = vmatpush.msra.mxu0 0.0
  %592 = vmatpush.msra.mxu0 0.0
  %593 = vmatpush.msra.mxu0 0.0
  %594 = vmatpush.msra.mxu0 0.0
  %595 = vmatpush.msra.mxu0 0.0
  %596 = vmatpush.msra.mxu0 0.0
  %597 = vmatpush.msra.mxu0 0.0
  %598 = vmatpush.msra.mxu0 0.0
  %599 = vmatpush.msra.mxu0 0.0
  %v600 = vand.u32 %v74, 4294901760
  %601 = vmatpush.msra.mxu0 %v600
  %v602 = vand.u32 %v70, 4294901760
  %603 = vmatpush.msra.mxu0 %v602
  %v604 = vand.u32 %v66, 4294901760
  %605 = vmatpush.msra.mxu0 %v604
  %v606 = vand.u32 %v62, 4294901760
  %607 = vmatpush.msra.mxu0 %v606
  %v608 = vand.u32 %v299, 4294901760
  %v609 = vsub.f32 %v299, %v608
  %v610 = vand.u32 %v609, 4294901760
  %v611 = vsub.f32 %v609, %v610
  %v612 = vand.u32 %v611, 4294901760
  %613 = vmatmul.f32.gmra.mxu0 %v612
  %v614 = vpop.f32.mrf.mxu0
  %v615 = vadd.f32 0.0, %v614
  %v616 = vand.u32 %v302, 4294901760
  %v617 = vsub.f32 %v302, %v616
  %v618 = vand.u32 %v617, 4294901760
  %v619 = vsub.f32 %v617, %v618
  %v620 = vand.u32 %v619, 4294901760
  %621 = vmatmul.f32.gmra.mxu0 %v620
  %v622 = vpop.f32.mrf.mxu0
  %v623 = vadd.f32 0.0, %v622
  %v624 = vand.u32 %v305, 4294901760
  %v625 = vsub.f32 %v305, %v624
  %v626 = vand.u32 %v625, 4294901760
  %v627 = vsub.f32 %v625, %v626
  %v628 = vand.u32 %v627, 4294901760
  %629 = vmatmul.f32.gmra.mxu0 %v628
  %v630 = vpop.f32.mrf.mxu0
  %v631 = vadd.f32 0.0, %v630
  %v632 = vand.u32 %v308, 4294901760
  %v633 = vsub.f32 %v308, %v632
  %v634 = vand.u32 %v633, 4294901760
  %v635 = vsub.f32 %v633, %v634
  %v636 = vand.u32 %v635, 4294901760
  %637 = vmatmul.f32.gmra.mxu0 %v636
  %v638 = vpop.f32.mrf.mxu0
  %v639 = vadd.f32 0.0, %v638
  %640 = vdwg.mxu0
  %641 = vmatpush.msra.mxu0 0.0
  %642 = vmatpush.msra.mxu0 0.0
  %643 = vmatpush.msra.mxu0 0.0
  %644 = vmatpush.msra.mxu0 0.0
  %645 = vmatpush.msra.mxu0 0.0
  %646 = vmatpush.msra.mxu0 0.0
  %647 = vmatpush.msra.mxu0 0.0
  %648 = vmatpush.msra.mxu0 0.0
  %649 = vmatpush.msra.mxu0 0.0
  %650 = vmatpush.msra.mxu0 0.0
  %651 = vmatpush.msra.mxu0 0.0
  %652 = vmatpush.msra.mxu0 0.0
  %v653 = vand.u32 %v74, 4294901760
  %v654 = vsub.f32 %v74, %v653
  %v655 = vand.u32 %v654, 4294901760
  %v656 = vsub.f32 %v654, %v655
  %v657 = vand.u32 %v656, 4294901760
  %658 = vmatpush.msra.mxu0 %v657
  %v659 = vand.u32 %v70, 4294901760
  %v660 = vsub.f32 %v70, %v659
  %v661 = vand.u32 %v660, 4294901760
  %v662 = vsub.f32 %v660, %v661
  %v663 = vand.u32 %v662, 4294901760
  %664 = vmatpush.msra.mxu0 %v663
  %v665 = vand.u32 %v66, 4294901760
  %v666 = vsub.f32 %v66, %v665
  %v667 = vand.u32 %v666, 4294901760
  %v668 = vsub.f32 %v666, %v667
  %v669 = vand.u32 %v668, 4294901760
  %670 = vmatpush.msra.mxu0 %v669
  %v671 = vand.u32 %v62, 4294901760
  %v672 = vsub.f32 %v62, %v671
  %v673 = vand.u32 %v672, 4294901760
  %v674 = vsub.f32 %v672, %v673
  %v675 = vand.u32 %v674, 4294901760
  %676 = vmatpush.msra.mxu0 %v675
  %v677 = vand.u32 %v299, 4294901760
  %678 = vmatmul.f32.gmra.mxu0 %v677
  %v679 = vpop.f32.mrf.mxu0
  %v680 = vadd.f32 %v615, %v679
  %v681 = vand.u32 %v302, 4294901760
  %682 = vmatmul.f32.gmra.mxu0 %v681
  %v683 = vpop.f32.mrf.mxu0
  %v684 = vadd.f32 %v623, %v683
  %v685 = vand.u32 %v305, 4294901760
  %686 = vmatmul.f32.gmra.mxu0 %v685
  %v687 = vpop.f32.mrf.mxu0
  %v688 = vadd.f32 %v631, %v687
  %v689 = vand.u32 %v308, 4294901760
  %690 = vmatmul.f32.gmra.mxu0 %v689
  %v691 = vpop.f32.mrf.mxu0
  %v692 = vadd.f32 %v639, %v691
  %693 = vdwg.mxu0
  %694 = vmatpush.msra.mxu0 0.0
  %695 = vmatpush.msra.mxu0 0.0
  %696 = vmatpush.msra.mxu0 0.0
  %697 = vmatpush.msra.mxu0 0.0
  %698 = vmatpush.msra.mxu0 0.0
  %699 = vmatpush.msra.mxu0 0.0
  %700 = vmatpush.msra.mxu0 0.0
  %701 = vmatpush.msra.mxu0 0.0
  %702 = vmatpush.msra.mxu0 0.0
  %703 = vmatpush.msra.mxu0 0.0
  %704 = vmatpush.msra.mxu0 0.0
  %705 = vmatpush.msra.mxu0 0.0
  %v706 = vand.u32 %v74, 4294901760
  %v707 = vsub.f32 %v74, %v706
  %708 = vmatpush.msra.mxu0 %v707
  %v709 = vand.u32 %v70, 4294901760
  %v710 = vsub.f32 %v70, %v709
  %711 = vmatpush.msra.mxu0 %v710
  %v712 = vand.u32 %v66, 4294901760
  %v713 = vsub.f32 %v66, %v712
  %714 = vmatpush.msra.mxu0 %v713
  %v715 = vand.u32 %v62, 4294901760
  %v716 = vsub.f32 %v62, %v715
  %717 = vmatpush.msra.mxu0 %v716
  %v718 = vand.u32 %v299, 4294901760
  %v719 = vsub.f32 %v299, %v718
  %720 = vmatmul.f32.gmra.mxu0 %v719
  %v721 = vpop.f32.mrf.mxu0
  %v722 = vadd.f32 %v680, %v721
  %v723 = vand.u32 %v302, 4294901760
  %v724 = vsub.f32 %v302, %v723
  %725 = vmatmul.f32.gmra.mxu0 %v724
  %v726 = vpop.f32.mrf.mxu0
  %v727 = vadd.f32 %v684, %v726
  %v728 = vand.u32 %v305, 4294901760
  %v729 = vsub.f32 %v305, %v728
  %730 = vmatmul.f32.gmra.mxu0 %v729
  %v731 = vpop.f32.mrf.mxu0
  %v732 = vadd.f32 %v688, %v731
  %v733 = vand.u32 %v308, 4294901760
  %v734 = vsub.f32 %v308, %v733
  %735 = vmatmul.f32.gmra.mxu0 %v734
  %v736 = vpop.f32.mrf.mxu0
  %v737 = vadd.f32 %v692, %v736
  %738 = vdwg.mxu0
  %739 = vmatpush.msra.mxu0 0.0
  %740 = vmatpush.msra.mxu0 0.0
  %741 = vmatpush.msra.mxu0 0.0
  %742 = vmatpush.msra.mxu0 0.0
  %743 = vmatpush.msra.mxu0 0.0
  %744 = vmatpush.msra.mxu0 0.0
  %745 = vmatpush.msra.mxu0 0.0
  %746 = vmatpush.msra.mxu0 0.0
  %747 = vmatpush.msra.mxu0 0.0
  %748 = vmatpush.msra.mxu0 0.0
  %749 = vmatpush.msra.mxu0 0.0
  %750 = vmatpush.msra.mxu0 0.0
  %v751 = vand.u32 %v74, 4294901760
  %752 = vmatpush.msra.mxu0 %v751
  %v753 = vand.u32 %v70, 4294901760
  %754 = vmatpush.msra.mxu0 %v753
  %v755 = vand.u32 %v66, 4294901760
  %756 = vmatpush.msra.mxu0 %v755
  %v757 = vand.u32 %v62, 4294901760
  %758 = vmatpush.msra.mxu0 %v757
  %v759 = vand.u32 %v299, 4294901760
  %v760 = vsub.f32 %v299, %v759
  %v761 = vand.u32 %v760, 4294901760
  %762 = vmatmul.f32.gmra.mxu0 %v761
  %v763 = vpop.f32.mrf.mxu0
  %v764 = vadd.f32 %v722, %v763
  %v765 = vand.u32 %v302, 4294901760
  %v766 = vsub.f32 %v302, %v765
  %v767 = vand.u32 %v766, 4294901760
  %768 = vmatmul.f32.gmra.mxu0 %v767
  %v769 = vpop.f32.mrf.mxu0
  %v770 = vadd.f32 %v727, %v769
  %v771 = vand.u32 %v305, 4294901760
  %v772 = vsub.f32 %v305, %v771
  %v773 = vand.u32 %v772, 4294901760
  %774 = vmatmul.f32.gmra.mxu0 %v773
  %v775 = vpop.f32.mrf.mxu0
  %v776 = vadd.f32 %v732, %v775
  %v777 = vand.u32 %v308, 4294901760
  %v778 = vsub.f32 %v308, %v777
  %v779 = vand.u32 %v778, 4294901760
  %780 = vmatmul.f32.gmra.mxu0 %v779
  %v781 = vpop.f32.mrf.mxu0
  %v782 = vadd.f32 %v737, %v781
  %783 = vdwg.mxu0
  %784 = vmatpush.msra.mxu0 0.0
  %785 = vmatpush.msra.mxu0 0.0
  %786 = vmatpush.msra.mxu0 0.0
  %787 = vmatpush.msra.mxu0 0.0
  %788 = vmatpush.msra.mxu0 0.0
  %789 = vmatpush.msra.mxu0 0.0
  %790 = vmatpush.msra.mxu0 0.0
  %791 = vmatpush.msra.mxu0 0.0
  %792 = vmatpush.msra.mxu0 0.0
  %793 = vmatpush.msra.mxu0 0.0
  %794 = vmatpush.msra.mxu0 0.0
  %795 = vmatpush.msra.mxu0 0.0
  %v796 = vand.u32 %v74, 4294901760
  %v797 = vsub.f32 %v74, %v796
  %v798 = vand.u32 %v797, 4294901760
  %799 = vmatpush.msra.mxu0 %v798
  %v800 = vand.u32 %v70, 4294901760
  %v801 = vsub.f32 %v70, %v800
  %v802 = vand.u32 %v801, 4294901760
  %803 = vmatpush.msra.mxu0 %v802
  %v804 = vand.u32 %v66, 4294901760
  %v805 = vsub.f32 %v66, %v804
  %v806 = vand.u32 %v805, 4294901760
  %807 = vmatpush.msra.mxu0 %v806
  %v808 = vand.u32 %v62, 4294901760
  %v809 = vsub.f32 %v62, %v808
  %v810 = vand.u32 %v809, 4294901760
  %811 = vmatpush.msra.mxu0 %v810
  %v812 = vand.u32 %v299, 4294901760
  %813 = vmatmul.f32.gmra.mxu0 %v812
  %v814 = vpop.f32.mrf.mxu0
  %v815 = vadd.f32 %v764, %v814
  %v816 = vand.u32 %v302, 4294901760
  %817 = vmatmul.f32.gmra.mxu0 %v816
  %v818 = vpop.f32.mrf.mxu0
  %v819 = vadd.f32 %v770, %v818
  %v820 = vand.u32 %v305, 4294901760
  %821 = vmatmul.f32.gmra.mxu0 %v820
  %v822 = vpop.f32.mrf.mxu0
  %v823 = vadd.f32 %v776, %v822
  %v824 = vand.u32 %v308, 4294901760
  %825 = vmatmul.f32.gmra.mxu0 %v824
  %v826 = vpop.f32.mrf.mxu0
  %v827 = vadd.f32 %v782, %v826
  %828 = vdwg.mxu0
  %829 = vmatpush.msra.mxu0 0.0
  %830 = vmatpush.msra.mxu0 0.0
  %831 = vmatpush.msra.mxu0 0.0
  %832 = vmatpush.msra.mxu0 0.0
  %833 = vmatpush.msra.mxu0 0.0
  %834 = vmatpush.msra.mxu0 0.0
  %835 = vmatpush.msra.mxu0 0.0
  %836 = vmatpush.msra.mxu0 0.0
  %837 = vmatpush.msra.mxu0 0.0
  %838 = vmatpush.msra.mxu0 0.0
  %839 = vmatpush.msra.mxu0 0.0
  %840 = vmatpush.msra.mxu0 0.0
  %v841 = vand.u32 %v74, 4294901760
  %842 = vmatpush.msra.mxu0 %v841
  %v843 = vand.u32 %v70, 4294901760
  %844 = vmatpush.msra.mxu0 %v843
  %v845 = vand.u32 %v66, 4294901760
  %846 = vmatpush.msra.mxu0 %v845
  %v847 = vand.u32 %v62, 4294901760
  %848 = vmatpush.msra.mxu0 %v847
  %v849 = vand.u32 %v299, 4294901760
  %850 = vmatmul.f32.gmra.mxu0 %v849
  %v851 = vpop.f32.mrf.mxu0
  %v852 = vadd.f32 %v815, %v851
  %v853 = vand.u32 %v302, 4294901760
  %854 = vmatmul.f32.gmra.mxu0 %v853
  %v855 = vpop.f32.mrf.mxu0
  %v856 = vadd.f32 %v819, %v855
  %v857 = vand.u32 %v305, 4294901760
  %858 = vmatmul.f32.gmra.mxu0 %v857
  %v859 = vpop.f32.mrf.mxu0
  %v860 = vadd.f32 %v823, %v859
  %v861 = vand.u32 %v308, 4294901760
  %862 = vmatmul.f32.gmra.mxu0 %v861
  %v863 = vpop.f32.mrf.mxu0
  %v864 = vadd.f32 %v827, %v863
  %865 = vdwg.mxu0
  %866 = vmatpush.msra.mxu0 0.0
  %867 = vmatpush.msra.mxu0 0.0
  %868 = vmatpush.msra.mxu0 0.0
  %869 = vmatpush.msra.mxu0 0.0
  %870 = vmatpush.msra.mxu0 0.0
  %871 = vmatpush.msra.mxu0 0.0
  %872 = vmatpush.msra.mxu0 0.0
  %873 = vmatpush.msra.mxu0 0.0
  %874 = vmatpush.msra.mxu0 0.0
  %875 = vmatpush.msra.mxu0 0.0
  %876 = vmatpush.msra.mxu0 0.0
  %877 = vmatpush.msra.mxu0 0.0
  %v878 = vand.u32 %v75, 4294901760
  %879 = vmatpush.msra.mxu0 %v878
  %v880 = vand.u32 %v71, 4294901760
  %881 = vmatpush.msra.mxu0 %v880
  %v882 = vand.u32 %v67, 4294901760
  %883 = vmatpush.msra.mxu0 %v882
  %v884 = vand.u32 %v63, 4294901760
  %885 = vmatpush.msra.mxu0 %v884
  %v886 = vand.u32 %v299, 4294901760
  %v887 = vsub.f32 %v299, %v886
  %v888 = vand.u32 %v887, 4294901760
  %v889 = vsub.f32 %v887, %v888
  %v890 = vand.u32 %v889, 4294901760
  %891 = vmatmul.f32.gmra.mxu0 %v890
  %v892 = vpop.f32.mrf.mxu0
  %v893 = vadd.f32 0.0, %v892
  %v894 = vand.u32 %v302, 4294901760
  %v895 = vsub.f32 %v302, %v894
  %v896 = vand.u32 %v895, 4294901760
  %v897 = vsub.f32 %v895, %v896
  %v898 = vand.u32 %v897, 4294901760
  %899 = vmatmul.f32.gmra.mxu0 %v898
  %v900 = vpop.f32.mrf.mxu0
  %v901 = vadd.f32 0.0, %v900
  %v902 = vand.u32 %v305, 4294901760
  %v903 = vsub.f32 %v305, %v902
  %v904 = vand.u32 %v903, 4294901760
  %v905 = vsub.f32 %v903, %v904
  %v906 = vand.u32 %v905, 4294901760
  %907 = vmatmul.f32.gmra.mxu0 %v906
  %v908 = vpop.f32.mrf.mxu0
  %v909 = vadd.f32 0.0, %v908
  %v910 = vand.u32 %v308, 4294901760
  %v911 = vsub.f32 %v308, %v910
  %v912 = vand.u32 %v911, 4294901760
  %v913 = vsub.f32 %v911, %v912
  %v914 = vand.u32 %v913, 4294901760
  %915 = vmatmul.f32.gmra.mxu0 %v914
  %v916 = vpop.f32.mrf.mxu0
  %v917 = vadd.f32 0.0, %v916
  %918 = vdwg.mxu0
  %919 = vmatpush.msra.mxu0 0.0
  %920 = vmatpush.msra.mxu0 0.0
  %921 = vmatpush.msra.mxu0 0.0
  %922 = vmatpush.msra.mxu0 0.0
  %923 = vmatpush.msra.mxu0 0.0
  %924 = vmatpush.msra.mxu0 0.0
  %925 = vmatpush.msra.mxu0 0.0
  %926 = vmatpush.msra.mxu0 0.0
  %927 = vmatpush.msra.mxu0 0.0
  %928 = vmatpush.msra.mxu0 0.0
  %929 = vmatpush.msra.mxu0 0.0
  %930 = vmatpush.msra.mxu0 0.0
  %v931 = vand.u32 %v75, 4294901760
  %v932 = vsub.f32 %v75, %v931
  %v933 = vand.u32 %v932, 4294901760
  %v934 = vsub.f32 %v932, %v933
  %v935 = vand.u32 %v934, 4294901760
  %936 = vmatpush.msra.mxu0 %v935
  %v937 = vand.u32 %v71, 4294901760
  %v938 = vsub.f32 %v71, %v937
  %v939 = vand.u32 %v938, 4294901760
  %v940 = vsub.f32 %v938, %v939
  %v941 = vand.u32 %v940, 4294901760
  %942 = vmatpush.msra.mxu0 %v941
  %v943 = vand.u32 %v67, 4294901760
  %v944 = vsub.f32 %v67, %v943
  %v945 = vand.u32 %v944, 4294901760
  %v946 = vsub.f32 %v944, %v945
  %v947 = vand.u32 %v946, 4294901760
  %948 = vmatpush.msra.mxu0 %v947
  %v949 = vand.u32 %v63, 4294901760
  %v950 = vsub.f32 %v63, %v949
  %v951 = vand.u32 %v950, 4294901760
  %v952 = vsub.f32 %v950, %v951
  %v953 = vand.u32 %v952, 4294901760
  %954 = vmatpush.msra.mxu0 %v953
  %v955 = vand.u32 %v299, 4294901760
  %956 = vmatmul.f32.gmra.mxu0 %v955
  %v957 = vpop.f32.mrf.mxu0
  %v958 = vadd.f32 %v893, %v957
  %v959 = vand.u32 %v302, 4294901760
  %960 = vmatmul.f32.gmra.mxu0 %v959
  %v961 = vpop.f32.mrf.mxu0
  %v962 = vadd.f32 %v901, %v961
  %v963 = vand.u32 %v305, 4294901760
  %964 = vmatmul.f32.gmra.mxu0 %v963
  %v965 = vpop.f32.mrf.mxu0
  %v966 = vadd.f32 %v909, %v965
  %v967 = vand.u32 %v308, 4294901760
  %968 = vmatmul.f32.gmra.mxu0 %v967
  %v969 = vpop.f32.mrf.mxu0
  %v970 = vadd.f32 %v917, %v969
  %971 = vdwg.mxu0
  %972 = vmatpush.msra.mxu0 0.0
  %973 = vmatpush.msra.mxu0 0.0
  %974 = vmatpush.msra.mxu0 0.0
  %975 = vmatpush.msra.mxu0 0.0
  %976 = vmatpush.msra.mxu0 0.0
  %977 = vmatpush.msra.mxu0 0.0
  %978 = vmatpush.msra.mxu0 0.0
  %979 = vmatpush.msra.mxu0 0.0
  %980 = vmatpush.msra.mxu0 0.0
  %981 = vmatpush.msra.mxu0 0.0
  %982 = vmatpush.msra.mxu0 0.0
  %983 = vmatpush.msra.mxu0 0.0
  %v984 = vand.u32 %v75, 4294901760
  %v985 = vsub.f32 %v75, %v984
  %986 = vmatpush.msra.mxu0 %v985
  %v987 = vand.u32 %v71, 4294901760
  %v988 = vsub.f32 %v71, %v987
  %989 = vmatpush.msra.mxu0 %v988
  %v990 = vand.u32 %v67, 4294901760
  %v991 = vsub.f32 %v67, %v990
  %992 = vmatpush.msra.mxu0 %v991
  %v993 = vand.u32 %v63, 4294901760
  %v994 = vsub.f32 %v63, %v993
  %995 = vmatpush.msra.mxu0 %v994
  %v996 = vand.u32 %v299, 4294901760
  %v997 = vsub.f32 %v299, %v996
  %998 = vmatmul.f32.gmra.mxu0 %v997
  %v999 = vpop.f32.mrf.mxu0
  %v1000 = vadd.f32 %v958, %v999
  %v1001 = vand.u32 %v302, 4294901760
  %v1002 = vsub.f32 %v302, %v1001
  %1003 = vmatmul.f32.gmra.mxu0 %v1002
  %v1004 = vpop.f32.mrf.mxu0
  %v1005 = vadd.f32 %v962, %v1004
  %v1006 = vand.u32 %v305, 4294901760
  %v1007 = vsub.f32 %v305, %v1006
  %1008 = vmatmul.f32.gmra.mxu0 %v1007
  %v1009 = vpop.f32.mrf.mxu0
  %v1010 = vadd.f32 %v966, %v1009
  %v1011 = vand.u32 %v308, 4294901760
  %v1012 = vsub.f32 %v308, %v1011
  %1013 = vmatmul.f32.gmra.mxu0 %v1012
  %v1014 = vpop.f32.mrf.mxu0
  %v1015 = vadd.f32 %v970, %v1014
  %1016 = vdwg.mxu0
  %1017 = vmatpush.msra.mxu0 0.0
  %1018 = vmatpush.msra.mxu0 0.0
  %1019 = vmatpush.msra.mxu0 0.0
  %1020 = vmatpush.msra.mxu0 0.0
  %1021 = vmatpush.msra.mxu0 0.0
  %1022 = vmatpush.msra.mxu0 0.0
  %1023 = vmatpush.msra.mxu0 0.0
  %1024 = vmatpush.msra.mxu0 0.0
  %1025 = vmatpush.msra.mxu0 0.0
  %1026 = vmatpush.msra.mxu0 0.0
  %1027 = vmatpush.msra.mxu0 0.0
  %1028 = vmatpush.msra.mxu0 0.0
  %v1029 = vand.u32 %v75, 4294901760
  %1030 = vmatpush.msra.mxu0 %v1029
  %v1031 = vand.u32 %v71, 4294901760
  %1032 = vmatpush.msra.mxu0 %v1031
  %v1033 = vand.u32 %v67, 4294901760
  %1034 = vmatpush.msra.mxu0 %v1033
  %v1035 = vand.u32 %v63, 4294901760
  %1036 = vmatpush.msra.mxu0 %v1035
  %v1037 = vand.u32 %v299, 4294901760
  %v1038 = vsub.f32 %v299, %v1037
  %v1039 = vand.u32 %v1038, 4294901760
  %1040 = vmatmul.f32.gmra.mxu0 %v1039
  %v1041 = vpop.f32.mrf.mxu0
  %v1042 = vadd.f32 %v1000, %v1041
  %v1043 = vand.u32 %v302, 4294901760
  %v1044 = vsub.f32 %v302, %v1043
  %v1045 = vand.u32 %v1044, 4294901760
  %1046 = vmatmul.f32.gmra.mxu0 %v1045
  %v1047 = vpop.f32.mrf.mxu0
  %v1048 = vadd.f32 %v1005, %v1047
  %v1049 = vand.u32 %v305, 4294901760
  %v1050 = vsub.f32 %v305, %v1049
  %v1051 = vand.u32 %v1050, 4294901760
  %1052 = vmatmul.f32.gmra.mxu0 %v1051
  %v1053 = vpop.f32.mrf.mxu0
  %v1054 = vadd.f32 %v1010, %v1053
  %v1055 = vand.u32 %v308, 4294901760
  %v1056 = vsub.f32 %v308, %v1055
  %v1057 = vand.u32 %v1056, 4294901760
  %1058 = vmatmul.f32.gmra.mxu0 %v1057
  %v1059 = vpop.f32.mrf.mxu0
  %v1060 = vadd.f32 %v1015, %v1059
  %1061 = vdwg.mxu0
  %1062 = vmatpush.msra.mxu0 0.0
  %1063 = vmatpush.msra.mxu0 0.0
  %1064 = vmatpush.msra.mxu0 0.0
  %1065 = vmatpush.msra.mxu0 0.0
  %1066 = vmatpush.msra.mxu0 0.0
  %1067 = vmatpush.msra.mxu0 0.0
  %1068 = vmatpush.msra.mxu0 0.0
  %1069 = vmatpush.msra.mxu0 0.0
  %1070 = vmatpush.msra.mxu0 0.0
  %1071 = vmatpush.msra.mxu0 0.0
  %1072 = vmatpush.msra.mxu0 0.0
  %1073 = vmatpush.msra.mxu0 0.0
  %v1074 = vand.u32 %v75, 4294901760
  %v1075 = vsub.f32 %v75, %v1074
  %v1076 = vand.u32 %v1075, 4294901760
  %1077 = vmatpush.msra.mxu0 %v1076
  %v1078 = vand.u32 %v71, 4294901760
  %v1079 = vsub.f32 %v71, %v1078
  %v1080 = vand.u32 %v1079, 4294901760
  %1081 = vmatpush.msra.mxu0 %v1080
  %v1082 = vand.u32 %v67, 4294901760
  %v1083 = vsub.f32 %v67, %v1082
  %v1084 = vand.u32 %v1083, 4294901760
  %1085 = vmatpush.msra.mxu0 %v1084
  %v1086 = vand.u32 %v63, 4294901760
  %v1087 = vsub.f32 %v63, %v1086
  %v1088 = vand.u32 %v1087, 4294901760
  %1089 = vmatpush.msra.mxu0 %v1088
  %v1090 = vand.u32 %v299, 4294901760
  %1091 = vmatmul.f32.gmra.mxu0 %v1090
  %v1092 = vpop.f32.mrf.mxu0
  %v1093 = vadd.f32 %v1042, %v1092
  %v1094 = vand.u32 %v302, 4294901760
  %1095 = vmatmul.f32.gmra.mxu0 %v1094
  %v1096 = vpop.f32.mrf.mxu0
  %v1097 = vadd.f32 %v1048, %v1096
  %v1098 = vand.u32 %v305, 4294901760
  %1099 = vmatmul.f32.gmra.mxu0 %v1098
  %v1100 = vpop.f32.mrf.mxu0
  %v1101 = vadd.f32 %v1054, %v1100
  %v1102 = vand.u32 %v308, 4294901760
  %1103 = vmatmul.f32.gmra.mxu0 %v1102
  %v1104 = vpop.f32.mrf.mxu0
  %v1105 = vadd.f32 %v1060, %v1104
  %1106 = vdwg.mxu0
  %1107 = vmatpush.msra.mxu0 0.0
  %1108 = vmatpush.msra.mxu0 0.0
  %1109 = vmatpush.msra.mxu0 0.0
  %1110 = vmatpush.msra.mxu0 0.0
  %1111 = vmatpush.msra.mxu0 0.0
  %1112 = vmatpush.msra.mxu0 0.0
  %1113 = vmatpush.msra.mxu0 0.0
  %1114 = vmatpush.msra.mxu0 0.0
  %1115 = vmatpush.msra.mxu0 0.0
  %1116 = vmatpush.msra.mxu0 0.0
  %1117 = vmatpush.msra.mxu0 0.0
  %1118 = vmatpush.msra.mxu0 0.0
  %v1119 = vand.u32 %v75, 4294901760
  %1120 = vmatpush.msra.mxu0 %v1119
  %v1121 = vand.u32 %v71, 4294901760
  %1122 = vmatpush.msra.mxu0 %v1121
  %v1123 = vand.u32 %v67, 4294901760
  %1124 = vmatpush.msra.mxu0 %v1123
  %v1125 = vand.u32 %v63, 4294901760
  %1126 = vmatpush.msra.mxu0 %v1125
  %v1127 = vand.u32 %v299, 4294901760
  %1128 = vmatmul.f32.gmra.mxu0 %v1127
  %v1129 = vpop.f32.mrf.mxu0
  %v1130 = vadd.f32 %v1093, %v1129
  %v1131 = vand.u32 %v302, 4294901760
  %1132 = vmatmul.f32.gmra.mxu0 %v1131
  %v1133 = vpop.f32.mrf.mxu0
  %v1134 = vadd.f32 %v1097, %v1133
  %v1135 = vand.u32 %v305, 4294901760
  %1136 = vmatmul.f32.gmra.mxu0 %v1135
  %v1137 = vpop.f32.mrf.mxu0
  %v1138 = vadd.f32 %v1101, %v1137
  %v1139 = vand.u32 %v308, 4294901760
  %1140 = vmatmul.f32.gmra.mxu0 %v1139
  %v1141 = vpop.f32.mrf.mxu0
  %v1142 = vadd.f32 %v1105, %v1141
  %1143 = vdwg.mxu0
  %1144 = vmatpush.msra.mxu0 0.0
  %1145 = vmatpush.msra.mxu0 0.0
  %1146 = vmatpush.msra.mxu0 0.0
  %1147 = vmatpush.msra.mxu0 0.0
  %1148 = vmatpush.msra.mxu0 0.0
  %1149 = vmatpush.msra.mxu0 0.0
  %1150 = vmatpush.msra.mxu0 0.0
  %1151 = vmatpush.msra.mxu0 0.0
  %1152 = vmatpush.msra.mxu0 0.0
  %1153 = vmatpush.msra.mxu0 0.0
  %1154 = vmatpush.msra.mxu0 0.0
  %1155 = vmatpush.msra.mxu0 0.0
  %v1156 = vand.u32 %v76, 4294901760
  %1157 = vmatpush.msra.mxu0 %v1156
  %v1158 = vand.u32 %v72, 4294901760
  %1159 = vmatpush.msra.mxu0 %v1158
  %v1160 = vand.u32 %v68, 4294901760
  %1161 = vmatpush.msra.mxu0 %v1160
  %v1162 = vand.u32 %v64, 4294901760
  %1163 = vmatpush.msra.mxu0 %v1162
  %v1164 = vand.u32 %v299, 4294901760
  %v1165 = vsub.f32 %v299, %v1164
  %v1166 = vand.u32 %v1165, 4294901760
  %v1167 = vsub.f32 %v1165, %v1166
  %v1168 = vand.u32 %v1167, 4294901760
  %1169 = vmatmul.f32.gmra.mxu0 %v1168
  %v1170 = vpop.f32.mrf.mxu0
  %v1171 = vadd.f32 0.0, %v1170
  %v1172 = vand.u32 %v302, 4294901760
  %v1173 = vsub.f32 %v302, %v1172
  %v1174 = vand.u32 %v1173, 4294901760
  %v1175 = vsub.f32 %v1173, %v1174
  %v1176 = vand.u32 %v1175, 4294901760
  %1177 = vmatmul.f32.gmra.mxu0 %v1176
  %v1178 = vpop.f32.mrf.mxu0
  %v1179 = vadd.f32 0.0, %v1178
  %v1180 = vand.u32 %v305, 4294901760
  %v1181 = vsub.f32 %v305, %v1180
  %v1182 = vand.u32 %v1181, 4294901760
  %v1183 = vsub.f32 %v1181, %v1182
  %v1184 = vand.u32 %v1183, 4294901760
  %1185 = vmatmul.f32.gmra.mxu0 %v1184
  %v1186 = vpop.f32.mrf.mxu0
  %v1187 = vadd.f32 0.0, %v1186
  %v1188 = vand.u32 %v308, 4294901760
  %v1189 = vsub.f32 %v308, %v1188
  %v1190 = vand.u32 %v1189, 4294901760
  %v1191 = vsub.f32 %v1189, %v1190
  %v1192 = vand.u32 %v1191, 4294901760
  %1193 = vmatmul.f32.gmra.mxu0 %v1192
  %v1194 = vpop.f32.mrf.mxu0
  %v1195 = vadd.f32 0.0, %v1194
  %1196 = vdwg.mxu0
  %1197 = vmatpush.msra.mxu0 0.0
  %1198 = vmatpush.msra.mxu0 0.0
  %1199 = vmatpush.msra.mxu0 0.0
  %1200 = vmatpush.msra.mxu0 0.0
  %1201 = vmatpush.msra.mxu0 0.0
  %1202 = vmatpush.msra.mxu0 0.0
  %1203 = vmatpush.msra.mxu0 0.0
  %1204 = vmatpush.msra.mxu0 0.0
  %1205 = vmatpush.msra.mxu0 0.0
  %1206 = vmatpush.msra.mxu0 0.0
  %1207 = vmatpush.msra.mxu0 0.0
  %1208 = vmatpush.msra.mxu0 0.0
  %v1209 = vand.u32 %v76, 4294901760
  %v1210 = vsub.f32 %v76, %v1209
  %v1211 = vand.u32 %v1210, 4294901760
  %v1212 = vsub.f32 %v1210, %v1211
  %v1213 = vand.u32 %v1212, 4294901760
  %1214 = vmatpush.msra.mxu0 %v1213
  %v1215 = vand.u32 %v72, 4294901760
  %v1216 = vsub.f32 %v72, %v1215
  %v1217 = vand.u32 %v1216, 4294901760
  %v1218 = vsub.f32 %v1216, %v1217
  %v1219 = vand.u32 %v1218, 4294901760
  %1220 = vmatpush.msra.mxu0 %v1219
  %v1221 = vand.u32 %v68, 4294901760
  %v1222 = vsub.f32 %v68, %v1221
  %v1223 = vand.u32 %v1222, 4294901760
  %v1224 = vsub.f32 %v1222, %v1223
  %v1225 = vand.u32 %v1224, 4294901760
  %1226 = vmatpush.msra.mxu0 %v1225
  %v1227 = vand.u32 %v64, 4294901760
  %v1228 = vsub.f32 %v64, %v1227
  %v1229 = vand.u32 %v1228, 4294901760
  %v1230 = vsub.f32 %v1228, %v1229
  %v1231 = vand.u32 %v1230, 4294901760
  %1232 = vmatpush.msra.mxu0 %v1231
  %v1233 = vand.u32 %v299, 4294901760
  %1234 = vmatmul.f32.gmra.mxu0 %v1233
  %v1235 = vpop.f32.mrf.mxu0
  %v1236 = vadd.f32 %v1171, %v1235
  %v1237 = vand.u32 %v302, 4294901760
  %1238 = vmatmul.f32.gmra.mxu0 %v1237
  %v1239 = vpop.f32.mrf.mxu0
  %v1240 = vadd.f32 %v1179, %v1239
  %v1241 = vand.u32 %v305, 4294901760
  %1242 = vmatmul.f32.gmra.mxu0 %v1241
  %v1243 = vpop.f32.mrf.mxu0
  %v1244 = vadd.f32 %v1187, %v1243
  %v1245 = vand.u32 %v308, 4294901760
  %1246 = vmatmul.f32.gmra.mxu0 %v1245
  %v1247 = vpop.f32.mrf.mxu0
  %v1248 = vadd.f32 %v1195, %v1247
  %1249 = vdwg.mxu0
  %1250 = vmatpush.msra.mxu0 0.0
  %1251 = vmatpush.msra.mxu0 0.0
  %1252 = vmatpush.msra.mxu0 0.0
  %1253 = vmatpush.msra.mxu0 0.0
  %1254 = vmatpush.msra.mxu0 0.0
  %1255 = vmatpush.msra.mxu0 0.0
  %1256 = vmatpush.msra.mxu0 0.0
  %1257 = vmatpush.msra.mxu0 0.0
  %1258 = vmatpush.msra.mxu0 0.0
  %1259 = vmatpush.msra.mxu0 0.0
  %1260 = vmatpush.msra.mxu0 0.0
  %1261 = vmatpush.msra.mxu0 0.0
  %v1262 = vand.u32 %v76, 4294901760
  %v1263 = vsub.f32 %v76, %v1262
  %1264 = vmatpush.msra.mxu0 %v1263
  %v1265 = vand.u32 %v72, 4294901760
  %v1266 = vsub.f32 %v72, %v1265
  %1267 = vmatpush.msra.mxu0 %v1266
  %v1268 = vand.u32 %v68, 4294901760
  %v1269 = vsub.f32 %v68, %v1268
  %1270 = vmatpush.msra.mxu0 %v1269
  %v1271 = vand.u32 %v64, 4294901760
  %v1272 = vsub.f32 %v64, %v1271
  %1273 = vmatpush.msra.mxu0 %v1272
  %v1274 = vand.u32 %v299, 4294901760
  %v1275 = vsub.f32 %v299, %v1274
  %1276 = vmatmul.f32.gmra.mxu0 %v1275
  %v1277 = vpop.f32.mrf.mxu0
  %v1278 = vadd.f32 %v1236, %v1277
  %v1279 = vand.u32 %v302, 4294901760
  %v1280 = vsub.f32 %v302, %v1279
  %1281 = vmatmul.f32.gmra.mxu0 %v1280
  %v1282 = vpop.f32.mrf.mxu0
  %v1283 = vadd.f32 %v1240, %v1282
  %v1284 = vand.u32 %v305, 4294901760
  %v1285 = vsub.f32 %v305, %v1284
  %1286 = vmatmul.f32.gmra.mxu0 %v1285
  %v1287 = vpop.f32.mrf.mxu0
  %v1288 = vadd.f32 %v1244, %v1287
  %v1289 = vand.u32 %v308, 4294901760
  %v1290 = vsub.f32 %v308, %v1289
  %1291 = vmatmul.f32.gmra.mxu0 %v1290
  %v1292 = vpop.f32.mrf.mxu0
  %v1293 = vadd.f32 %v1248, %v1292
  %1294 = vdwg.mxu0
  %1295 = vmatpush.msra.mxu0 0.0
  %1296 = vmatpush.msra.mxu0 0.0
  %1297 = vmatpush.msra.mxu0 0.0
  %1298 = vmatpush.msra.mxu0 0.0
  %1299 = vmatpush.msra.mxu0 0.0
  %1300 = vmatpush.msra.mxu0 0.0
  %1301 = vmatpush.msra.mxu0 0.0
  %1302 = vmatpush.msra.mxu0 0.0
  %1303 = vmatpush.msra.mxu0 0.0
  %1304 = vmatpush.msra.mxu0 0.0
  %1305 = vmatpush.msra.mxu0 0.0
  %1306 = vmatpush.msra.mxu0 0.0
  %v1307 = vand.u32 %v76, 4294901760
  %1308 = vmatpush.msra.mxu0 %v1307
  %v1309 = vand.u32 %v72, 4294901760
  %1310 = vmatpush.msra.mxu0 %v1309
  %v1311 = vand.u32 %v68, 4294901760
  %1312 = vmatpush.msra.mxu0 %v1311
  %v1313 = vand.u32 %v64, 4294901760
  %1314 = vmatpush.msra.mxu0 %v1313
  %v1315 = vand.u32 %v299, 4294901760
  %v1316 = vsub.f32 %v299, %v1315
  %v1317 = vand.u32 %v1316, 4294901760
  %1318 = vmatmul.f32.gmra.mxu0 %v1317
  %v1319 = vpop.f32.mrf.mxu0
  %v1320 = vadd.f32 %v1278, %v1319
  %v1321 = vand.u32 %v302, 4294901760
  %v1322 = vsub.f32 %v302, %v1321
  %v1323 = vand.u32 %v1322, 4294901760
  %1324 = vmatmul.f32.gmra.mxu0 %v1323
  %v1325 = vpop.f32.mrf.mxu0
  %v1326 = vadd.f32 %v1283, %v1325
  %v1327 = vand.u32 %v305, 4294901760
  %v1328 = vsub.f32 %v305, %v1327
  %v1329 = vand.u32 %v1328, 4294901760
  %1330 = vmatmul.f32.gmra.mxu0 %v1329
  %v1331 = vpop.f32.mrf.mxu0
  %v1332 = vadd.f32 %v1288, %v1331
  %v1333 = vand.u32 %v308, 4294901760
  %v1334 = vsub.f32 %v308, %v1333
  %v1335 = vand.u32 %v1334, 4294901760
  %1336 = vmatmul.f32.gmra.mxu0 %v1335
  %v1337 = vpop.f32.mrf.mxu0
  %v1338 = vadd.f32 %v1293, %v1337
  %1339 = vdwg.mxu0
  %1340 = vmatpush.msra.mxu0 0.0
  %1341 = vmatpush.msra.mxu0 0.0
  %1342 = vmatpush.msra.mxu0 0.0
  %1343 = vmatpush.msra.mxu0 0.0
  %1344 = vmatpush.msra.mxu0 0.0
  %1345 = vmatpush.msra.mxu0 0.0
  %1346 = vmatpush.msra.mxu0 0.0
  %1347 = vmatpush.msra.mxu0 0.0
  %1348 = vmatpush.msra.mxu0 0.0
  %1349 = vmatpush.msra.mxu0 0.0
  %1350 = vmatpush.msra.mxu0 0.0
  %1351 = vmatpush.msra.mxu0 0.0
  %v1352 = vand.u32 %v76, 4294901760
  %v1353 = vsub.f32 %v76, %v1352
  %v1354 = vand.u32 %v1353, 4294901760
  %1355 = vmatpush.msra.mxu0 %v1354
  %v1356 = vand.u32 %v72, 4294901760
  %v1357 = vsub.f32 %v72, %v1356
  %v1358 = vand.u32 %v1357, 4294901760
  %1359 = vmatpush.msra.mxu0 %v1358
  %v1360 = vand.u32 %v68, 4294901760
  %v1361 = vsub.f32 %v68, %v1360
  %v1362 = vand.u32 %v1361, 4294901760
  %1363 = vmatpush.msra.mxu0 %v1362
  %v1364 = vand.u32 %v64, 4294901760
  %v1365 = vsub.f32 %v64, %v1364
  %v1366 = vand.u32 %v1365, 4294901760
  %1367 = vmatpush.msra.mxu0 %v1366
  %v1368 = vand.u32 %v299, 4294901760
  %1369 = vmatmul.f32.gmra.mxu0 %v1368
  %v1370 = vpop.f32.mrf.mxu0
  %v1371 = vadd.f32 %v1320, %v1370
  %v1372 = vand.u32 %v302, 4294901760
  %1373 = vmatmul.f32.gmra.mxu0 %v1372
  %v1374 = vpop.f32.mrf.mxu0
  %v1375 = vadd.f32 %v1326, %v1374
  %v1376 = vand.u32 %v305, 4294901760
  %1377 = vmatmul.f32.gmra.mxu0 %v1376
  %v1378 = vpop.f32.mrf.mxu0
  %v1379 = vadd.f32 %v1332, %v1378
  %v1380 = vand.u32 %v308, 4294901760
  %1381 = vmatmul.f32.gmra.mxu0 %v1380
  %v1382 = vpop.f32.mrf.mxu0
  %v1383 = vadd.f32 %v1338, %v1382
  %1384 = vdwg.mxu0
  %1385 = vmatpush.msra.mxu0 0.0
  %1386 = vmatpush.msra.mxu0 0.0
  %1387 = vmatpush.msra.mxu0 0.0
  %1388 = vmatpush.msra.mxu0 0.0
  %1389 = vmatpush.msra.mxu0 0.0
  %1390 = vmatpush.msra.mxu0 0.0
  %1391 = vmatpush.msra.mxu0 0.0
  %1392 = vmatpush.msra.mxu0 0.0
  %1393 = vmatpush.msra.mxu0 0.0
  %1394 = vmatpush.msra.mxu0 0.0
  %1395 = vmatpush.msra.mxu0 0.0
  %1396 = vmatpush.msra.mxu0 0.0
  %v1397 = vand.u32 %v76, 4294901760
  %1398 = vmatpush.msra.mxu0 %v1397
  %v1399 = vand.u32 %v72, 4294901760
  %1400 = vmatpush.msra.mxu0 %v1399
  %v1401 = vand.u32 %v68, 4294901760
  %1402 = vmatpush.msra.mxu0 %v1401
  %v1403 = vand.u32 %v64, 4294901760
  %1404 = vmatpush.msra.mxu0 %v1403
  %v1405 = vand.u32 %v299, 4294901760
  %1406 = vmatmul.f32.gmra.mxu0 %v1405
  %v1407 = vpop.f32.mrf.mxu0
  %v1408 = vadd.f32 %v1371, %v1407
  %v1409 = vand.u32 %v302, 4294901760
  %1410 = vmatmul.f32.gmra.mxu0 %v1409
  %v1411 = vpop.f32.mrf.mxu0
  %v1412 = vadd.f32 %v1375, %v1411
  %v1413 = vand.u32 %v305, 4294901760
  %1414 = vmatmul.f32.gmra.mxu0 %v1413
  %v1415 = vpop.f32.mrf.mxu0
  %v1416 = vadd.f32 %v1379, %v1415
  %v1417 = vand.u32 %v308, 4294901760
  %1418 = vmatmul.f32.gmra.mxu0 %v1417
  %v1419 = vpop.f32.mrf.mxu0
  %v1420 = vadd.f32 %v1383, %v1419
  %1421 = vdwg.mxu0
  %vm1422 = vcmask 523264
  %v1424 = vsel %vm1422, %v293, 0
  %v1427 = vsel %vm1422, %v294, 0
  %v1430 = vsel %vm1422, %v295, 0
  %v1433 = vsel %vm1422, %v296, 0
  %1435 = vmatpush.msra.mxu0 0.0
  %1436 = vmatpush.msra.mxu0 0.0
  %1437 = vmatpush.msra.mxu0 0.0
  %1438 = vmatpush.msra.mxu0 0.0
  %1439 = vmatpush.msra.mxu0 0.0
  %1440 = vmatpush.msra.mxu0 0.0
  %1441 = vmatpush.msra.mxu0 0.0
  %1442 = vmatpush.msra.mxu0 0.0
  %v1443 = vand.u32 %v181, 4294901760
  %1444 = vmatpush.msra.mxu0 %v1443
  %v1445 = vand.u32 %v177, 4294901760
  %1446 = vmatpush.msra.mxu0 %v1445
  %v1447 = vand.u32 %v173, 4294901760
  %1448 = vmatpush.msra.mxu0 %v1447
  %v1449 = vand.u32 %v169, 4294901760
  %1450 = vmatpush.msra.mxu0 %v1449
  %v1451 = vand.u32 %v165, 4294901760
  %1452 = vmatpush.msra.mxu0 %v1451
  %v1453 = vand.u32 %v161, 4294901760
  %1454 = vmatpush.msra.mxu0 %v1453
  %v1455 = vand.u32 %v157, 4294901760
  %1456 = vmatpush.msra.mxu0 %v1455
  %v1457 = vand.u32 %v153, 4294901760
  %1458 = vmatpush.msra.mxu0 %v1457
  %v1459 = vand.u32 %v1424, 4294901760
  %v1460 = vsub.f32 %v1424, %v1459
  %v1461 = vand.u32 %v1460, 4294901760
  %v1462 = vsub.f32 %v1460, %v1461
  %v1463 = vand.u32 %v1462, 4294901760
  %1464 = vmatmul.f32.gmra.mxu0 %v1463
  %v1465 = vpop.f32.mrf.mxu0
  %v1466 = vadd.f32 0.0, %v1465
  %v1467 = vand.u32 %v1427, 4294901760
  %v1468 = vsub.f32 %v1427, %v1467
  %v1469 = vand.u32 %v1468, 4294901760
  %v1470 = vsub.f32 %v1468, %v1469
  %v1471 = vand.u32 %v1470, 4294901760
  %1472 = vmatmul.f32.gmra.mxu0 %v1471
  %v1473 = vpop.f32.mrf.mxu0
  %v1474 = vadd.f32 0.0, %v1473
  %v1475 = vand.u32 %v1430, 4294901760
  %v1476 = vsub.f32 %v1430, %v1475
  %v1477 = vand.u32 %v1476, 4294901760
  %v1478 = vsub.f32 %v1476, %v1477
  %v1479 = vand.u32 %v1478, 4294901760
  %1480 = vmatmul.f32.gmra.mxu0 %v1479
  %v1481 = vpop.f32.mrf.mxu0
  %v1482 = vadd.f32 0.0, %v1481
  %v1483 = vand.u32 %v1433, 4294901760
  %v1484 = vsub.f32 %v1433, %v1483
  %v1485 = vand.u32 %v1484, 4294901760
  %v1486 = vsub.f32 %v1484, %v1485
  %v1487 = vand.u32 %v1486, 4294901760
  %1488 = vmatmul.f32.gmra.mxu0 %v1487
  %v1489 = vpop.f32.mrf.mxu0
  %v1490 = vadd.f32 0.0, %v1489
  %1491 = vdwg.mxu0
  %1492 = vmatpush.msra.mxu0 0.0
  %1493 = vmatpush.msra.mxu0 0.0
  %1494 = vmatpush.msra.mxu0 0.0
  %1495 = vmatpush.msra.mxu0 0.0
  %1496 = vmatpush.msra.mxu0 0.0
  %1497 = vmatpush.msra.mxu0 0.0
  %1498 = vmatpush.msra.mxu0 0.0
  %1499 = vmatpush.msra.mxu0 0.0
  %v1500 = vand.u32 %v181, 4294901760
  %v1501 = vsub.f32 %v181, %v1500
  %v1502 = vand.u32 %v1501, 4294901760
  %v1503 = vsub.f32 %v1501, %v1502
  %v1504 = vand.u32 %v1503, 4294901760
  %1505 = vmatpush.msra.mxu0 %v1504
  %v1506 = vand.u32 %v177, 4294901760
  %v1507 = vsub.f32 %v177, %v1506
  %v1508 = vand.u32 %v1507, 4294901760
  %v1509 = vsub.f32 %v1507, %v1508
  %v1510 = vand.u32 %v1509, 4294901760
  %1511 = vmatpush.msra.mxu0 %v1510
  %v1512 = vand.u32 %v173, 4294901760
  %v1513 = vsub.f32 %v173, %v1512
  %v1514 = vand.u32 %v1513, 4294901760
  %v1515 = vsub.f32 %v1513, %v1514
  %v1516 = vand.u32 %v1515, 4294901760
  %1517 = vmatpush.msra.mxu0 %v1516
  %v1518 = vand.u32 %v169, 4294901760
  %v1519 = vsub.f32 %v169, %v1518
  %v1520 = vand.u32 %v1519, 4294901760
  %v1521 = vsub.f32 %v1519, %v1520
  %v1522 = vand.u32 %v1521, 4294901760
  %1523 = vmatpush.msra.mxu0 %v1522
  %v1524 = vand.u32 %v165, 4294901760
  %v1525 = vsub.f32 %v165, %v1524
  %v1526 = vand.u32 %v1525, 4294901760
  %v1527 = vsub.f32 %v1525, %v1526
  %v1528 = vand.u32 %v1527, 4294901760
  %1529 = vmatpush.msra.mxu0 %v1528
  %v1530 = vand.u32 %v161, 4294901760
  %v1531 = vsub.f32 %v161, %v1530
  %v1532 = vand.u32 %v1531, 4294901760
  %v1533 = vsub.f32 %v1531, %v1532
  %v1534 = vand.u32 %v1533, 4294901760
  %1535 = vmatpush.msra.mxu0 %v1534
  %v1536 = vand.u32 %v157, 4294901760
  %v1537 = vsub.f32 %v157, %v1536
  %v1538 = vand.u32 %v1537, 4294901760
  %v1539 = vsub.f32 %v1537, %v1538
  %v1540 = vand.u32 %v1539, 4294901760
  %1541 = vmatpush.msra.mxu0 %v1540
  %v1542 = vand.u32 %v153, 4294901760
  %v1543 = vsub.f32 %v153, %v1542
  %v1544 = vand.u32 %v1543, 4294901760
  %v1545 = vsub.f32 %v1543, %v1544
  %v1546 = vand.u32 %v1545, 4294901760
  %1547 = vmatpush.msra.mxu0 %v1546
  %v1548 = vand.u32 %v1424, 4294901760
  %1549 = vmatmul.f32.gmra.mxu0 %v1548
  %v1550 = vpop.f32.mrf.mxu0
  %v1551 = vadd.f32 %v1466, %v1550
  %v1552 = vand.u32 %v1427, 4294901760
  %1553 = vmatmul.f32.gmra.mxu0 %v1552
  %v1554 = vpop.f32.mrf.mxu0
  %v1555 = vadd.f32 %v1474, %v1554
  %v1556 = vand.u32 %v1430, 4294901760
  %1557 = vmatmul.f32.gmra.mxu0 %v1556
  %v1558 = vpop.f32.mrf.mxu0
  %v1559 = vadd.f32 %v1482, %v1558
  %v1560 = vand.u32 %v1433, 4294901760
  %1561 = vmatmul.f32.gmra.mxu0 %v1560
  %v1562 = vpop.f32.mrf.mxu0
  %v1563 = vadd.f32 %v1490, %v1562
  %1564 = vdwg.mxu0
  %1565 = vmatpush.msra.mxu0 0.0
  %1566 = vmatpush.msra.mxu0 0.0
  %1567 = vmatpush.msra.mxu0 0.0
  %1568 = vmatpush.msra.mxu0 0.0
  %1569 = vmatpush.msra.mxu0 0.0
  %1570 = vmatpush.msra.mxu0 0.0
  %1571 = vmatpush.msra.mxu0 0.0
  %1572 = vmatpush.msra.mxu0 0.0
  %v1573 = vand.u32 %v181, 4294901760
  %v1574 = vsub.f32 %v181, %v1573
  %1575 = vmatpush.msra.mxu0 %v1574
  %v1576 = vand.u32 %v177, 4294901760
  %v1577 = vsub.f32 %v177, %v1576
  %1578 = vmatpush.msra.mxu0 %v1577
  %v1579 = vand.u32 %v173, 4294901760
  %v1580 = vsub.f32 %v173, %v1579
  %1581 = vmatpush.msra.mxu0 %v1580
  %v1582 = vand.u32 %v169, 4294901760
  %v1583 = vsub.f32 %v169, %v1582
  %1584 = vmatpush.msra.mxu0 %v1583
  %v1585 = vand.u32 %v165, 4294901760
  %v1586 = vsub.f32 %v165, %v1585
  %1587 = vmatpush.msra.mxu0 %v1586
  %v1588 = vand.u32 %v161, 4294901760
  %v1589 = vsub.f32 %v161, %v1588
  %1590 = vmatpush.msra.mxu0 %v1589
  %v1591 = vand.u32 %v157, 4294901760
  %v1592 = vsub.f32 %v157, %v1591
  %1593 = vmatpush.msra.mxu0 %v1592
  %v1594 = vand.u32 %v153, 4294901760
  %v1595 = vsub.f32 %v153, %v1594
  %1596 = vmatpush.msra.mxu0 %v1595
  %v1597 = vand.u32 %v1424, 4294901760
  %v1598 = vsub.f32 %v1424, %v1597
  %1599 = vmatmul.f32.gmra.mxu0 %v1598
  %v1600 = vpop.f32.mrf.mxu0
  %v1601 = vadd.f32 %v1551, %v1600
  %v1602 = vand.u32 %v1427, 4294901760
  %v1603 = vsub.f32 %v1427, %v1602
  %1604 = vmatmul.f32.gmra.mxu0 %v1603
  %v1605 = vpop.f32.mrf.mxu0
  %v1606 = vadd.f32 %v1555, %v1605
  %v1607 = vand.u32 %v1430, 4294901760
  %v1608 = vsub.f32 %v1430, %v1607
  %1609 = vmatmul.f32.gmra.mxu0 %v1608
  %v1610 = vpop.f32.mrf.mxu0
  %v1611 = vadd.f32 %v1559, %v1610
  %v1612 = vand.u32 %v1433, 4294901760
  %v1613 = vsub.f32 %v1433, %v1612
  %1614 = vmatmul.f32.gmra.mxu0 %v1613
  %v1615 = vpop.f32.mrf.mxu0
  %v1616 = vadd.f32 %v1563, %v1615
  %1617 = vdwg.mxu0
  %1618 = vmatpush.msra.mxu0 0.0
  %1619 = vmatpush.msra.mxu0 0.0
  %1620 = vmatpush.msra.mxu0 0.0
  %1621 = vmatpush.msra.mxu0 0.0
  %1622 = vmatpush.msra.mxu0 0.0
  %1623 = vmatpush.msra.mxu0 0.0
  %1624 = vmatpush.msra.mxu0 0.0
  %1625 = vmatpush.msra.mxu0 0.0
  %v1626 = vand.u32 %v181, 4294901760
  %1627 = vmatpush.msra.mxu0 %v1626
  %v1628 = vand.u32 %v177, 4294901760
  %1629 = vmatpush.msra.mxu0 %v1628
  %v1630 = vand.u32 %v173, 4294901760
  %1631 = vmatpush.msra.mxu0 %v1630
  %v1632 = vand.u32 %v169, 4294901760
  %1633 = vmatpush.msra.mxu0 %v1632
  %v1634 = vand.u32 %v165, 4294901760
  %1635 = vmatpush.msra.mxu0 %v1634
  %v1636 = vand.u32 %v161, 4294901760
  %1637 = vmatpush.msra.mxu0 %v1636
  %v1638 = vand.u32 %v157, 4294901760
  %1639 = vmatpush.msra.mxu0 %v1638
  %v1640 = vand.u32 %v153, 4294901760
  %1641 = vmatpush.msra.mxu0 %v1640
  %v1642 = vand.u32 %v1424, 4294901760
  %v1643 = vsub.f32 %v1424, %v1642
  %v1644 = vand.u32 %v1643, 4294901760
  %1645 = vmatmul.f32.gmra.mxu0 %v1644
  %v1646 = vpop.f32.mrf.mxu0
  %v1647 = vadd.f32 %v1601, %v1646
  %v1648 = vand.u32 %v1427, 4294901760
  %v1649 = vsub.f32 %v1427, %v1648
  %v1650 = vand.u32 %v1649, 4294901760
  %1651 = vmatmul.f32.gmra.mxu0 %v1650
  %v1652 = vpop.f32.mrf.mxu0
  %v1653 = vadd.f32 %v1606, %v1652
  %v1654 = vand.u32 %v1430, 4294901760
  %v1655 = vsub.f32 %v1430, %v1654
  %v1656 = vand.u32 %v1655, 4294901760
  %1657 = vmatmul.f32.gmra.mxu0 %v1656
  %v1658 = vpop.f32.mrf.mxu0
  %v1659 = vadd.f32 %v1611, %v1658
  %v1660 = vand.u32 %v1433, 4294901760
  %v1661 = vsub.f32 %v1433, %v1660
  %v1662 = vand.u32 %v1661, 4294901760
  %1663 = vmatmul.f32.gmra.mxu0 %v1662
  %v1664 = vpop.f32.mrf.mxu0
  %v1665 = vadd.f32 %v1616, %v1664
  %1666 = vdwg.mxu0
  %1667 = vmatpush.msra.mxu0 0.0
  %1668 = vmatpush.msra.mxu0 0.0
  %1669 = vmatpush.msra.mxu0 0.0
  %1670 = vmatpush.msra.mxu0 0.0
  %1671 = vmatpush.msra.mxu0 0.0
  %1672 = vmatpush.msra.mxu0 0.0
  %1673 = vmatpush.msra.mxu0 0.0
  %1674 = vmatpush.msra.mxu0 0.0
  %v1675 = vand.u32 %v181, 4294901760
  %v1676 = vsub.f32 %v181, %v1675
  %v1677 = vand.u32 %v1676, 4294901760
  %1678 = vmatpush.msra.mxu0 %v1677
  %v1679 = vand.u32 %v177, 4294901760
  %v1680 = vsub.f32 %v177, %v1679
  %v1681 = vand.u32 %v1680, 4294901760
  %1682 = vmatpush.msra.mxu0 %v1681
  %v1683 = vand.u32 %v173, 4294901760
  %v1684 = vsub.f32 %v173, %v1683
  %v1685 = vand.u32 %v1684, 4294901760
  %1686 = vmatpush.msra.mxu0 %v1685
  %v1687 = vand.u32 %v169, 4294901760
  %v1688 = vsub.f32 %v169, %v1687
  %v1689 = vand.u32 %v1688, 4294901760
  %1690 = vmatpush.msra.mxu0 %v1689
  %v1691 = vand.u32 %v165, 4294901760
  %v1692 = vsub.f32 %v165, %v1691
  %v1693 = vand.u32 %v1692, 4294901760
  %1694 = vmatpush.msra.mxu0 %v1693
  %v1695 = vand.u32 %v161, 4294901760
  %v1696 = vsub.f32 %v161, %v1695
  %v1697 = vand.u32 %v1696, 4294901760
  %1698 = vmatpush.msra.mxu0 %v1697
  %v1699 = vand.u32 %v157, 4294901760
  %v1700 = vsub.f32 %v157, %v1699
  %v1701 = vand.u32 %v1700, 4294901760
  %1702 = vmatpush.msra.mxu0 %v1701
  %v1703 = vand.u32 %v153, 4294901760
  %v1704 = vsub.f32 %v153, %v1703
  %v1705 = vand.u32 %v1704, 4294901760
  %1706 = vmatpush.msra.mxu0 %v1705
  %v1707 = vand.u32 %v1424, 4294901760
  %1708 = vmatmul.f32.gmra.mxu0 %v1707
  %v1709 = vpop.f32.mrf.mxu0
  %v1710 = vadd.f32 %v1647, %v1709
  %v1711 = vand.u32 %v1427, 4294901760
  %1712 = vmatmul.f32.gmra.mxu0 %v1711
  %v1713 = vpop.f32.mrf.mxu0
  %v1714 = vadd.f32 %v1653, %v1713
  %v1715 = vand.u32 %v1430, 4294901760
  %1716 = vmatmul.f32.gmra.mxu0 %v1715
  %v1717 = vpop.f32.mrf.mxu0
  %v1718 = vadd.f32 %v1659, %v1717
  %v1719 = vand.u32 %v1433, 4294901760
  %1720 = vmatmul.f32.gmra.mxu0 %v1719
  %v1721 = vpop.f32.mrf.mxu0
  %v1722 = vadd.f32 %v1665, %v1721
  %1723 = vdwg.mxu0
  %1724 = vmatpush.msra.mxu0 0.0
  %1725 = vmatpush.msra.mxu0 0.0
  %1726 = vmatpush.msra.mxu0 0.0
  %1727 = vmatpush.msra.mxu0 0.0
  %1728 = vmatpush.msra.mxu0 0.0
  %1729 = vmatpush.msra.mxu0 0.0
  %1730 = vmatpush.msra.mxu0 0.0
  %1731 = vmatpush.msra.mxu0 0.0
  %v1732 = vand.u32 %v181, 4294901760
  %1733 = vmatpush.msra.mxu0 %v1732
  %v1734 = vand.u32 %v177, 4294901760
  %1735 = vmatpush.msra.mxu0 %v1734
  %v1736 = vand.u32 %v173, 4294901760
  %1737 = vmatpush.msra.mxu0 %v1736
  %v1738 = vand.u32 %v169, 4294901760
  %1739 = vmatpush.msra.mxu0 %v1738
  %v1740 = vand.u32 %v165, 4294901760
  %1741 = vmatpush.msra.mxu0 %v1740
  %v1742 = vand.u32 %v161, 4294901760
  %1743 = vmatpush.msra.mxu0 %v1742
  %v1744 = vand.u32 %v157, 4294901760
  %1745 = vmatpush.msra.mxu0 %v1744
  %v1746 = vand.u32 %v153, 4294901760
  %1747 = vmatpush.msra.mxu0 %v1746
  %v1748 = vand.u32 %v1424, 4294901760
  %1749 = vmatmul.f32.gmra.mxu0 %v1748
  %v1750 = vpop.f32.mrf.mxu0
  %v1751 = vadd.f32 %v1710, %v1750
  %v1752 = vand.u32 %v1427, 4294901760
  %1753 = vmatmul.f32.gmra.mxu0 %v1752
  %v1754 = vpop.f32.mrf.mxu0
  %v1755 = vadd.f32 %v1714, %v1754
  %v1756 = vand.u32 %v1430, 4294901760
  %1757 = vmatmul.f32.gmra.mxu0 %v1756
  %v1758 = vpop.f32.mrf.mxu0
  %v1759 = vadd.f32 %v1718, %v1758
  %v1760 = vand.u32 %v1433, 4294901760
  %1761 = vmatmul.f32.gmra.mxu0 %v1760
  %v1762 = vpop.f32.mrf.mxu0
  %v1763 = vadd.f32 %v1722, %v1762
  %1764 = vdwg.mxu0
  %1765 = vmatpush.msra.mxu0 0.0
  %1766 = vmatpush.msra.mxu0 0.0
  %1767 = vmatpush.msra.mxu0 0.0
  %1768 = vmatpush.msra.mxu0 0.0
  %1769 = vmatpush.msra.mxu0 0.0
  %1770 = vmatpush.msra.mxu0 0.0
  %1771 = vmatpush.msra.mxu0 0.0
  %1772 = vmatpush.msra.mxu0 0.0
  %v1773 = vand.u32 %v182, 4294901760
  %1774 = vmatpush.msra.mxu0 %v1773
  %v1775 = vand.u32 %v178, 4294901760
  %1776 = vmatpush.msra.mxu0 %v1775
  %v1777 = vand.u32 %v174, 4294901760
  %1778 = vmatpush.msra.mxu0 %v1777
  %v1779 = vand.u32 %v170, 4294901760
  %1780 = vmatpush.msra.mxu0 %v1779
  %v1781 = vand.u32 %v166, 4294901760
  %1782 = vmatpush.msra.mxu0 %v1781
  %v1783 = vand.u32 %v162, 4294901760
  %1784 = vmatpush.msra.mxu0 %v1783
  %v1785 = vand.u32 %v158, 4294901760
  %1786 = vmatpush.msra.mxu0 %v1785
  %v1787 = vand.u32 %v154, 4294901760
  %1788 = vmatpush.msra.mxu0 %v1787
  %v1789 = vand.u32 %v1424, 4294901760
  %v1790 = vsub.f32 %v1424, %v1789
  %v1791 = vand.u32 %v1790, 4294901760
  %v1792 = vsub.f32 %v1790, %v1791
  %v1793 = vand.u32 %v1792, 4294901760
  %1794 = vmatmul.f32.gmra.mxu0 %v1793
  %v1795 = vpop.f32.mrf.mxu0
  %v1796 = vadd.f32 0.0, %v1795
  %v1797 = vand.u32 %v1427, 4294901760
  %v1798 = vsub.f32 %v1427, %v1797
  %v1799 = vand.u32 %v1798, 4294901760
  %v1800 = vsub.f32 %v1798, %v1799
  %v1801 = vand.u32 %v1800, 4294901760
  %1802 = vmatmul.f32.gmra.mxu0 %v1801
  %v1803 = vpop.f32.mrf.mxu0
  %v1804 = vadd.f32 0.0, %v1803
  %v1805 = vand.u32 %v1430, 4294901760
  %v1806 = vsub.f32 %v1430, %v1805
  %v1807 = vand.u32 %v1806, 4294901760
  %v1808 = vsub.f32 %v1806, %v1807
  %v1809 = vand.u32 %v1808, 4294901760
  %1810 = vmatmul.f32.gmra.mxu0 %v1809
  %v1811 = vpop.f32.mrf.mxu0
  %v1812 = vadd.f32 0.0, %v1811
  %v1813 = vand.u32 %v1433, 4294901760
  %v1814 = vsub.f32 %v1433, %v1813
  %v1815 = vand.u32 %v1814, 4294901760
  %v1816 = vsub.f32 %v1814, %v1815
  %v1817 = vand.u32 %v1816, 4294901760
  %1818 = vmatmul.f32.gmra.mxu0 %v1817
  %v1819 = vpop.f32.mrf.mxu0
  %v1820 = vadd.f32 0.0, %v1819
  %1821 = vdwg.mxu0
  %1822 = vmatpush.msra.mxu0 0.0
  %1823 = vmatpush.msra.mxu0 0.0
  %1824 = vmatpush.msra.mxu0 0.0
  %1825 = vmatpush.msra.mxu0 0.0
  %1826 = vmatpush.msra.mxu0 0.0
  %1827 = vmatpush.msra.mxu0 0.0
  %1828 = vmatpush.msra.mxu0 0.0
  %1829 = vmatpush.msra.mxu0 0.0
  %v1830 = vand.u32 %v182, 4294901760
  %v1831 = vsub.f32 %v182, %v1830
  %v1832 = vand.u32 %v1831, 4294901760
  %v1833 = vsub.f32 %v1831, %v1832
  %v1834 = vand.u32 %v1833, 4294901760
  %1835 = vmatpush.msra.mxu0 %v1834
  %v1836 = vand.u32 %v178, 4294901760
  %v1837 = vsub.f32 %v178, %v1836
  %v1838 = vand.u32 %v1837, 4294901760
  %v1839 = vsub.f32 %v1837, %v1838
  %v1840 = vand.u32 %v1839, 4294901760
  %1841 = vmatpush.msra.mxu0 %v1840
  %v1842 = vand.u32 %v174, 4294901760
  %v1843 = vsub.f32 %v174, %v1842
  %v1844 = vand.u32 %v1843, 4294901760
  %v1845 = vsub.f32 %v1843, %v1844
  %v1846 = vand.u32 %v1845, 4294901760
  %1847 = vmatpush.msra.mxu0 %v1846
  %v1848 = vand.u32 %v170, 4294901760
  %v1849 = vsub.f32 %v170, %v1848
  %v1850 = vand.u32 %v1849, 4294901760
  %v1851 = vsub.f32 %v1849, %v1850
  %v1852 = vand.u32 %v1851, 4294901760
  %1853 = vmatpush.msra.mxu0 %v1852
  %v1854 = vand.u32 %v166, 4294901760
  %v1855 = vsub.f32 %v166, %v1854
  %v1856 = vand.u32 %v1855, 4294901760
  %v1857 = vsub.f32 %v1855, %v1856
  %v1858 = vand.u32 %v1857, 4294901760
  %1859 = vmatpush.msra.mxu0 %v1858
  %v1860 = vand.u32 %v162, 4294901760
  %v1861 = vsub.f32 %v162, %v1860
  %v1862 = vand.u32 %v1861, 4294901760
  %v1863 = vsub.f32 %v1861, %v1862
  %v1864 = vand.u32 %v1863, 4294901760
  %1865 = vmatpush.msra.mxu0 %v1864
  %v1866 = vand.u32 %v158, 4294901760
  %v1867 = vsub.f32 %v158, %v1866
  %v1868 = vand.u32 %v1867, 4294901760
  %v1869 = vsub.f32 %v1867, %v1868
  %v1870 = vand.u32 %v1869, 4294901760
  %1871 = vmatpush.msra.mxu0 %v1870
  %v1872 = vand.u32 %v154, 4294901760
  %v1873 = vsub.f32 %v154, %v1872
  %v1874 = vand.u32 %v1873, 4294901760
  %v1875 = vsub.f32 %v1873, %v1874
  %v1876 = vand.u32 %v1875, 4294901760
  %1877 = vmatpush.msra.mxu0 %v1876
  %v1878 = vand.u32 %v1424, 4294901760
  %1879 = vmatmul.f32.gmra.mxu0 %v1878
  %v1880 = vpop.f32.mrf.mxu0
  %v1881 = vadd.f32 %v1796, %v1880
  %v1882 = vand.u32 %v1427, 4294901760
  %1883 = vmatmul.f32.gmra.mxu0 %v1882
  %v1884 = vpop.f32.mrf.mxu0
  %v1885 = vadd.f32 %v1804, %v1884
  %v1886 = vand.u32 %v1430, 4294901760
  %1887 = vmatmul.f32.gmra.mxu0 %v1886
  %v1888 = vpop.f32.mrf.mxu0
  %v1889 = vadd.f32 %v1812, %v1888
  %v1890 = vand.u32 %v1433, 4294901760
  %1891 = vmatmul.f32.gmra.mxu0 %v1890
  %v1892 = vpop.f32.mrf.mxu0
  %v1893 = vadd.f32 %v1820, %v1892
  %1894 = vdwg.mxu0
  %1895 = vmatpush.msra.mxu0 0.0
  %1896 = vmatpush.msra.mxu0 0.0
  %1897 = vmatpush.msra.mxu0 0.0
  %1898 = vmatpush.msra.mxu0 0.0
  %1899 = vmatpush.msra.mxu0 0.0
  %1900 = vmatpush.msra.mxu0 0.0
  %1901 = vmatpush.msra.mxu0 0.0
  %1902 = vmatpush.msra.mxu0 0.0
  %v1903 = vand.u32 %v182, 4294901760
  %v1904 = vsub.f32 %v182, %v1903
  %1905 = vmatpush.msra.mxu0 %v1904
  %v1906 = vand.u32 %v178, 4294901760
  %v1907 = vsub.f32 %v178, %v1906
  %1908 = vmatpush.msra.mxu0 %v1907
  %v1909 = vand.u32 %v174, 4294901760
  %v1910 = vsub.f32 %v174, %v1909
  %1911 = vmatpush.msra.mxu0 %v1910
  %v1912 = vand.u32 %v170, 4294901760
  %v1913 = vsub.f32 %v170, %v1912
  %1914 = vmatpush.msra.mxu0 %v1913
  %v1915 = vand.u32 %v166, 4294901760
  %v1916 = vsub.f32 %v166, %v1915
  %1917 = vmatpush.msra.mxu0 %v1916
  %v1918 = vand.u32 %v162, 4294901760
  %v1919 = vsub.f32 %v162, %v1918
  %1920 = vmatpush.msra.mxu0 %v1919
  %v1921 = vand.u32 %v158, 4294901760
  %v1922 = vsub.f32 %v158, %v1921
  %1923 = vmatpush.msra.mxu0 %v1922
  %v1924 = vand.u32 %v154, 4294901760
  %v1925 = vsub.f32 %v154, %v1924
  %1926 = vmatpush.msra.mxu0 %v1925
  %v1927 = vand.u32 %v1424, 4294901760
  %v1928 = vsub.f32 %v1424, %v1927
  %1929 = vmatmul.f32.gmra.mxu0 %v1928
  %v1930 = vpop.f32.mrf.mxu0
  %v1931 = vadd.f32 %v1881, %v1930
  %v1932 = vand.u32 %v1427, 4294901760
  %v1933 = vsub.f32 %v1427, %v1932
  %1934 = vmatmul.f32.gmra.mxu0 %v1933
  %v1935 = vpop.f32.mrf.mxu0
  %v1936 = vadd.f32 %v1885, %v1935
  %v1937 = vand.u32 %v1430, 4294901760
  %v1938 = vsub.f32 %v1430, %v1937
  %1939 = vmatmul.f32.gmra.mxu0 %v1938
  %v1940 = vpop.f32.mrf.mxu0
  %v1941 = vadd.f32 %v1889, %v1940
  %v1942 = vand.u32 %v1433, 4294901760
  %v1943 = vsub.f32 %v1433, %v1942
  %1944 = vmatmul.f32.gmra.mxu0 %v1943
  %v1945 = vpop.f32.mrf.mxu0
  %v1946 = vadd.f32 %v1893, %v1945
  %1947 = vdwg.mxu0
  %1948 = vmatpush.msra.mxu0 0.0
  %1949 = vmatpush.msra.mxu0 0.0
  %1950 = vmatpush.msra.mxu0 0.0
  %1951 = vmatpush.msra.mxu0 0.0
  %1952 = vmatpush.msra.mxu0 0.0
  %1953 = vmatpush.msra.mxu0 0.0
  %1954 = vmatpush.msra.mxu0 0.0
  %1955 = vmatpush.msra.mxu0 0.0
  %v1956 = vand.u32 %v182, 4294901760
  %1957 = vmatpush.msra.mxu0 %v1956
  %v1958 = vand.u32 %v178, 4294901760
  %1959 = vmatpush.msra.mxu0 %v1958
  %v1960 = vand.u32 %v174, 4294901760
  %1961 = vmatpush.msra.mxu0 %v1960
  %v1962 = vand.u32 %v170, 4294901760
  %1963 = vmatpush.msra.mxu0 %v1962
  %v1964 = vand.u32 %v166, 4294901760
  %1965 = vmatpush.msra.mxu0 %v1964
  %v1966 = vand.u32 %v162, 4294901760
  %1967 = vmatpush.msra.mxu0 %v1966
  %v1968 = vand.u32 %v158, 4294901760
  %1969 = vmatpush.msra.mxu0 %v1968
  %v1970 = vand.u32 %v154, 4294901760
  %1971 = vmatpush.msra.mxu0 %v1970
  %v1972 = vand.u32 %v1424, 4294901760
  %v1973 = vsub.f32 %v1424, %v1972
  %v1974 = vand.u32 %v1973, 4294901760
  %1975 = vmatmul.f32.gmra.mxu0 %v1974
  %v1976 = vpop.f32.mrf.mxu0
  %v1977 = vadd.f32 %v1931, %v1976
  %v1978 = vand.u32 %v1427, 4294901760
  %v1979 = vsub.f32 %v1427, %v1978
  %v1980 = vand.u32 %v1979, 4294901760
  %1981 = vmatmul.f32.gmra.mxu0 %v1980
  %v1982 = vpop.f32.mrf.mxu0
  %v1983 = vadd.f32 %v1936, %v1982
  %v1984 = vand.u32 %v1430, 4294901760
  %v1985 = vsub.f32 %v1430, %v1984
  %v1986 = vand.u32 %v1985, 4294901760
  %1987 = vmatmul.f32.gmra.mxu0 %v1986
  %v1988 = vpop.f32.mrf.mxu0
  %v1989 = vadd.f32 %v1941, %v1988
  %v1990 = vand.u32 %v1433, 4294901760
  %v1991 = vsub.f32 %v1433, %v1990
  %v1992 = vand.u32 %v1991, 4294901760
  %1993 = vmatmul.f32.gmra.mxu0 %v1992
  %v1994 = vpop.f32.mrf.mxu0
  %v1995 = vadd.f32 %v1946, %v1994
  %1996 = vdwg.mxu0
  %1997 = vmatpush.msra.mxu0 0.0
  %1998 = vmatpush.msra.mxu0 0.0
  %1999 = vmatpush.msra.mxu0 0.0
  %2000 = vmatpush.msra.mxu0 0.0
  %2001 = vmatpush.msra.mxu0 0.0
  %2002 = vmatpush.msra.mxu0 0.0
  %2003 = vmatpush.msra.mxu0 0.0
  %2004 = vmatpush.msra.mxu0 0.0
  %v2005 = vand.u32 %v182, 4294901760
  %v2006 = vsub.f32 %v182, %v2005
  %v2007 = vand.u32 %v2006, 4294901760
  %2008 = vmatpush.msra.mxu0 %v2007
  %v2009 = vand.u32 %v178, 4294901760
  %v2010 = vsub.f32 %v178, %v2009
  %v2011 = vand.u32 %v2010, 4294901760
  %2012 = vmatpush.msra.mxu0 %v2011
  %v2013 = vand.u32 %v174, 4294901760
  %v2014 = vsub.f32 %v174, %v2013
  %v2015 = vand.u32 %v2014, 4294901760
  %2016 = vmatpush.msra.mxu0 %v2015
  %v2017 = vand.u32 %v170, 4294901760
  %v2018 = vsub.f32 %v170, %v2017
  %v2019 = vand.u32 %v2018, 4294901760
  %2020 = vmatpush.msra.mxu0 %v2019
  %v2021 = vand.u32 %v166, 4294901760
  %v2022 = vsub.f32 %v166, %v2021
  %v2023 = vand.u32 %v2022, 4294901760
  %2024 = vmatpush.msra.mxu0 %v2023
  %v2025 = vand.u32 %v162, 4294901760
  %v2026 = vsub.f32 %v162, %v2025
  %v2027 = vand.u32 %v2026, 4294901760
  %2028 = vmatpush.msra.mxu0 %v2027
  %v2029 = vand.u32 %v158, 4294901760
  %v2030 = vsub.f32 %v158, %v2029
  %v2031 = vand.u32 %v2030, 4294901760
  %2032 = vmatpush.msra.mxu0 %v2031
  %v2033 = vand.u32 %v154, 4294901760
  %v2034 = vsub.f32 %v154, %v2033
  %v2035 = vand.u32 %v2034, 4294901760
  %2036 = vmatpush.msra.mxu0 %v2035
  %v2037 = vand.u32 %v1424, 4294901760
  %2038 = vmatmul.f32.gmra.mxu0 %v2037
  %v2039 = vpop.f32.mrf.mxu0
  %v2040 = vadd.f32 %v1977, %v2039
  %v2041 = vand.u32 %v1427, 4294901760
  %2042 = vmatmul.f32.gmra.mxu0 %v2041
  %v2043 = vpop.f32.mrf.mxu0
  %v2044 = vadd.f32 %v1983, %v2043
  %v2045 = vand.u32 %v1430, 4294901760
  %2046 = vmatmul.f32.gmra.mxu0 %v2045
  %v2047 = vpop.f32.mrf.mxu0
  %v2048 = vadd.f32 %v1989, %v2047
  %v2049 = vand.u32 %v1433, 4294901760
  %2050 = vmatmul.f32.gmra.mxu0 %v2049
  %v2051 = vpop.f32.mrf.mxu0
  %v2052 = vadd.f32 %v1995, %v2051
  %2053 = vdwg.mxu0
  %2054 = vmatpush.msra.mxu0 0.0
  %2055 = vmatpush.msra.mxu0 0.0
  %2056 = vmatpush.msra.mxu0 0.0
  %2057 = vmatpush.msra.mxu0 0.0
  %2058 = vmatpush.msra.mxu0 0.0
  %2059 = vmatpush.msra.mxu0 0.0
  %2060 = vmatpush.msra.mxu0 0.0
  %2061 = vmatpush.msra.mxu0 0.0
  %v2062 = vand.u32 %v182, 4294901760
  %2063 = vmatpush.msra.mxu0 %v2062
  %v2064 = vand.u32 %v178, 4294901760
  %2065 = vmatpush.msra.mxu0 %v2064
  %v2066 = vand.u32 %v174, 4294901760
  %2067 = vmatpush.msra.mxu0 %v2066
  %v2068 = vand.u32 %v170, 4294901760
  %2069 = vmatpush.msra.mxu0 %v2068
  %v2070 = vand.u32 %v166, 4294901760
  %2071 = vmatpush.msra.mxu0 %v2070
  %v2072 = vand.u32 %v162, 4294901760
  %2073 = vmatpush.msra.mxu0 %v2072
  %v2074 = vand.u32 %v158, 4294901760
  %2075 = vmatpush.msra.mxu0 %v2074
  %v2076 = vand.u32 %v154, 4294901760
  %2077 = vmatpush.msra.mxu0 %v2076
  %v2078 = vand.u32 %v1424, 4294901760
  %2079 = vmatmul.f32.gmra.mxu0 %v2078
  %v2080 = vpop.f32.mrf.mxu0
  %v2081 = vadd.f32 %v2040, %v2080
  %v2082 = vand.u32 %v1427, 4294901760
  %2083 = vmatmul.f32.gmra.mxu0 %v2082
  %v2084 = vpop.f32.mrf.mxu0
  %v2085 = vadd.f32 %v2044, %v2084
  %v2086 = vand.u32 %v1430, 4294901760
  %2087 = vmatmul.f32.gmra.mxu0 %v2086
  %v2088 = vpop.f32.mrf.mxu0
  %v2089 = vadd.f32 %v2048, %v2088
  %v2090 = vand.u32 %v1433, 4294901760
  %2091 = vmatmul.f32.gmra.mxu0 %v2090
  %v2092 = vpop.f32.mrf.mxu0
  %v2093 = vadd.f32 %v2052, %v2092
  %2094 = vdwg.mxu0
  %2095 = vmatpush.msra.mxu0 0.0
  %2096 = vmatpush.msra.mxu0 0.0
  %2097 = vmatpush.msra.mxu0 0.0
  %2098 = vmatpush.msra.mxu0 0.0
  %2099 = vmatpush.msra.mxu0 0.0
  %2100 = vmatpush.msra.mxu0 0.0
  %2101 = vmatpush.msra.mxu0 0.0
  %2102 = vmatpush.msra.mxu0 0.0
  %v2103 = vand.u32 %v183, 4294901760
  %2104 = vmatpush.msra.mxu0 %v2103
  %v2105 = vand.u32 %v179, 4294901760
  %2106 = vmatpush.msra.mxu0 %v2105
  %v2107 = vand.u32 %v175, 4294901760
  %2108 = vmatpush.msra.mxu0 %v2107
  %v2109 = vand.u32 %v171, 4294901760
  %2110 = vmatpush.msra.mxu0 %v2109
  %v2111 = vand.u32 %v167, 4294901760
  %2112 = vmatpush.msra.mxu0 %v2111
  %v2113 = vand.u32 %v163, 4294901760
  %2114 = vmatpush.msra.mxu0 %v2113
  %v2115 = vand.u32 %v159, 4294901760
  %2116 = vmatpush.msra.mxu0 %v2115
  %v2117 = vand.u32 %v155, 4294901760
  %2118 = vmatpush.msra.mxu0 %v2117
  %v2119 = vand.u32 %v1424, 4294901760
  %v2120 = vsub.f32 %v1424, %v2119
  %v2121 = vand.u32 %v2120, 4294901760
  %v2122 = vsub.f32 %v2120, %v2121
  %v2123 = vand.u32 %v2122, 4294901760
  %2124 = vmatmul.f32.gmra.mxu0 %v2123
  %v2125 = vpop.f32.mrf.mxu0
  %v2126 = vadd.f32 0.0, %v2125
  %v2127 = vand.u32 %v1427, 4294901760
  %v2128 = vsub.f32 %v1427, %v2127
  %v2129 = vand.u32 %v2128, 4294901760
  %v2130 = vsub.f32 %v2128, %v2129
  %v2131 = vand.u32 %v2130, 4294901760
  %2132 = vmatmul.f32.gmra.mxu0 %v2131
  %v2133 = vpop.f32.mrf.mxu0
  %v2134 = vadd.f32 0.0, %v2133
  %v2135 = vand.u32 %v1430, 4294901760
  %v2136 = vsub.f32 %v1430, %v2135
  %v2137 = vand.u32 %v2136, 4294901760
  %v2138 = vsub.f32 %v2136, %v2137
  %v2139 = vand.u32 %v2138, 4294901760
  %2140 = vmatmul.f32.gmra.mxu0 %v2139
  %v2141 = vpop.f32.mrf.mxu0
  %v2142 = vadd.f32 0.0, %v2141
  %v2143 = vand.u32 %v1433, 4294901760
  %v2144 = vsub.f32 %v1433, %v2143
  %v2145 = vand.u32 %v2144, 4294901760
  %v2146 = vsub.f32 %v2144, %v2145
  %v2147 = vand.u32 %v2146, 4294901760
  %2148 = vmatmul.f32.gmra.mxu0 %v2147
  %v2149 = vpop.f32.mrf.mxu0
  %v2150 = vadd.f32 0.0, %v2149
  %2151 = vdwg.mxu0
  %2152 = vmatpush.msra.mxu0 0.0
  %2153 = vmatpush.msra.mxu0 0.0
  %2154 = vmatpush.msra.mxu0 0.0
  %2155 = vmatpush.msra.mxu0 0.0
  %2156 = vmatpush.msra.mxu0 0.0
  %2157 = vmatpush.msra.mxu0 0.0
  %2158 = vmatpush.msra.mxu0 0.0
  %2159 = vmatpush.msra.mxu0 0.0
  %v2160 = vand.u32 %v183, 4294901760
  %v2161 = vsub.f32 %v183, %v2160
  %v2162 = vand.u32 %v2161, 4294901760
  %v2163 = vsub.f32 %v2161, %v2162
  %v2164 = vand.u32 %v2163, 4294901760
  %2165 = vmatpush.msra.mxu0 %v2164
  %v2166 = vand.u32 %v179, 4294901760
  %v2167 = vsub.f32 %v179, %v2166
  %v2168 = vand.u32 %v2167, 4294901760
  %v2169 = vsub.f32 %v2167, %v2168
  %v2170 = vand.u32 %v2169, 4294901760
  %2171 = vmatpush.msra.mxu0 %v2170
  %v2172 = vand.u32 %v175, 4294901760
  %v2173 = vsub.f32 %v175, %v2172
  %v2174 = vand.u32 %v2173, 4294901760
  %v2175 = vsub.f32 %v2173, %v2174
  %v2176 = vand.u32 %v2175, 4294901760
  %2177 = vmatpush.msra.mxu0 %v2176
  %v2178 = vand.u32 %v171, 4294901760
  %v2179 = vsub.f32 %v171, %v2178
  %v2180 = vand.u32 %v2179, 4294901760
  %v2181 = vsub.f32 %v2179, %v2180
  %v2182 = vand.u32 %v2181, 4294901760
  %2183 = vmatpush.msra.mxu0 %v2182
  %v2184 = vand.u32 %v167, 4294901760
  %v2185 = vsub.f32 %v167, %v2184
  %v2186 = vand.u32 %v2185, 4294901760
  %v2187 = vsub.f32 %v2185, %v2186
  %v2188 = vand.u32 %v2187, 4294901760
  %2189 = vmatpush.msra.mxu0 %v2188
  %v2190 = vand.u32 %v163, 4294901760
  %v2191 = vsub.f32 %v163, %v2190
  %v2192 = vand.u32 %v2191, 4294901760
  %v2193 = vsub.f32 %v2191, %v2192
  %v2194 = vand.u32 %v2193, 4294901760
  %2195 = vmatpush.msra.mxu0 %v2194
  %v2196 = vand.u32 %v159, 4294901760
  %v2197 = vsub.f32 %v159, %v2196
  %v2198 = vand.u32 %v2197, 4294901760
  %v2199 = vsub.f32 %v2197, %v2198
  %v2200 = vand.u32 %v2199, 4294901760
  %2201 = vmatpush.msra.mxu0 %v2200
  %v2202 = vand.u32 %v155, 4294901760
  %v2203 = vsub.f32 %v155, %v2202
  %v2204 = vand.u32 %v2203, 4294901760
  %v2205 = vsub.f32 %v2203, %v2204
  %v2206 = vand.u32 %v2205, 4294901760
  %2207 = vmatpush.msra.mxu0 %v2206
  %v2208 = vand.u32 %v1424, 4294901760
  %2209 = vmatmul.f32.gmra.mxu0 %v2208
  %v2210 = vpop.f32.mrf.mxu0
  %v2211 = vadd.f32 %v2126, %v2210
  %v2212 = vand.u32 %v1427, 4294901760
  %2213 = vmatmul.f32.gmra.mxu0 %v2212
  %v2214 = vpop.f32.mrf.mxu0
  %v2215 = vadd.f32 %v2134, %v2214
  %v2216 = vand.u32 %v1430, 4294901760
  %2217 = vmatmul.f32.gmra.mxu0 %v2216
  %v2218 = vpop.f32.mrf.mxu0
  %v2219 = vadd.f32 %v2142, %v2218
  %v2220 = vand.u32 %v1433, 4294901760
  %2221 = vmatmul.f32.gmra.mxu0 %v2220
  %v2222 = vpop.f32.mrf.mxu0
  %v2223 = vadd.f32 %v2150, %v2222
  %2224 = vdwg.mxu0
  %2225 = vmatpush.msra.mxu0 0.0
  %2226 = vmatpush.msra.mxu0 0.0
  %2227 = vmatpush.msra.mxu0 0.0
  %2228 = vmatpush.msra.mxu0 0.0
  %2229 = vmatpush.msra.mxu0 0.0
  %2230 = vmatpush.msra.mxu0 0.0
  %2231 = vmatpush.msra.mxu0 0.0
  %2232 = vmatpush.msra.mxu0 0.0
  %v2233 = vand.u32 %v183, 4294901760
  %v2234 = vsub.f32 %v183, %v2233
  %2235 = vmatpush.msra.mxu0 %v2234
  %v2236 = vand.u32 %v179, 4294901760
  %v2237 = vsub.f32 %v179, %v2236
  %2238 = vmatpush.msra.mxu0 %v2237
  %v2239 = vand.u32 %v175, 4294901760
  %v2240 = vsub.f32 %v175, %v2239
  %2241 = vmatpush.msra.mxu0 %v2240
  %v2242 = vand.u32 %v171, 4294901760
  %v2243 = vsub.f32 %v171, %v2242
  %2244 = vmatpush.msra.mxu0 %v2243
  %v2245 = vand.u32 %v167, 4294901760
  %v2246 = vsub.f32 %v167, %v2245
  %2247 = vmatpush.msra.mxu0 %v2246
  %v2248 = vand.u32 %v163, 4294901760
  %v2249 = vsub.f32 %v163, %v2248
  %2250 = vmatpush.msra.mxu0 %v2249
  %v2251 = vand.u32 %v159, 4294901760
  %v2252 = vsub.f32 %v159, %v2251
  %2253 = vmatpush.msra.mxu0 %v2252
  %v2254 = vand.u32 %v155, 4294901760
  %v2255 = vsub.f32 %v155, %v2254
  %2256 = vmatpush.msra.mxu0 %v2255
  %v2257 = vand.u32 %v1424, 4294901760
  %v2258 = vsub.f32 %v1424, %v2257
  %2259 = vmatmul.f32.gmra.mxu0 %v2258
  %v2260 = vpop.f32.mrf.mxu0
  %v2261 = vadd.f32 %v2211, %v2260
  %v2262 = vand.u32 %v1427, 4294901760
  %v2263 = vsub.f32 %v1427, %v2262
  %2264 = vmatmul.f32.gmra.mxu0 %v2263
  %v2265 = vpop.f32.mrf.mxu0
  %v2266 = vadd.f32 %v2215, %v2265
  %v2267 = vand.u32 %v1430, 4294901760
  %v2268 = vsub.f32 %v1430, %v2267
  %2269 = vmatmul.f32.gmra.mxu0 %v2268
  %v2270 = vpop.f32.mrf.mxu0
  %v2271 = vadd.f32 %v2219, %v2270
  %v2272 = vand.u32 %v1433, 4294901760
  %v2273 = vsub.f32 %v1433, %v2272
  %2274 = vmatmul.f32.gmra.mxu0 %v2273
  %v2275 = vpop.f32.mrf.mxu0
  %v2276 = vadd.f32 %v2223, %v2275
  %2277 = vdwg.mxu0
  %2278 = vmatpush.msra.mxu0 0.0
  %2279 = vmatpush.msra.mxu0 0.0
  %2280 = vmatpush.msra.mxu0 0.0
  %2281 = vmatpush.msra.mxu0 0.0
  %2282 = vmatpush.msra.mxu0 0.0
  %2283 = vmatpush.msra.mxu0 0.0
  %2284 = vmatpush.msra.mxu0 0.0
  %2285 = vmatpush.msra.mxu0 0.0
  %v2286 = vand.u32 %v183, 4294901760
  %2287 = vmatpush.msra.mxu0 %v2286
  %v2288 = vand.u32 %v179, 4294901760
  %2289 = vmatpush.msra.mxu0 %v2288
  %v2290 = vand.u32 %v175, 4294901760
  %2291 = vmatpush.msra.mxu0 %v2290
  %v2292 = vand.u32 %v171, 4294901760
  %2293 = vmatpush.msra.mxu0 %v2292
  %v2294 = vand.u32 %v167, 4294901760
  %2295 = vmatpush.msra.mxu0 %v2294
  %v2296 = vand.u32 %v163, 4294901760
  %2297 = vmatpush.msra.mxu0 %v2296
  %v2298 = vand.u32 %v159, 4294901760
  %2299 = vmatpush.msra.mxu0 %v2298
  %v2300 = vand.u32 %v155, 4294901760
  %2301 = vmatpush.msra.mxu0 %v2300
  %v2302 = vand.u32 %v1424, 4294901760
  %v2303 = vsub.f32 %v1424, %v2302
  %v2304 = vand.u32 %v2303, 4294901760
  %2305 = vmatmul.f32.gmra.mxu0 %v2304
  %v2306 = vpop.f32.mrf.mxu0
  %v2307 = vadd.f32 %v2261, %v2306
  %v2308 = vand.u32 %v1427, 4294901760
  %v2309 = vsub.f32 %v1427, %v2308
  %v2310 = vand.u32 %v2309, 4294901760
  %2311 = vmatmul.f32.gmra.mxu0 %v2310
  %v2312 = vpop.f32.mrf.mxu0
  %v2313 = vadd.f32 %v2266, %v2312
  %v2314 = vand.u32 %v1430, 4294901760
  %v2315 = vsub.f32 %v1430, %v2314
  %v2316 = vand.u32 %v2315, 4294901760
  %2317 = vmatmul.f32.gmra.mxu0 %v2316
  %v2318 = vpop.f32.mrf.mxu0
  %v2319 = vadd.f32 %v2271, %v2318
  %v2320 = vand.u32 %v1433, 4294901760
  %v2321 = vsub.f32 %v1433, %v2320
  %v2322 = vand.u32 %v2321, 4294901760
  %2323 = vmatmul.f32.gmra.mxu0 %v2322
  %v2324 = vpop.f32.mrf.mxu0
  %v2325 = vadd.f32 %v2276, %v2324
  %2326 = vdwg.mxu0
  %2327 = vmatpush.msra.mxu0 0.0
  %2328 = vmatpush.msra.mxu0 0.0
  %2329 = vmatpush.msra.mxu0 0.0
  %2330 = vmatpush.msra.mxu0 0.0
  %2331 = vmatpush.msra.mxu0 0.0
  %2332 = vmatpush.msra.mxu0 0.0
  %2333 = vmatpush.msra.mxu0 0.0
  %2334 = vmatpush.msra.mxu0 0.0
  %v2335 = vand.u32 %v183, 4294901760
  %v2336 = vsub.f32 %v183, %v2335
  %v2337 = vand.u32 %v2336, 4294901760
  %2338 = vmatpush.msra.mxu0 %v2337
  %v2339 = vand.u32 %v179, 4294901760
  %v2340 = vsub.f32 %v179, %v2339
  %v2341 = vand.u32 %v2340, 4294901760
  %2342 = vmatpush.msra.mxu0 %v2341
  %v2343 = vand.u32 %v175, 4294901760
  %v2344 = vsub.f32 %v175, %v2343
  %v2345 = vand.u32 %v2344, 4294901760
  %2346 = vmatpush.msra.mxu0 %v2345
  %v2347 = vand.u32 %v171, 4294901760
  %v2348 = vsub.f32 %v171, %v2347
  %v2349 = vand.u32 %v2348, 4294901760
  %2350 = vmatpush.msra.mxu0 %v2349
  %v2351 = vand.u32 %v167, 4294901760
  %v2352 = vsub.f32 %v167, %v2351
  %v2353 = vand.u32 %v2352, 4294901760
  %2354 = vmatpush.msra.mxu0 %v2353
  %v2355 = vand.u32 %v163, 4294901760
  %v2356 = vsub.f32 %v163, %v2355
  %v2357 = vand.u32 %v2356, 4294901760
  %2358 = vmatpush.msra.mxu0 %v2357
  %v2359 = vand.u32 %v159, 4294901760
  %v2360 = vsub.f32 %v159, %v2359
  %v2361 = vand.u32 %v2360, 4294901760
  %2362 = vmatpush.msra.mxu0 %v2361
  %v2363 = vand.u32 %v155, 4294901760
  %v2364 = vsub.f32 %v155, %v2363
  %v2365 = vand.u32 %v2364, 4294901760
  %2366 = vmatpush.msra.mxu0 %v2365
  %v2367 = vand.u32 %v1424, 4294901760
  %2368 = vmatmul.f32.gmra.mxu0 %v2367
  %v2369 = vpop.f32.mrf.mxu0
  %v2370 = vadd.f32 %v2307, %v2369
  %v2371 = vand.u32 %v1427, 4294901760
  %2372 = vmatmul.f32.gmra.mxu0 %v2371
  %v2373 = vpop.f32.mrf.mxu0
  %v2374 = vadd.f32 %v2313, %v2373
  %v2375 = vand.u32 %v1430, 4294901760
  %2376 = vmatmul.f32.gmra.mxu0 %v2375
  %v2377 = vpop.f32.mrf.mxu0
  %v2378 = vadd.f32 %v2319, %v2377
  %v2379 = vand.u32 %v1433, 4294901760
  %2380 = vmatmul.f32.gmra.mxu0 %v2379
  %v2381 = vpop.f32.mrf.mxu0
  %v2382 = vadd.f32 %v2325, %v2381
  %2383 = vdwg.mxu0
  %2384 = vmatpush.msra.mxu0 0.0
  %2385 = vmatpush.msra.mxu0 0.0
  %2386 = vmatpush.msra.mxu0 0.0
  %2387 = vmatpush.msra.mxu0 0.0
  %2388 = vmatpush.msra.mxu0 0.0
  %2389 = vmatpush.msra.mxu0 0.0
  %2390 = vmatpush.msra.mxu0 0.0
  %2391 = vmatpush.msra.mxu0 0.0
  %v2392 = vand.u32 %v183, 4294901760
  %2393 = vmatpush.msra.mxu0 %v2392
  %v2394 = vand.u32 %v179, 4294901760
  %2395 = vmatpush.msra.mxu0 %v2394
  %v2396 = vand.u32 %v175, 4294901760
  %2397 = vmatpush.msra.mxu0 %v2396
  %v2398 = vand.u32 %v171, 4294901760
  %2399 = vmatpush.msra.mxu0 %v2398
  %v2400 = vand.u32 %v167, 4294901760
  %2401 = vmatpush.msra.mxu0 %v2400
  %v2402 = vand.u32 %v163, 4294901760
  %2403 = vmatpush.msra.mxu0 %v2402
  %v2404 = vand.u32 %v159, 4294901760
  %2405 = vmatpush.msra.mxu0 %v2404
  %v2406 = vand.u32 %v155, 4294901760
  %2407 = vmatpush.msra.mxu0 %v2406
  %v2408 = vand.u32 %v1424, 4294901760
  %2409 = vmatmul.f32.gmra.mxu0 %v2408
  %v2410 = vpop.f32.mrf.mxu0
  %v2411 = vadd.f32 %v2370, %v2410
  %v2412 = vand.u32 %v1427, 4294901760
  %2413 = vmatmul.f32.gmra.mxu0 %v2412
  %v2414 = vpop.f32.mrf.mxu0
  %v2415 = vadd.f32 %v2374, %v2414
  %v2416 = vand.u32 %v1430, 4294901760
  %2417 = vmatmul.f32.gmra.mxu0 %v2416
  %v2418 = vpop.f32.mrf.mxu0
  %v2419 = vadd.f32 %v2378, %v2418
  %v2420 = vand.u32 %v1433, 4294901760
  %2421 = vmatmul.f32.gmra.mxu0 %v2420
  %v2422 = vpop.f32.mrf.mxu0
  %v2423 = vadd.f32 %v2382, %v2422
  %2424 = vdwg.mxu0
  %2425 = vmatpush.msra.mxu0 0.0
  %2426 = vmatpush.msra.mxu0 0.0
  %2427 = vmatpush.msra.mxu0 0.0
  %2428 = vmatpush.msra.mxu0 0.0
  %2429 = vmatpush.msra.mxu0 0.0
  %2430 = vmatpush.msra.mxu0 0.0
  %2431 = vmatpush.msra.mxu0 0.0
  %2432 = vmatpush.msra.mxu0 0.0
  %v2433 = vand.u32 %v184, 4294901760
  %2434 = vmatpush.msra.mxu0 %v2433
  %v2435 = vand.u32 %v180, 4294901760
  %2436 = vmatpush.msra.mxu0 %v2435
  %v2437 = vand.u32 %v176, 4294901760
  %2438 = vmatpush.msra.mxu0 %v2437
  %v2439 = vand.u32 %v172, 4294901760
  %2440 = vmatpush.msra.mxu0 %v2439
  %v2441 = vand.u32 %v168, 4294901760
  %2442 = vmatpush.msra.mxu0 %v2441
  %v2443 = vand.u32 %v164, 4294901760
  %2444 = vmatpush.msra.mxu0 %v2443
  %v2445 = vand.u32 %v160, 4294901760
  %2446 = vmatpush.msra.mxu0 %v2445
  %v2447 = vand.u32 %v156, 4294901760
  %2448 = vmatpush.msra.mxu0 %v2447
  %v2449 = vand.u32 %v1424, 4294901760
  %v2450 = vsub.f32 %v1424, %v2449
  %v2451 = vand.u32 %v2450, 4294901760
  %v2452 = vsub.f32 %v2450, %v2451
  %v2453 = vand.u32 %v2452, 4294901760
  %2454 = vmatmul.f32.gmra.mxu0 %v2453
  %v2455 = vpop.f32.mrf.mxu0
  %v2456 = vadd.f32 0.0, %v2455
  %v2457 = vand.u32 %v1427, 4294901760
  %v2458 = vsub.f32 %v1427, %v2457
  %v2459 = vand.u32 %v2458, 4294901760
  %v2460 = vsub.f32 %v2458, %v2459
  %v2461 = vand.u32 %v2460, 4294901760
  %2462 = vmatmul.f32.gmra.mxu0 %v2461
  %v2463 = vpop.f32.mrf.mxu0
  %v2464 = vadd.f32 0.0, %v2463
  %v2465 = vand.u32 %v1430, 4294901760
  %v2466 = vsub.f32 %v1430, %v2465
  %v2467 = vand.u32 %v2466, 4294901760
  %v2468 = vsub.f32 %v2466, %v2467
  %v2469 = vand.u32 %v2468, 4294901760
  %2470 = vmatmul.f32.gmra.mxu0 %v2469
  %v2471 = vpop.f32.mrf.mxu0
  %v2472 = vadd.f32 0.0, %v2471
  %v2473 = vand.u32 %v1433, 4294901760
  %v2474 = vsub.f32 %v1433, %v2473
  %v2475 = vand.u32 %v2474, 4294901760
  %v2476 = vsub.f32 %v2474, %v2475
  %v2477 = vand.u32 %v2476, 4294901760
  %2478 = vmatmul.f32.gmra.mxu0 %v2477
  %v2479 = vpop.f32.mrf.mxu0
  %v2480 = vadd.f32 0.0, %v2479
  %2481 = vdwg.mxu0
  %2482 = vmatpush.msra.mxu0 0.0
  %2483 = vmatpush.msra.mxu0 0.0
  %2484 = vmatpush.msra.mxu0 0.0
  %2485 = vmatpush.msra.mxu0 0.0
  %2486 = vmatpush.msra.mxu0 0.0
  %2487 = vmatpush.msra.mxu0 0.0
  %2488 = vmatpush.msra.mxu0 0.0
  %2489 = vmatpush.msra.mxu0 0.0
  %v2490 = vand.u32 %v184, 4294901760
  %v2491 = vsub.f32 %v184, %v2490
  %v2492 = vand.u32 %v2491, 4294901760
  %v2493 = vsub.f32 %v2491, %v2492
  %v2494 = vand.u32 %v2493, 4294901760
  %2495 = vmatpush.msra.mxu0 %v2494
  %v2496 = vand.u32 %v180, 4294901760
  %v2497 = vsub.f32 %v180, %v2496
  %v2498 = vand.u32 %v2497, 4294901760
  %v2499 = vsub.f32 %v2497, %v2498
  %v2500 = vand.u32 %v2499, 4294901760
  %2501 = vmatpush.msra.mxu0 %v2500
  %v2502 = vand.u32 %v176, 4294901760
  %v2503 = vsub.f32 %v176, %v2502
  %v2504 = vand.u32 %v2503, 4294901760
  %v2505 = vsub.f32 %v2503, %v2504
  %v2506 = vand.u32 %v2505, 4294901760
  %2507 = vmatpush.msra.mxu0 %v2506
  %v2508 = vand.u32 %v172, 4294901760
  %v2509 = vsub.f32 %v172, %v2508
  %v2510 = vand.u32 %v2509, 4294901760
  %v2511 = vsub.f32 %v2509, %v2510
  %v2512 = vand.u32 %v2511, 4294901760
  %2513 = vmatpush.msra.mxu0 %v2512
  %v2514 = vand.u32 %v168, 4294901760
  %v2515 = vsub.f32 %v168, %v2514
  %v2516 = vand.u32 %v2515, 4294901760
  %v2517 = vsub.f32 %v2515, %v2516
  %v2518 = vand.u32 %v2517, 4294901760
  %2519 = vmatpush.msra.mxu0 %v2518
  %v2520 = vand.u32 %v164, 4294901760
  %v2521 = vsub.f32 %v164, %v2520
  %v2522 = vand.u32 %v2521, 4294901760
  %v2523 = vsub.f32 %v2521, %v2522
  %v2524 = vand.u32 %v2523, 4294901760
  %2525 = vmatpush.msra.mxu0 %v2524
  %v2526 = vand.u32 %v160, 4294901760
  %v2527 = vsub.f32 %v160, %v2526
  %v2528 = vand.u32 %v2527, 4294901760
  %v2529 = vsub.f32 %v2527, %v2528
  %v2530 = vand.u32 %v2529, 4294901760
  %2531 = vmatpush.msra.mxu0 %v2530
  %v2532 = vand.u32 %v156, 4294901760
  %v2533 = vsub.f32 %v156, %v2532
  %v2534 = vand.u32 %v2533, 4294901760
  %v2535 = vsub.f32 %v2533, %v2534
  %v2536 = vand.u32 %v2535, 4294901760
  %2537 = vmatpush.msra.mxu0 %v2536
  %v2538 = vand.u32 %v1424, 4294901760
  %2539 = vmatmul.f32.gmra.mxu0 %v2538
  %v2540 = vpop.f32.mrf.mxu0
  %v2541 = vadd.f32 %v2456, %v2540
  %v2542 = vand.u32 %v1427, 4294901760
  %2543 = vmatmul.f32.gmra.mxu0 %v2542
  %v2544 = vpop.f32.mrf.mxu0
  %v2545 = vadd.f32 %v2464, %v2544
  %v2546 = vand.u32 %v1430, 4294901760
  %2547 = vmatmul.f32.gmra.mxu0 %v2546
  %v2548 = vpop.f32.mrf.mxu0
  %v2549 = vadd.f32 %v2472, %v2548
  %v2550 = vand.u32 %v1433, 4294901760
  %2551 = vmatmul.f32.gmra.mxu0 %v2550
  %v2552 = vpop.f32.mrf.mxu0
  %v2553 = vadd.f32 %v2480, %v2552
  %2554 = vdwg.mxu0
  %2555 = vmatpush.msra.mxu0 0.0
  %2556 = vmatpush.msra.mxu0 0.0
  %2557 = vmatpush.msra.mxu0 0.0
  %2558 = vmatpush.msra.mxu0 0.0
  %2559 = vmatpush.msra.mxu0 0.0
  %2560 = vmatpush.msra.mxu0 0.0
  %2561 = vmatpush.msra.mxu0 0.0
  %2562 = vmatpush.msra.mxu0 0.0
  %v2563 = vand.u32 %v184, 4294901760
  %v2564 = vsub.f32 %v184, %v2563
  %2565 = vmatpush.msra.mxu0 %v2564
  %v2566 = vand.u32 %v180, 4294901760
  %v2567 = vsub.f32 %v180, %v2566
  %2568 = vmatpush.msra.mxu0 %v2567
  %v2569 = vand.u32 %v176, 4294901760
  %v2570 = vsub.f32 %v176, %v2569
  %2571 = vmatpush.msra.mxu0 %v2570
  %v2572 = vand.u32 %v172, 4294901760
  %v2573 = vsub.f32 %v172, %v2572
  %2574 = vmatpush.msra.mxu0 %v2573
  %v2575 = vand.u32 %v168, 4294901760
  %v2576 = vsub.f32 %v168, %v2575
  %2577 = vmatpush.msra.mxu0 %v2576
  %v2578 = vand.u32 %v164, 4294901760
  %v2579 = vsub.f32 %v164, %v2578
  %2580 = vmatpush.msra.mxu0 %v2579
  %v2581 = vand.u32 %v160, 4294901760
  %v2582 = vsub.f32 %v160, %v2581
  %2583 = vmatpush.msra.mxu0 %v2582
  %v2584 = vand.u32 %v156, 4294901760
  %v2585 = vsub.f32 %v156, %v2584
  %2586 = vmatpush.msra.mxu0 %v2585
  %v2587 = vand.u32 %v1424, 4294901760
  %v2588 = vsub.f32 %v1424, %v2587
  %2589 = vmatmul.f32.gmra.mxu0 %v2588
  %v2590 = vpop.f32.mrf.mxu0
  %v2591 = vadd.f32 %v2541, %v2590
  %v2592 = vand.u32 %v1427, 4294901760
  %v2593 = vsub.f32 %v1427, %v2592
  %2594 = vmatmul.f32.gmra.mxu0 %v2593
  %v2595 = vpop.f32.mrf.mxu0
  %v2596 = vadd.f32 %v2545, %v2595
  %v2597 = vand.u32 %v1430, 4294901760
  %v2598 = vsub.f32 %v1430, %v2597
  %2599 = vmatmul.f32.gmra.mxu0 %v2598
  %v2600 = vpop.f32.mrf.mxu0
  %v2601 = vadd.f32 %v2549, %v2600
  %v2602 = vand.u32 %v1433, 4294901760
  %v2603 = vsub.f32 %v1433, %v2602
  %2604 = vmatmul.f32.gmra.mxu0 %v2603
  %v2605 = vpop.f32.mrf.mxu0
  %v2606 = vadd.f32 %v2553, %v2605
  %2607 = vdwg.mxu0
  %2608 = vmatpush.msra.mxu0 0.0
  %2609 = vmatpush.msra.mxu0 0.0
  %2610 = vmatpush.msra.mxu0 0.0
  %2611 = vmatpush.msra.mxu0 0.0
  %2612 = vmatpush.msra.mxu0 0.0
  %2613 = vmatpush.msra.mxu0 0.0
  %2614 = vmatpush.msra.mxu0 0.0
  %2615 = vmatpush.msra.mxu0 0.0
  %v2616 = vand.u32 %v184, 4294901760
  %2617 = vmatpush.msra.mxu0 %v2616
  %v2618 = vand.u32 %v180, 4294901760
  %2619 = vmatpush.msra.mxu0 %v2618
  %v2620 = vand.u32 %v176, 4294901760
  %2621 = vmatpush.msra.mxu0 %v2620
  %v2622 = vand.u32 %v172, 4294901760
  %2623 = vmatpush.msra.mxu0 %v2622
  %v2624 = vand.u32 %v168, 4294901760
  %2625 = vmatpush.msra.mxu0 %v2624
  %v2626 = vand.u32 %v164, 4294901760
  %2627 = vmatpush.msra.mxu0 %v2626
  %v2628 = vand.u32 %v160, 4294901760
  %2629 = vmatpush.msra.mxu0 %v2628
  %v2630 = vand.u32 %v156, 4294901760
  %2631 = vmatpush.msra.mxu0 %v2630
  %v2632 = vand.u32 %v1424, 4294901760
  %v2633 = vsub.f32 %v1424, %v2632
  %v2634 = vand.u32 %v2633, 4294901760
  %2635 = vmatmul.f32.gmra.mxu0 %v2634
  %v2636 = vpop.f32.mrf.mxu0
  %v2637 = vadd.f32 %v2591, %v2636
  %v2638 = vand.u32 %v1427, 4294901760
  %v2639 = vsub.f32 %v1427, %v2638
  %v2640 = vand.u32 %v2639, 4294901760
  %2641 = vmatmul.f32.gmra.mxu0 %v2640
  %v2642 = vpop.f32.mrf.mxu0
  %v2643 = vadd.f32 %v2596, %v2642
  %v2644 = vand.u32 %v1430, 4294901760
  %v2645 = vsub.f32 %v1430, %v2644
  %v2646 = vand.u32 %v2645, 4294901760
  %2647 = vmatmul.f32.gmra.mxu0 %v2646
  %v2648 = vpop.f32.mrf.mxu0
  %v2649 = vadd.f32 %v2601, %v2648
  %v2650 = vand.u32 %v1433, 4294901760
  %v2651 = vsub.f32 %v1433, %v2650
  %v2652 = vand.u32 %v2651, 4294901760
  %2653 = vmatmul.f32.gmra.mxu0 %v2652
  %v2654 = vpop.f32.mrf.mxu0
  %v2655 = vadd.f32 %v2606, %v2654
  %2656 = vdwg.mxu0
  %2657 = vmatpush.msra.mxu0 0.0
  %2658 = vmatpush.msra.mxu0 0.0
  %2659 = vmatpush.msra.mxu0 0.0
  %2660 = vmatpush.msra.mxu0 0.0
  %2661 = vmatpush.msra.mxu0 0.0
  %2662 = vmatpush.msra.mxu0 0.0
  %2663 = vmatpush.msra.mxu0 0.0
  %2664 = vmatpush.msra.mxu0 0.0
  %v2665 = vand.u32 %v184, 4294901760
  %v2666 = vsub.f32 %v184, %v2665
  %v2667 = vand.u32 %v2666, 4294901760
  %2668 = vmatpush.msra.mxu0 %v2667
  %v2669 = vand.u32 %v180, 4294901760
  %v2670 = vsub.f32 %v180, %v2669
  %v2671 = vand.u32 %v2670, 4294901760
  %2672 = vmatpush.msra.mxu0 %v2671
  %v2673 = vand.u32 %v176, 4294901760
  %v2674 = vsub.f32 %v176, %v2673
  %v2675 = vand.u32 %v2674, 4294901760
  %2676 = vmatpush.msra.mxu0 %v2675
  %v2677 = vand.u32 %v172, 4294901760
  %v2678 = vsub.f32 %v172, %v2677
  %v2679 = vand.u32 %v2678, 4294901760
  %2680 = vmatpush.msra.mxu0 %v2679
  %v2681 = vand.u32 %v168, 4294901760
  %v2682 = vsub.f32 %v168, %v2681
  %v2683 = vand.u32 %v2682, 4294901760
  %2684 = vmatpush.msra.mxu0 %v2683
  %v2685 = vand.u32 %v164, 4294901760
  %v2686 = vsub.f32 %v164, %v2685
  %v2687 = vand.u32 %v2686, 4294901760
  %2688 = vmatpush.msra.mxu0 %v2687
  %v2689 = vand.u32 %v160, 4294901760
  %v2690 = vsub.f32 %v160, %v2689
  %v2691 = vand.u32 %v2690, 4294901760
  %2692 = vmatpush.msra.mxu0 %v2691
  %v2693 = vand.u32 %v156, 4294901760
  %v2694 = vsub.f32 %v156, %v2693
  %v2695 = vand.u32 %v2694, 4294901760
  %2696 = vmatpush.msra.mxu0 %v2695
  %v2697 = vand.u32 %v1424, 4294901760
  %2698 = vmatmul.f32.gmra.mxu0 %v2697
  %v2699 = vpop.f32.mrf.mxu0
  %v2700 = vadd.f32 %v2637, %v2699
  %v2701 = vand.u32 %v1427, 4294901760
  %2702 = vmatmul.f32.gmra.mxu0 %v2701
  %v2703 = vpop.f32.mrf.mxu0
  %v2704 = vadd.f32 %v2643, %v2703
  %v2705 = vand.u32 %v1430, 4294901760
  %2706 = vmatmul.f32.gmra.mxu0 %v2705
  %v2707 = vpop.f32.mrf.mxu0
  %v2708 = vadd.f32 %v2649, %v2707
  %v2709 = vand.u32 %v1433, 4294901760
  %2710 = vmatmul.f32.gmra.mxu0 %v2709
  %v2711 = vpop.f32.mrf.mxu0
  %v2712 = vadd.f32 %v2655, %v2711
  %2713 = vdwg.mxu0
  %2714 = vmatpush.msra.mxu0 0.0
  %2715 = vmatpush.msra.mxu0 0.0
  %2716 = vmatpush.msra.mxu0 0.0
  %2717 = vmatpush.msra.mxu0 0.0
  %2718 = vmatpush.msra.mxu0 0.0
  %2719 = vmatpush.msra.mxu0 0.0
  %2720 = vmatpush.msra.mxu0 0.0
  %2721 = vmatpush.msra.mxu0 0.0
  %v2722 = vand.u32 %v184, 4294901760
  %2723 = vmatpush.msra.mxu0 %v2722
  %v2724 = vand.u32 %v180, 4294901760
  %2725 = vmatpush.msra.mxu0 %v2724
  %v2726 = vand.u32 %v176, 4294901760
  %2727 = vmatpush.msra.mxu0 %v2726
  %v2728 = vand.u32 %v172, 4294901760
  %2729 = vmatpush.msra.mxu0 %v2728
  %v2730 = vand.u32 %v168, 4294901760
  %2731 = vmatpush.msra.mxu0 %v2730
  %v2732 = vand.u32 %v164, 4294901760
  %2733 = vmatpush.msra.mxu0 %v2732
  %v2734 = vand.u32 %v160, 4294901760
  %2735 = vmatpush.msra.mxu0 %v2734
  %v2736 = vand.u32 %v156, 4294901760
  %2737 = vmatpush.msra.mxu0 %v2736
  %v2738 = vand.u32 %v1424, 4294901760
  %2739 = vmatmul.f32.gmra.mxu0 %v2738
  %v2740 = vpop.f32.mrf.mxu0
  %v2741 = vadd.f32 %v2700, %v2740
  %v2742 = vand.u32 %v1427, 4294901760
  %2743 = vmatmul.f32.gmra.mxu0 %v2742
  %v2744 = vpop.f32.mrf.mxu0
  %v2745 = vadd.f32 %v2704, %v2744
  %v2746 = vand.u32 %v1430, 4294901760
  %2747 = vmatmul.f32.gmra.mxu0 %v2746
  %v2748 = vpop.f32.mrf.mxu0
  %v2749 = vadd.f32 %v2708, %v2748
  %v2750 = vand.u32 %v1433, 4294901760
  %2751 = vmatmul.f32.gmra.mxu0 %v2750
  %v2752 = vpop.f32.mrf.mxu0
  %v2753 = vadd.f32 %v2712, %v2752
  %2754 = vdwg.mxu0
  %2755 = vmatpush.msra.mxu0 0.0
  %2756 = vmatpush.msra.mxu0 0.0
  %2757 = vmatpush.msra.mxu0 0.0
  %2758 = vmatpush.msra.mxu0 0.0
  %2759 = vmatpush.msra.mxu0 0.0
  %2760 = vmatpush.msra.mxu0 0.0
  %2761 = vmatpush.msra.mxu0 0.0
  %2762 = vmatpush.msra.mxu0 0.0
  %v2763 = vand.u32 %v285, 4294901760
  %2764 = vmatpush.msra.mxu0 %v2763
  %v2765 = vand.u32 %v281, 4294901760
  %2766 = vmatpush.msra.mxu0 %v2765
  %v2767 = vand.u32 %v277, 4294901760
  %2768 = vmatpush.msra.mxu0 %v2767
  %v2769 = vand.u32 %v273, 4294901760
  %2770 = vmatpush.msra.mxu0 %v2769
  %v2771 = vand.u32 %v269, 4294901760
  %2772 = vmatpush.msra.mxu0 %v2771
  %v2773 = vand.u32 %v265, 4294901760
  %2774 = vmatpush.msra.mxu0 %v2773
  %v2775 = vand.u32 %v261, 4294901760
  %2776 = vmatpush.msra.mxu0 %v2775
  %v2777 = vand.u32 %v257, 4294901760
  %2778 = vmatpush.msra.mxu0 %v2777
  %v2779 = vand.u32 %v1424, 4294901760
  %v2780 = vsub.f32 %v1424, %v2779
  %v2781 = vand.u32 %v2780, 4294901760
  %v2782 = vsub.f32 %v2780, %v2781
  %v2783 = vand.u32 %v2782, 4294901760
  %2784 = vmatmul.f32.gmra.mxu0 %v2783
  %v2785 = vpop.f32.mrf.mxu0
  %v2786 = vadd.f32 0.0, %v2785
  %v2787 = vand.u32 %v1427, 4294901760
  %v2788 = vsub.f32 %v1427, %v2787
  %v2789 = vand.u32 %v2788, 4294901760
  %v2790 = vsub.f32 %v2788, %v2789
  %v2791 = vand.u32 %v2790, 4294901760
  %2792 = vmatmul.f32.gmra.mxu0 %v2791
  %v2793 = vpop.f32.mrf.mxu0
  %v2794 = vadd.f32 0.0, %v2793
  %v2795 = vand.u32 %v1430, 4294901760
  %v2796 = vsub.f32 %v1430, %v2795
  %v2797 = vand.u32 %v2796, 4294901760
  %v2798 = vsub.f32 %v2796, %v2797
  %v2799 = vand.u32 %v2798, 4294901760
  %2800 = vmatmul.f32.gmra.mxu0 %v2799
  %v2801 = vpop.f32.mrf.mxu0
  %v2802 = vadd.f32 0.0, %v2801
  %v2803 = vand.u32 %v1433, 4294901760
  %v2804 = vsub.f32 %v1433, %v2803
  %v2805 = vand.u32 %v2804, 4294901760
  %v2806 = vsub.f32 %v2804, %v2805
  %v2807 = vand.u32 %v2806, 4294901760
  %2808 = vmatmul.f32.gmra.mxu0 %v2807
  %v2809 = vpop.f32.mrf.mxu0
  %v2810 = vadd.f32 0.0, %v2809
  %2811 = vdwg.mxu0
  %2812 = vmatpush.msra.mxu0 0.0
  %2813 = vmatpush.msra.mxu0 0.0
  %2814 = vmatpush.msra.mxu0 0.0
  %2815 = vmatpush.msra.mxu0 0.0
  %2816 = vmatpush.msra.mxu0 0.0
  %2817 = vmatpush.msra.mxu0 0.0
  %2818 = vmatpush.msra.mxu0 0.0
  %2819 = vmatpush.msra.mxu0 0.0
  %v2820 = vand.u32 %v285, 4294901760
  %v2821 = vsub.f32 %v285, %v2820
  %v2822 = vand.u32 %v2821, 4294901760
  %v2823 = vsub.f32 %v2821, %v2822
  %v2824 = vand.u32 %v2823, 4294901760
  %2825 = vmatpush.msra.mxu0 %v2824
  %v2826 = vand.u32 %v281, 4294901760
  %v2827 = vsub.f32 %v281, %v2826
  %v2828 = vand.u32 %v2827, 4294901760
  %v2829 = vsub.f32 %v2827, %v2828
  %v2830 = vand.u32 %v2829, 4294901760
  %2831 = vmatpush.msra.mxu0 %v2830
  %v2832 = vand.u32 %v277, 4294901760
  %v2833 = vsub.f32 %v277, %v2832
  %v2834 = vand.u32 %v2833, 4294901760
  %v2835 = vsub.f32 %v2833, %v2834
  %v2836 = vand.u32 %v2835, 4294901760
  %2837 = vmatpush.msra.mxu0 %v2836
  %v2838 = vand.u32 %v273, 4294901760
  %v2839 = vsub.f32 %v273, %v2838
  %v2840 = vand.u32 %v2839, 4294901760
  %v2841 = vsub.f32 %v2839, %v2840
  %v2842 = vand.u32 %v2841, 4294901760
  %2843 = vmatpush.msra.mxu0 %v2842
  %v2844 = vand.u32 %v269, 4294901760
  %v2845 = vsub.f32 %v269, %v2844
  %v2846 = vand.u32 %v2845, 4294901760
  %v2847 = vsub.f32 %v2845, %v2846
  %v2848 = vand.u32 %v2847, 4294901760
  %2849 = vmatpush.msra.mxu0 %v2848
  %v2850 = vand.u32 %v265, 4294901760
  %v2851 = vsub.f32 %v265, %v2850
  %v2852 = vand.u32 %v2851, 4294901760
  %v2853 = vsub.f32 %v2851, %v2852
  %v2854 = vand.u32 %v2853, 4294901760
  %2855 = vmatpush.msra.mxu0 %v2854
  %v2856 = vand.u32 %v261, 4294901760
  %v2857 = vsub.f32 %v261, %v2856
  %v2858 = vand.u32 %v2857, 4294901760
  %v2859 = vsub.f32 %v2857, %v2858
  %v2860 = vand.u32 %v2859, 4294901760
  %2861 = vmatpush.msra.mxu0 %v2860
  %v2862 = vand.u32 %v257, 4294901760
  %v2863 = vsub.f32 %v257, %v2862
  %v2864 = vand.u32 %v2863, 4294901760
  %v2865 = vsub.f32 %v2863, %v2864
  %v2866 = vand.u32 %v2865, 4294901760
  %2867 = vmatpush.msra.mxu0 %v2866
  %v2868 = vand.u32 %v1424, 4294901760
  %2869 = vmatmul.f32.gmra.mxu0 %v2868
  %v2870 = vpop.f32.mrf.mxu0
  %v2871 = vadd.f32 %v2786, %v2870
  %v2872 = vand.u32 %v1427, 4294901760
  %2873 = vmatmul.f32.gmra.mxu0 %v2872
  %v2874 = vpop.f32.mrf.mxu0
  %v2875 = vadd.f32 %v2794, %v2874
  %v2876 = vand.u32 %v1430, 4294901760
  %2877 = vmatmul.f32.gmra.mxu0 %v2876
  %v2878 = vpop.f32.mrf.mxu0
  %v2879 = vadd.f32 %v2802, %v2878
  %v2880 = vand.u32 %v1433, 4294901760
  %2881 = vmatmul.f32.gmra.mxu0 %v2880
  %v2882 = vpop.f32.mrf.mxu0
  %v2883 = vadd.f32 %v2810, %v2882
  %2884 = vdwg.mxu0
  %2885 = vmatpush.msra.mxu0 0.0
  %2886 = vmatpush.msra.mxu0 0.0
  %2887 = vmatpush.msra.mxu0 0.0
  %2888 = vmatpush.msra.mxu0 0.0
  %2889 = vmatpush.msra.mxu0 0.0
  %2890 = vmatpush.msra.mxu0 0.0
  %2891 = vmatpush.msra.mxu0 0.0
  %2892 = vmatpush.msra.mxu0 0.0
  %v2893 = vand.u32 %v285, 4294901760
  %v2894 = vsub.f32 %v285, %v2893
  %2895 = vmatpush.msra.mxu0 %v2894
  %v2896 = vand.u32 %v281, 4294901760
  %v2897 = vsub.f32 %v281, %v2896
  %2898 = vmatpush.msra.mxu0 %v2897
  %v2899 = vand.u32 %v277, 4294901760
  %v2900 = vsub.f32 %v277, %v2899
  %2901 = vmatpush.msra.mxu0 %v2900
  %v2902 = vand.u32 %v273, 4294901760
  %v2903 = vsub.f32 %v273, %v2902
  %2904 = vmatpush.msra.mxu0 %v2903
  %v2905 = vand.u32 %v269, 4294901760
  %v2906 = vsub.f32 %v269, %v2905
  %2907 = vmatpush.msra.mxu0 %v2906
  %v2908 = vand.u32 %v265, 4294901760
  %v2909 = vsub.f32 %v265, %v2908
  %2910 = vmatpush.msra.mxu0 %v2909
  %v2911 = vand.u32 %v261, 4294901760
  %v2912 = vsub.f32 %v261, %v2911
  %2913 = vmatpush.msra.mxu0 %v2912
  %v2914 = vand.u32 %v257, 4294901760
  %v2915 = vsub.f32 %v257, %v2914
  %2916 = vmatpush.msra.mxu0 %v2915
  %v2917 = vand.u32 %v1424, 4294901760
  %v2918 = vsub.f32 %v1424, %v2917
  %2919 = vmatmul.f32.gmra.mxu0 %v2918
  %v2920 = vpop.f32.mrf.mxu0
  %v2921 = vadd.f32 %v2871, %v2920
  %v2922 = vand.u32 %v1427, 4294901760
  %v2923 = vsub.f32 %v1427, %v2922
  %2924 = vmatmul.f32.gmra.mxu0 %v2923
  %v2925 = vpop.f32.mrf.mxu0
  %v2926 = vadd.f32 %v2875, %v2925
  %v2927 = vand.u32 %v1430, 4294901760
  %v2928 = vsub.f32 %v1430, %v2927
  %2929 = vmatmul.f32.gmra.mxu0 %v2928
  %v2930 = vpop.f32.mrf.mxu0
  %v2931 = vadd.f32 %v2879, %v2930
  %v2932 = vand.u32 %v1433, 4294901760
  %v2933 = vsub.f32 %v1433, %v2932
  %2934 = vmatmul.f32.gmra.mxu0 %v2933
  %v2935 = vpop.f32.mrf.mxu0
  %v2936 = vadd.f32 %v2883, %v2935
  %2937 = vdwg.mxu0
  %2938 = vmatpush.msra.mxu0 0.0
  %2939 = vmatpush.msra.mxu0 0.0
  %2940 = vmatpush.msra.mxu0 0.0
  %2941 = vmatpush.msra.mxu0 0.0
  %2942 = vmatpush.msra.mxu0 0.0
  %2943 = vmatpush.msra.mxu0 0.0
  %2944 = vmatpush.msra.mxu0 0.0
  %2945 = vmatpush.msra.mxu0 0.0
  %v2946 = vand.u32 %v285, 4294901760
  %2947 = vmatpush.msra.mxu0 %v2946
  %v2948 = vand.u32 %v281, 4294901760
  %2949 = vmatpush.msra.mxu0 %v2948
  %v2950 = vand.u32 %v277, 4294901760
  %2951 = vmatpush.msra.mxu0 %v2950
  %v2952 = vand.u32 %v273, 4294901760
  %2953 = vmatpush.msra.mxu0 %v2952
  %v2954 = vand.u32 %v269, 4294901760
  %2955 = vmatpush.msra.mxu0 %v2954
  %v2956 = vand.u32 %v265, 4294901760
  %2957 = vmatpush.msra.mxu0 %v2956
  %v2958 = vand.u32 %v261, 4294901760
  %2959 = vmatpush.msra.mxu0 %v2958
  %v2960 = vand.u32 %v257, 4294901760
  %2961 = vmatpush.msra.mxu0 %v2960
  %v2962 = vand.u32 %v1424, 4294901760
  %v2963 = vsub.f32 %v1424, %v2962
  %v2964 = vand.u32 %v2963, 4294901760
  %2965 = vmatmul.f32.gmra.mxu0 %v2964
  %v2966 = vpop.f32.mrf.mxu0
  %v2967 = vadd.f32 %v2921, %v2966
  %v2968 = vand.u32 %v1427, 4294901760
  %v2969 = vsub.f32 %v1427, %v2968
  %v2970 = vand.u32 %v2969, 4294901760
  %2971 = vmatmul.f32.gmra.mxu0 %v2970
  %v2972 = vpop.f32.mrf.mxu0
  %v2973 = vadd.f32 %v2926, %v2972
  %v2974 = vand.u32 %v1430, 4294901760
  %v2975 = vsub.f32 %v1430, %v2974
  %v2976 = vand.u32 %v2975, 4294901760
  %2977 = vmatmul.f32.gmra.mxu0 %v2976
  %v2978 = vpop.f32.mrf.mxu0
  %v2979 = vadd.f32 %v2931, %v2978
  %v2980 = vand.u32 %v1433, 4294901760
  %v2981 = vsub.f32 %v1433, %v2980
  %v2982 = vand.u32 %v2981, 4294901760
  %2983 = vmatmul.f32.gmra.mxu0 %v2982
  %v2984 = vpop.f32.mrf.mxu0
  %v2985 = vadd.f32 %v2936, %v2984
  %2986 = vdwg.mxu0
  %2987 = vmatpush.msra.mxu0 0.0
  %2988 = vmatpush.msra.mxu0 0.0
  %2989 = vmatpush.msra.mxu0 0.0
  %2990 = vmatpush.msra.mxu0 0.0
  %2991 = vmatpush.msra.mxu0 0.0
  %2992 = vmatpush.msra.mxu0 0.0
  %2993 = vmatpush.msra.mxu0 0.0
  %2994 = vmatpush.msra.mxu0 0.0
  %v2995 = vand.u32 %v285, 4294901760
  %v2996 = vsub.f32 %v285, %v2995
  %v2997 = vand.u32 %v2996, 4294901760
  %2998 = vmatpush.msra.mxu0 %v2997
  %v2999 = vand.u32 %v281, 4294901760
  %v3000 = vsub.f32 %v281, %v2999
  %v3001 = vand.u32 %v3000, 4294901760
  %3002 = vmatpush.msra.mxu0 %v3001
  %v3003 = vand.u32 %v277, 4294901760
  %v3004 = vsub.f32 %v277, %v3003
  %v3005 = vand.u32 %v3004, 4294901760
  %3006 = vmatpush.msra.mxu0 %v3005
  %v3007 = vand.u32 %v273, 4294901760
  %v3008 = vsub.f32 %v273, %v3007
  %v3009 = vand.u32 %v3008, 4294901760
  %3010 = vmatpush.msra.mxu0 %v3009
  %v3011 = vand.u32 %v269, 4294901760
  %v3012 = vsub.f32 %v269, %v3011
  %v3013 = vand.u32 %v3012, 4294901760
  %3014 = vmatpush.msra.mxu0 %v3013
  %v3015 = vand.u32 %v265, 4294901760
  %v3016 = vsub.f32 %v265, %v3015
  %v3017 = vand.u32 %v3016, 4294901760
  %3018 = vmatpush.msra.mxu0 %v3017
  %v3019 = vand.u32 %v261, 4294901760
  %v3020 = vsub.f32 %v261, %v3019
  %v3021 = vand.u32 %v3020, 4294901760
  %3022 = vmatpush.msra.mxu0 %v3021
  %v3023 = vand.u32 %v257, 4294901760
  %v3024 = vsub.f32 %v257, %v3023
  %v3025 = vand.u32 %v3024, 4294901760
  %3026 = vmatpush.msra.mxu0 %v3025
  %v3027 = vand.u32 %v1424, 4294901760
  %3028 = vmatmul.f32.gmra.mxu0 %v3027
  %v3029 = vpop.f32.mrf.mxu0
  %v3030 = vadd.f32 %v2967, %v3029
  %v3031 = vand.u32 %v1427, 4294901760
  %3032 = vmatmul.f32.gmra.mxu0 %v3031
  %v3033 = vpop.f32.mrf.mxu0
  %v3034 = vadd.f32 %v2973, %v3033
  %v3035 = vand.u32 %v1430, 4294901760
  %3036 = vmatmul.f32.gmra.mxu0 %v3035
  %v3037 = vpop.f32.mrf.mxu0
  %v3038 = vadd.f32 %v2979, %v3037
  %v3039 = vand.u32 %v1433, 4294901760
  %3040 = vmatmul.f32.gmra.mxu0 %v3039
  %v3041 = vpop.f32.mrf.mxu0
  %v3042 = vadd.f32 %v2985, %v3041
  %3043 = vdwg.mxu0
  %3044 = vmatpush.msra.mxu0 0.0
  %3045 = vmatpush.msra.mxu0 0.0
  %3046 = vmatpush.msra.mxu0 0.0
  %3047 = vmatpush.msra.mxu0 0.0
  %3048 = vmatpush.msra.mxu0 0.0
  %3049 = vmatpush.msra.mxu0 0.0
  %3050 = vmatpush.msra.mxu0 0.0
  %3051 = vmatpush.msra.mxu0 0.0
  %v3052 = vand.u32 %v285, 4294901760
  %3053 = vmatpush.msra.mxu0 %v3052
  %v3054 = vand.u32 %v281, 4294901760
  %3055 = vmatpush.msra.mxu0 %v3054
  %v3056 = vand.u32 %v277, 4294901760
  %3057 = vmatpush.msra.mxu0 %v3056
  %v3058 = vand.u32 %v273, 4294901760
  %3059 = vmatpush.msra.mxu0 %v3058
  %v3060 = vand.u32 %v269, 4294901760
  %3061 = vmatpush.msra.mxu0 %v3060
  %v3062 = vand.u32 %v265, 4294901760
  %3063 = vmatpush.msra.mxu0 %v3062
  %v3064 = vand.u32 %v261, 4294901760
  %3065 = vmatpush.msra.mxu0 %v3064
  %v3066 = vand.u32 %v257, 4294901760
  %3067 = vmatpush.msra.mxu0 %v3066
  %v3068 = vand.u32 %v1424, 4294901760
  %3069 = vmatmul.f32.gmra.mxu0 %v3068
  %v3070 = vpop.f32.mrf.mxu0
  %v3071 = vadd.f32 %v3030, %v3070
  %v3072 = vand.u32 %v1427, 4294901760
  %3073 = vmatmul.f32.gmra.mxu0 %v3072
  %v3074 = vpop.f32.mrf.mxu0
  %v3075 = vadd.f32 %v3034, %v3074
  %v3076 = vand.u32 %v1430, 4294901760
  %3077 = vmatmul.f32.gmra.mxu0 %v3076
  %v3078 = vpop.f32.mrf.mxu0
  %v3079 = vadd.f32 %v3038, %v3078
  %v3080 = vand.u32 %v1433, 4294901760
  %3081 = vmatmul.f32.gmra.mxu0 %v3080
  %v3082 = vpop.f32.mrf.mxu0
  %v3083 = vadd.f32 %v3042, %v3082
  %3084 = vdwg.mxu0
  %3085 = vmatpush.msra.mxu0 0.0
  %3086 = vmatpush.msra.mxu0 0.0
  %3087 = vmatpush.msra.mxu0 0.0
  %3088 = vmatpush.msra.mxu0 0.0
  %3089 = vmatpush.msra.mxu0 0.0
  %3090 = vmatpush.msra.mxu0 0.0
  %3091 = vmatpush.msra.mxu0 0.0
  %3092 = vmatpush.msra.mxu0 0.0
  %v3093 = vand.u32 %v286, 4294901760
  %3094 = vmatpush.msra.mxu0 %v3093
  %v3095 = vand.u32 %v282, 4294901760
  %3096 = vmatpush.msra.mxu0 %v3095
  %v3097 = vand.u32 %v278, 4294901760
  %3098 = vmatpush.msra.mxu0 %v3097
  %v3099 = vand.u32 %v274, 4294901760
  %3100 = vmatpush.msra.mxu0 %v3099
  %v3101 = vand.u32 %v270, 4294901760
  %3102 = vmatpush.msra.mxu0 %v3101
  %v3103 = vand.u32 %v266, 4294901760
  %3104 = vmatpush.msra.mxu0 %v3103
  %v3105 = vand.u32 %v262, 4294901760
  %3106 = vmatpush.msra.mxu0 %v3105
  %v3107 = vand.u32 %v258, 4294901760
  %3108 = vmatpush.msra.mxu0 %v3107
  %v3109 = vand.u32 %v1424, 4294901760
  %v3110 = vsub.f32 %v1424, %v3109
  %v3111 = vand.u32 %v3110, 4294901760
  %v3112 = vsub.f32 %v3110, %v3111
  %v3113 = vand.u32 %v3112, 4294901760
  %3114 = vmatmul.f32.gmra.mxu0 %v3113
  %v3115 = vpop.f32.mrf.mxu0
  %v3116 = vadd.f32 0.0, %v3115
  %v3117 = vand.u32 %v1427, 4294901760
  %v3118 = vsub.f32 %v1427, %v3117
  %v3119 = vand.u32 %v3118, 4294901760
  %v3120 = vsub.f32 %v3118, %v3119
  %v3121 = vand.u32 %v3120, 4294901760
  %3122 = vmatmul.f32.gmra.mxu0 %v3121
  %v3123 = vpop.f32.mrf.mxu0
  %v3124 = vadd.f32 0.0, %v3123
  %v3125 = vand.u32 %v1430, 4294901760
  %v3126 = vsub.f32 %v1430, %v3125
  %v3127 = vand.u32 %v3126, 4294901760
  %v3128 = vsub.f32 %v3126, %v3127
  %v3129 = vand.u32 %v3128, 4294901760
  %3130 = vmatmul.f32.gmra.mxu0 %v3129
  %v3131 = vpop.f32.mrf.mxu0
  %v3132 = vadd.f32 0.0, %v3131
  %v3133 = vand.u32 %v1433, 4294901760
  %v3134 = vsub.f32 %v1433, %v3133
  %v3135 = vand.u32 %v3134, 4294901760
  %v3136 = vsub.f32 %v3134, %v3135
  %v3137 = vand.u32 %v3136, 4294901760
  %3138 = vmatmul.f32.gmra.mxu0 %v3137
  %v3139 = vpop.f32.mrf.mxu0
  %v3140 = vadd.f32 0.0, %v3139
  %3141 = vdwg.mxu0
  %3142 = vmatpush.msra.mxu0 0.0
  %3143 = vmatpush.msra.mxu0 0.0
  %3144 = vmatpush.msra.mxu0 0.0
  %3145 = vmatpush.msra.mxu0 0.0
  %3146 = vmatpush.msra.mxu0 0.0
  %3147 = vmatpush.msra.mxu0 0.0
  %3148 = vmatpush.msra.mxu0 0.0
  %3149 = vmatpush.msra.mxu0 0.0
  %v3150 = vand.u32 %v286, 4294901760
  %v3151 = vsub.f32 %v286, %v3150
  %v3152 = vand.u32 %v3151, 4294901760
  %v3153 = vsub.f32 %v3151, %v3152
  %v3154 = vand.u32 %v3153, 4294901760
  %3155 = vmatpush.msra.mxu0 %v3154
  %v3156 = vand.u32 %v282, 4294901760
  %v3157 = vsub.f32 %v282, %v3156
  %v3158 = vand.u32 %v3157, 4294901760
  %v3159 = vsub.f32 %v3157, %v3158
  %v3160 = vand.u32 %v3159, 4294901760
  %3161 = vmatpush.msra.mxu0 %v3160
  %v3162 = vand.u32 %v278, 4294901760
  %v3163 = vsub.f32 %v278, %v3162
  %v3164 = vand.u32 %v3163, 4294901760
  %v3165 = vsub.f32 %v3163, %v3164
  %v3166 = vand.u32 %v3165, 4294901760
  %3167 = vmatpush.msra.mxu0 %v3166
  %v3168 = vand.u32 %v274, 4294901760
  %v3169 = vsub.f32 %v274, %v3168
  %v3170 = vand.u32 %v3169, 4294901760
  %v3171 = vsub.f32 %v3169, %v3170
  %v3172 = vand.u32 %v3171, 4294901760
  %3173 = vmatpush.msra.mxu0 %v3172
  %v3174 = vand.u32 %v270, 4294901760
  %v3175 = vsub.f32 %v270, %v3174
  %v3176 = vand.u32 %v3175, 4294901760
  %v3177 = vsub.f32 %v3175, %v3176
  %v3178 = vand.u32 %v3177, 4294901760
  %3179 = vmatpush.msra.mxu0 %v3178
  %v3180 = vand.u32 %v266, 4294901760
  %v3181 = vsub.f32 %v266, %v3180
  %v3182 = vand.u32 %v3181, 4294901760
  %v3183 = vsub.f32 %v3181, %v3182
  %v3184 = vand.u32 %v3183, 4294901760
  %3185 = vmatpush.msra.mxu0 %v3184
  %v3186 = vand.u32 %v262, 4294901760
  %v3187 = vsub.f32 %v262, %v3186
  %v3188 = vand.u32 %v3187, 4294901760
  %v3189 = vsub.f32 %v3187, %v3188
  %v3190 = vand.u32 %v3189, 4294901760
  %3191 = vmatpush.msra.mxu0 %v3190
  %v3192 = vand.u32 %v258, 4294901760
  %v3193 = vsub.f32 %v258, %v3192
  %v3194 = vand.u32 %v3193, 4294901760
  %v3195 = vsub.f32 %v3193, %v3194
  %v3196 = vand.u32 %v3195, 4294901760
  %3197 = vmatpush.msra.mxu0 %v3196
  %v3198 = vand.u32 %v1424, 4294901760
  %3199 = vmatmul.f32.gmra.mxu0 %v3198
  %v3200 = vpop.f32.mrf.mxu0
  %v3201 = vadd.f32 %v3116, %v3200
  %v3202 = vand.u32 %v1427, 4294901760
  %3203 = vmatmul.f32.gmra.mxu0 %v3202
  %v3204 = vpop.f32.mrf.mxu0
  %v3205 = vadd.f32 %v3124, %v3204
  %v3206 = vand.u32 %v1430, 4294901760
  %3207 = vmatmul.f32.gmra.mxu0 %v3206
  %v3208 = vpop.f32.mrf.mxu0
  %v3209 = vadd.f32 %v3132, %v3208
  %v3210 = vand.u32 %v1433, 4294901760
  %3211 = vmatmul.f32.gmra.mxu0 %v3210
  %v3212 = vpop.f32.mrf.mxu0
  %v3213 = vadd.f32 %v3140, %v3212
  %3214 = vdwg.mxu0
  %3215 = vmatpush.msra.mxu0 0.0
  %3216 = vmatpush.msra.mxu0 0.0
  %3217 = vmatpush.msra.mxu0 0.0
  %3218 = vmatpush.msra.mxu0 0.0
  %3219 = vmatpush.msra.mxu0 0.0
  %3220 = vmatpush.msra.mxu0 0.0
  %3221 = vmatpush.msra.mxu0 0.0
  %3222 = vmatpush.msra.mxu0 0.0
  %v3223 = vand.u32 %v286, 4294901760
  %v3224 = vsub.f32 %v286, %v3223
  %3225 = vmatpush.msra.mxu0 %v3224
  %v3226 = vand.u32 %v282, 4294901760
  %v3227 = vsub.f32 %v282, %v3226
  %3228 = vmatpush.msra.mxu0 %v3227
  %v3229 = vand.u32 %v278, 4294901760
  %v3230 = vsub.f32 %v278, %v3229
  %3231 = vmatpush.msra.mxu0 %v3230
  %v3232 = vand.u32 %v274, 4294901760
  %v3233 = vsub.f32 %v274, %v3232
  %3234 = vmatpush.msra.mxu0 %v3233
  %v3235 = vand.u32 %v270, 4294901760
  %v3236 = vsub.f32 %v270, %v3235
  %3237 = vmatpush.msra.mxu0 %v3236
  %v3238 = vand.u32 %v266, 4294901760
  %v3239 = vsub.f32 %v266, %v3238
  %3240 = vmatpush.msra.mxu0 %v3239
  %v3241 = vand.u32 %v262, 4294901760
  %v3242 = vsub.f32 %v262, %v3241
  %3243 = vmatpush.msra.mxu0 %v3242
  %v3244 = vand.u32 %v258, 4294901760
  %v3245 = vsub.f32 %v258, %v3244
  %3246 = vmatpush.msra.mxu0 %v3245
  %v3247 = vand.u32 %v1424, 4294901760
  %v3248 = vsub.f32 %v1424, %v3247
  %3249 = vmatmul.f32.gmra.mxu0 %v3248
  %v3250 = vpop.f32.mrf.mxu0
  %v3251 = vadd.f32 %v3201, %v3250
  %v3252 = vand.u32 %v1427, 4294901760
  %v3253 = vsub.f32 %v1427, %v3252
  %3254 = vmatmul.f32.gmra.mxu0 %v3253
  %v3255 = vpop.f32.mrf.mxu0
  %v3256 = vadd.f32 %v3205, %v3255
  %v3257 = vand.u32 %v1430, 4294901760
  %v3258 = vsub.f32 %v1430, %v3257
  %3259 = vmatmul.f32.gmra.mxu0 %v3258
  %v3260 = vpop.f32.mrf.mxu0
  %v3261 = vadd.f32 %v3209, %v3260
  %v3262 = vand.u32 %v1433, 4294901760
  %v3263 = vsub.f32 %v1433, %v3262
  %3264 = vmatmul.f32.gmra.mxu0 %v3263
  %v3265 = vpop.f32.mrf.mxu0
  %v3266 = vadd.f32 %v3213, %v3265
  %3267 = vdwg.mxu0
  %3268 = vmatpush.msra.mxu0 0.0
  %3269 = vmatpush.msra.mxu0 0.0
  %3270 = vmatpush.msra.mxu0 0.0
  %3271 = vmatpush.msra.mxu0 0.0
  %3272 = vmatpush.msra.mxu0 0.0
  %3273 = vmatpush.msra.mxu0 0.0
  %3274 = vmatpush.msra.mxu0 0.0
  %3275 = vmatpush.msra.mxu0 0.0
  %v3276 = vand.u32 %v286, 4294901760
  %3277 = vmatpush.msra.mxu0 %v3276
  %v3278 = vand.u32 %v282, 4294901760
  %3279 = vmatpush.msra.mxu0 %v3278
  %v3280 = vand.u32 %v278, 4294901760
  %3281 = vmatpush.msra.mxu0 %v3280
  %v3282 = vand.u32 %v274, 4294901760
  %3283 = vmatpush.msra.mxu0 %v3282
  %v3284 = vand.u32 %v270, 4294901760
  %3285 = vmatpush.msra.mxu0 %v3284
  %v3286 = vand.u32 %v266, 4294901760
  %3287 = vmatpush.msra.mxu0 %v3286
  %v3288 = vand.u32 %v262, 4294901760
  %3289 = vmatpush.msra.mxu0 %v3288
  %v3290 = vand.u32 %v258, 4294901760
  %3291 = vmatpush.msra.mxu0 %v3290
  %v3292 = vand.u32 %v1424, 4294901760
  %v3293 = vsub.f32 %v1424, %v3292
  %v3294 = vand.u32 %v3293, 4294901760
  %3295 = vmatmul.f32.gmra.mxu0 %v3294
  %v3296 = vpop.f32.mrf.mxu0
  %v3297 = vadd.f32 %v3251, %v3296
  %v3298 = vand.u32 %v1427, 4294901760
  %v3299 = vsub.f32 %v1427, %v3298
  %v3300 = vand.u32 %v3299, 4294901760
  %3301 = vmatmul.f32.gmra.mxu0 %v3300
  %v3302 = vpop.f32.mrf.mxu0
  %v3303 = vadd.f32 %v3256, %v3302
  %v3304 = vand.u32 %v1430, 4294901760
  %v3305 = vsub.f32 %v1430, %v3304
  %v3306 = vand.u32 %v3305, 4294901760
  %3307 = vmatmul.f32.gmra.mxu0 %v3306
  %v3308 = vpop.f32.mrf.mxu0
  %v3309 = vadd.f32 %v3261, %v3308
  %v3310 = vand.u32 %v1433, 4294901760
  %v3311 = vsub.f32 %v1433, %v3310
  %v3312 = vand.u32 %v3311, 4294901760
  %3313 = vmatmul.f32.gmra.mxu0 %v3312
  %v3314 = vpop.f32.mrf.mxu0
  %v3315 = vadd.f32 %v3266, %v3314
  %3316 = vdwg.mxu0
  %3317 = vmatpush.msra.mxu0 0.0
  %3318 = vmatpush.msra.mxu0 0.0
  %3319 = vmatpush.msra.mxu0 0.0
  %3320 = vmatpush.msra.mxu0 0.0
  %3321 = vmatpush.msra.mxu0 0.0
  %3322 = vmatpush.msra.mxu0 0.0
  %3323 = vmatpush.msra.mxu0 0.0
  %3324 = vmatpush.msra.mxu0 0.0
  %v3325 = vand.u32 %v286, 4294901760
  %v3326 = vsub.f32 %v286, %v3325
  %v3327 = vand.u32 %v3326, 4294901760
  %3328 = vmatpush.msra.mxu0 %v3327
  %v3329 = vand.u32 %v282, 4294901760
  %v3330 = vsub.f32 %v282, %v3329
  %v3331 = vand.u32 %v3330, 4294901760
  %3332 = vmatpush.msra.mxu0 %v3331
  %v3333 = vand.u32 %v278, 4294901760
  %v3334 = vsub.f32 %v278, %v3333
  %v3335 = vand.u32 %v3334, 4294901760
  %3336 = vmatpush.msra.mxu0 %v3335
  %v3337 = vand.u32 %v274, 4294901760
  %v3338 = vsub.f32 %v274, %v3337
  %v3339 = vand.u32 %v3338, 4294901760
  %3340 = vmatpush.msra.mxu0 %v3339
  %v3341 = vand.u32 %v270, 4294901760
  %v3342 = vsub.f32 %v270, %v3341
  %v3343 = vand.u32 %v3342, 4294901760
  %3344 = vmatpush.msra.mxu0 %v3343
  %v3345 = vand.u32 %v266, 4294901760
  %v3346 = vsub.f32 %v266, %v3345
  %v3347 = vand.u32 %v3346, 4294901760
  %3348 = vmatpush.msra.mxu0 %v3347
  %v3349 = vand.u32 %v262, 4294901760
  %v3350 = vsub.f32 %v262, %v3349
  %v3351 = vand.u32 %v3350, 4294901760
  %3352 = vmatpush.msra.mxu0 %v3351
  %v3353 = vand.u32 %v258, 4294901760
  %v3354 = vsub.f32 %v258, %v3353
  %v3355 = vand.u32 %v3354, 4294901760
  %3356 = vmatpush.msra.mxu0 %v3355
  %v3357 = vand.u32 %v1424, 4294901760
  %3358 = vmatmul.f32.gmra.mxu0 %v3357
  %v3359 = vpop.f32.mrf.mxu0
  %v3360 = vadd.f32 %v3297, %v3359
  %v3361 = vand.u32 %v1427, 4294901760
  %3362 = vmatmul.f32.gmra.mxu0 %v3361
  %v3363 = vpop.f32.mrf.mxu0
  %v3364 = vadd.f32 %v3303, %v3363
  %v3365 = vand.u32 %v1430, 4294901760
  %3366 = vmatmul.f32.gmra.mxu0 %v3365
  %v3367 = vpop.f32.mrf.mxu0
  %v3368 = vadd.f32 %v3309, %v3367
  %v3369 = vand.u32 %v1433, 4294901760
  %3370 = vmatmul.f32.gmra.mxu0 %v3369
  %v3371 = vpop.f32.mrf.mxu0
  %v3372 = vadd.f32 %v3315, %v3371
  %3373 = vdwg.mxu0
  %3374 = vmatpush.msra.mxu0 0.0
  %3375 = vmatpush.msra.mxu0 0.0
  %3376 = vmatpush.msra.mxu0 0.0
  %3377 = vmatpush.msra.mxu0 0.0
  %3378 = vmatpush.msra.mxu0 0.0
  %3379 = vmatpush.msra.mxu0 0.0
  %3380 = vmatpush.msra.mxu0 0.0
  %3381 = vmatpush.msra.mxu0 0.0
  %v3382 = vand.u32 %v286, 4294901760
  %3383 = vmatpush.msra.mxu0 %v3382
  %v3384 = vand.u32 %v282, 4294901760
  %3385 = vmatpush.msra.mxu0 %v3384
  %v3386 = vand.u32 %v278, 4294901760
  %3387 = vmatpush.msra.mxu0 %v3386
  %v3388 = vand.u32 %v274, 4294901760
  %3389 = vmatpush.msra.mxu0 %v3388
  %v3390 = vand.u32 %v270, 4294901760
  %3391 = vmatpush.msra.mxu0 %v3390
  %v3392 = vand.u32 %v266, 4294901760
  %3393 = vmatpush.msra.mxu0 %v3392
  %v3394 = vand.u32 %v262, 4294901760
  %3395 = vmatpush.msra.mxu0 %v3394
  %v3396 = vand.u32 %v258, 4294901760
  %3397 = vmatpush.msra.mxu0 %v3396
  %v3398 = vand.u32 %v1424, 4294901760
  %3399 = vmatmul.f32.gmra.mxu0 %v3398
  %v3400 = vpop.f32.mrf.mxu0
  %v3401 = vadd.f32 %v3360, %v3400
  %v3402 = vand.u32 %v1427, 4294901760
  %3403 = vmatmul.f32.gmra.mxu0 %v3402
  %v3404 = vpop.f32.mrf.mxu0
  %v3405 = vadd.f32 %v3364, %v3404
  %v3406 = vand.u32 %v1430, 4294901760
  %3407 = vmatmul.f32.gmra.mxu0 %v3406
  %v3408 = vpop.f32.mrf.mxu0
  %v3409 = vadd.f32 %v3368, %v3408
  %v3410 = vand.u32 %v1433, 4294901760
  %3411 = vmatmul.f32.gmra.mxu0 %v3410
  %v3412 = vpop.f32.mrf.mxu0
  %v3413 = vadd.f32 %v3372, %v3412
  %3414 = vdwg.mxu0
  %3415 = vmatpush.msra.mxu0 0.0
  %3416 = vmatpush.msra.mxu0 0.0
  %3417 = vmatpush.msra.mxu0 0.0
  %3418 = vmatpush.msra.mxu0 0.0
  %3419 = vmatpush.msra.mxu0 0.0
  %3420 = vmatpush.msra.mxu0 0.0
  %3421 = vmatpush.msra.mxu0 0.0
  %3422 = vmatpush.msra.mxu0 0.0
  %v3423 = vand.u32 %v287, 4294901760
  %3424 = vmatpush.msra.mxu0 %v3423
  %v3425 = vand.u32 %v283, 4294901760
  %3426 = vmatpush.msra.mxu0 %v3425
  %v3427 = vand.u32 %v279, 4294901760
  %3428 = vmatpush.msra.mxu0 %v3427
  %v3429 = vand.u32 %v275, 4294901760
  %3430 = vmatpush.msra.mxu0 %v3429
  %v3431 = vand.u32 %v271, 4294901760
  %3432 = vmatpush.msra.mxu0 %v3431
  %v3433 = vand.u32 %v267, 4294901760
  %3434 = vmatpush.msra.mxu0 %v3433
  %v3435 = vand.u32 %v263, 4294901760
  %3436 = vmatpush.msra.mxu0 %v3435
  %v3437 = vand.u32 %v259, 4294901760
  %3438 = vmatpush.msra.mxu0 %v3437
  %v3439 = vand.u32 %v1424, 4294901760
  %v3440 = vsub.f32 %v1424, %v3439
  %v3441 = vand.u32 %v3440, 4294901760
  %v3442 = vsub.f32 %v3440, %v3441
  %v3443 = vand.u32 %v3442, 4294901760
  %3444 = vmatmul.f32.gmra.mxu0 %v3443
  %v3445 = vpop.f32.mrf.mxu0
  %v3446 = vadd.f32 0.0, %v3445
  %v3447 = vand.u32 %v1427, 4294901760
  %v3448 = vsub.f32 %v1427, %v3447
  %v3449 = vand.u32 %v3448, 4294901760
  %v3450 = vsub.f32 %v3448, %v3449
  %v3451 = vand.u32 %v3450, 4294901760
  %3452 = vmatmul.f32.gmra.mxu0 %v3451
  %v3453 = vpop.f32.mrf.mxu0
  %v3454 = vadd.f32 0.0, %v3453
  %v3455 = vand.u32 %v1430, 4294901760
  %v3456 = vsub.f32 %v1430, %v3455
  %v3457 = vand.u32 %v3456, 4294901760
  %v3458 = vsub.f32 %v3456, %v3457
  %v3459 = vand.u32 %v3458, 4294901760
  %3460 = vmatmul.f32.gmra.mxu0 %v3459
  %v3461 = vpop.f32.mrf.mxu0
  %v3462 = vadd.f32 0.0, %v3461
  %v3463 = vand.u32 %v1433, 4294901760
  %v3464 = vsub.f32 %v1433, %v3463
  %v3465 = vand.u32 %v3464, 4294901760
  %v3466 = vsub.f32 %v3464, %v3465
  %v3467 = vand.u32 %v3466, 4294901760
  %3468 = vmatmul.f32.gmra.mxu0 %v3467
  %v3469 = vpop.f32.mrf.mxu0
  %v3470 = vadd.f32 0.0, %v3469
  %3471 = vdwg.mxu0
  %3472 = vmatpush.msra.mxu0 0.0
  %3473 = vmatpush.msra.mxu0 0.0
  %3474 = vmatpush.msra.mxu0 0.0
  %3475 = vmatpush.msra.mxu0 0.0
  %3476 = vmatpush.msra.mxu0 0.0
  %3477 = vmatpush.msra.mxu0 0.0
  %3478 = vmatpush.msra.mxu0 0.0
  %3479 = vmatpush.msra.mxu0 0.0
  %v3480 = vand.u32 %v287, 4294901760
  %v3481 = vsub.f32 %v287, %v3480
  %v3482 = vand.u32 %v3481, 4294901760
  %v3483 = vsub.f32 %v3481, %v3482
  %v3484 = vand.u32 %v3483, 4294901760
  %3485 = vmatpush.msra.mxu0 %v3484
  %v3486 = vand.u32 %v283, 4294901760
  %v3487 = vsub.f32 %v283, %v3486
  %v3488 = vand.u32 %v3487, 4294901760
  %v3489 = vsub.f32 %v3487, %v3488
  %v3490 = vand.u32 %v3489, 4294901760
  %3491 = vmatpush.msra.mxu0 %v3490
  %v3492 = vand.u32 %v279, 4294901760
  %v3493 = vsub.f32 %v279, %v3492
  %v3494 = vand.u32 %v3493, 4294901760
  %v3495 = vsub.f32 %v3493, %v3494
  %v3496 = vand.u32 %v3495, 4294901760
  %3497 = vmatpush.msra.mxu0 %v3496
  %v3498 = vand.u32 %v275, 4294901760
  %v3499 = vsub.f32 %v275, %v3498
  %v3500 = vand.u32 %v3499, 4294901760
  %v3501 = vsub.f32 %v3499, %v3500
  %v3502 = vand.u32 %v3501, 4294901760
  %3503 = vmatpush.msra.mxu0 %v3502
  %v3504 = vand.u32 %v271, 4294901760
  %v3505 = vsub.f32 %v271, %v3504
  %v3506 = vand.u32 %v3505, 4294901760
  %v3507 = vsub.f32 %v3505, %v3506
  %v3508 = vand.u32 %v3507, 4294901760
  %3509 = vmatpush.msra.mxu0 %v3508
  %v3510 = vand.u32 %v267, 4294901760
  %v3511 = vsub.f32 %v267, %v3510
  %v3512 = vand.u32 %v3511, 4294901760
  %v3513 = vsub.f32 %v3511, %v3512
  %v3514 = vand.u32 %v3513, 4294901760
  %3515 = vmatpush.msra.mxu0 %v3514
  %v3516 = vand.u32 %v263, 4294901760
  %v3517 = vsub.f32 %v263, %v3516
  %v3518 = vand.u32 %v3517, 4294901760
  %v3519 = vsub.f32 %v3517, %v3518
  %v3520 = vand.u32 %v3519, 4294901760
  %3521 = vmatpush.msra.mxu0 %v3520
  %v3522 = vand.u32 %v259, 4294901760
  %v3523 = vsub.f32 %v259, %v3522
  %v3524 = vand.u32 %v3523, 4294901760
  %v3525 = vsub.f32 %v3523, %v3524
  %v3526 = vand.u32 %v3525, 4294901760
  %3527 = vmatpush.msra.mxu0 %v3526
  %v3528 = vand.u32 %v1424, 4294901760
  %3529 = vmatmul.f32.gmra.mxu0 %v3528
  %v3530 = vpop.f32.mrf.mxu0
  %v3531 = vadd.f32 %v3446, %v3530
  %v3532 = vand.u32 %v1427, 4294901760
  %3533 = vmatmul.f32.gmra.mxu0 %v3532
  %v3534 = vpop.f32.mrf.mxu0
  %v3535 = vadd.f32 %v3454, %v3534
  %v3536 = vand.u32 %v1430, 4294901760
  %3537 = vmatmul.f32.gmra.mxu0 %v3536
  %v3538 = vpop.f32.mrf.mxu0
  %v3539 = vadd.f32 %v3462, %v3538
  %v3540 = vand.u32 %v1433, 4294901760
  %3541 = vmatmul.f32.gmra.mxu0 %v3540
  %v3542 = vpop.f32.mrf.mxu0
  %v3543 = vadd.f32 %v3470, %v3542
  %3544 = vdwg.mxu0
  %3545 = vmatpush.msra.mxu0 0.0
  %3546 = vmatpush.msra.mxu0 0.0
  %3547 = vmatpush.msra.mxu0 0.0
  %3548 = vmatpush.msra.mxu0 0.0
  %3549 = vmatpush.msra.mxu0 0.0
  %3550 = vmatpush.msra.mxu0 0.0
  %3551 = vmatpush.msra.mxu0 0.0
  %3552 = vmatpush.msra.mxu0 0.0
  %v3553 = vand.u32 %v287, 4294901760
  %v3554 = vsub.f32 %v287, %v3553
  %3555 = vmatpush.msra.mxu0 %v3554
  %v3556 = vand.u32 %v283, 4294901760
  %v3557 = vsub.f32 %v283, %v3556
  %3558 = vmatpush.msra.mxu0 %v3557
  %v3559 = vand.u32 %v279, 4294901760
  %v3560 = vsub.f32 %v279, %v3559
  %3561 = vmatpush.msra.mxu0 %v3560
  %v3562 = vand.u32 %v275, 4294901760
  %v3563 = vsub.f32 %v275, %v3562
  %3564 = vmatpush.msra.mxu0 %v3563
  %v3565 = vand.u32 %v271, 4294901760
  %v3566 = vsub.f32 %v271, %v3565
  %3567 = vmatpush.msra.mxu0 %v3566
  %v3568 = vand.u32 %v267, 4294901760
  %v3569 = vsub.f32 %v267, %v3568
  %3570 = vmatpush.msra.mxu0 %v3569
  %v3571 = vand.u32 %v263, 4294901760
  %v3572 = vsub.f32 %v263, %v3571
  %3573 = vmatpush.msra.mxu0 %v3572
  %v3574 = vand.u32 %v259, 4294901760
  %v3575 = vsub.f32 %v259, %v3574
  %3576 = vmatpush.msra.mxu0 %v3575
  %v3577 = vand.u32 %v1424, 4294901760
  %v3578 = vsub.f32 %v1424, %v3577
  %3579 = vmatmul.f32.gmra.mxu0 %v3578
  %v3580 = vpop.f32.mrf.mxu0
  %v3581 = vadd.f32 %v3531, %v3580
  %v3582 = vand.u32 %v1427, 4294901760
  %v3583 = vsub.f32 %v1427, %v3582
  %3584 = vmatmul.f32.gmra.mxu0 %v3583
  %v3585 = vpop.f32.mrf.mxu0
  %v3586 = vadd.f32 %v3535, %v3585
  %v3587 = vand.u32 %v1430, 4294901760
  %v3588 = vsub.f32 %v1430, %v3587
  %3589 = vmatmul.f32.gmra.mxu0 %v3588
  %v3590 = vpop.f32.mrf.mxu0
  %v3591 = vadd.f32 %v3539, %v3590
  %v3592 = vand.u32 %v1433, 4294901760
  %v3593 = vsub.f32 %v1433, %v3592
  %3594 = vmatmul.f32.gmra.mxu0 %v3593
  %v3595 = vpop.f32.mrf.mxu0
  %v3596 = vadd.f32 %v3543, %v3595
  %3597 = vdwg.mxu0
  %3598 = vmatpush.msra.mxu0 0.0
  %3599 = vmatpush.msra.mxu0 0.0
  %3600 = vmatpush.msra.mxu0 0.0
  %3601 = vmatpush.msra.mxu0 0.0
  %3602 = vmatpush.msra.mxu0 0.0
  %3603 = vmatpush.msra.mxu0 0.0
  %3604 = vmatpush.msra.mxu0 0.0
  %3605 = vmatpush.msra.mxu0 0.0
  %v3606 = vand.u32 %v287, 4294901760
  %3607 = vmatpush.msra.mxu0 %v3606
  %v3608 = vand.u32 %v283, 4294901760
  %3609 = vmatpush.msra.mxu0 %v3608
  %v3610 = vand.u32 %v279, 4294901760
  %3611 = vmatpush.msra.mxu0 %v3610
  %v3612 = vand.u32 %v275, 4294901760
  %3613 = vmatpush.msra.mxu0 %v3612
  %v3614 = vand.u32 %v271, 4294901760
  %3615 = vmatpush.msra.mxu0 %v3614
  %v3616 = vand.u32 %v267, 4294901760
  %3617 = vmatpush.msra.mxu0 %v3616
  %v3618 = vand.u32 %v263, 4294901760
  %3619 = vmatpush.msra.mxu0 %v3618
  %v3620 = vand.u32 %v259, 4294901760
  %3621 = vmatpush.msra.mxu0 %v3620
  %v3622 = vand.u32 %v1424, 4294901760
  %v3623 = vsub.f32 %v1424, %v3622
  %v3624 = vand.u32 %v3623, 4294901760
  %3625 = vmatmul.f32.gmra.mxu0 %v3624
  %v3626 = vpop.f32.mrf.mxu0
  %v3627 = vadd.f32 %v3581, %v3626
  %v3628 = vand.u32 %v1427, 4294901760
  %v3629 = vsub.f32 %v1427, %v3628
  %v3630 = vand.u32 %v3629, 4294901760
  %3631 = vmatmul.f32.gmra.mxu0 %v3630
  %v3632 = vpop.f32.mrf.mxu0
  %v3633 = vadd.f32 %v3586, %v3632
  %v3634 = vand.u32 %v1430, 4294901760
  %v3635 = vsub.f32 %v1430, %v3634
  %v3636 = vand.u32 %v3635, 4294901760
  %3637 = vmatmul.f32.gmra.mxu0 %v3636
  %v3638 = vpop.f32.mrf.mxu0
  %v3639 = vadd.f32 %v3591, %v3638
  %v3640 = vand.u32 %v1433, 4294901760
  %v3641 = vsub.f32 %v1433, %v3640
  %v3642 = vand.u32 %v3641, 4294901760
  %3643 = vmatmul.f32.gmra.mxu0 %v3642
  %v3644 = vpop.f32.mrf.mxu0
  %v3645 = vadd.f32 %v3596, %v3644
  %3646 = vdwg.mxu0
  %3647 = vmatpush.msra.mxu0 0.0
  %3648 = vmatpush.msra.mxu0 0.0
  %3649 = vmatpush.msra.mxu0 0.0
  %3650 = vmatpush.msra.mxu0 0.0
  %3651 = vmatpush.msra.mxu0 0.0
  %3652 = vmatpush.msra.mxu0 0.0
  %3653 = vmatpush.msra.mxu0 0.0
  %3654 = vmatpush.msra.mxu0 0.0
  %v3655 = vand.u32 %v287, 4294901760
  %v3656 = vsub.f32 %v287, %v3655
  %v3657 = vand.u32 %v3656, 4294901760
  %3658 = vmatpush.msra.mxu0 %v3657
  %v3659 = vand.u32 %v283, 4294901760
  %v3660 = vsub.f32 %v283, %v3659
  %v3661 = vand.u32 %v3660, 4294901760
  %3662 = vmatpush.msra.mxu0 %v3661
  %v3663 = vand.u32 %v279, 4294901760
  %v3664 = vsub.f32 %v279, %v3663
  %v3665 = vand.u32 %v3664, 4294901760
  %3666 = vmatpush.msra.mxu0 %v3665
  %v3667 = vand.u32 %v275, 4294901760
  %v3668 = vsub.f32 %v275, %v3667
  %v3669 = vand.u32 %v3668, 4294901760
  %3670 = vmatpush.msra.mxu0 %v3669
  %v3671 = vand.u32 %v271, 4294901760
  %v3672 = vsub.f32 %v271, %v3671
  %v3673 = vand.u32 %v3672, 4294901760
  %3674 = vmatpush.msra.mxu0 %v3673
  %v3675 = vand.u32 %v267, 4294901760
  %v3676 = vsub.f32 %v267, %v3675
  %v3677 = vand.u32 %v3676, 4294901760
  %3678 = vmatpush.msra.mxu0 %v3677
  %v3679 = vand.u32 %v263, 4294901760
  %v3680 = vsub.f32 %v263, %v3679
  %v3681 = vand.u32 %v3680, 4294901760
  %3682 = vmatpush.msra.mxu0 %v3681
  %v3683 = vand.u32 %v259, 4294901760
  %v3684 = vsub.f32 %v259, %v3683
  %v3685 = vand.u32 %v3684, 4294901760
  %3686 = vmatpush.msra.mxu0 %v3685
  %v3687 = vand.u32 %v1424, 4294901760
  %3688 = vmatmul.f32.gmra.mxu0 %v3687
  %v3689 = vpop.f32.mrf.mxu0
  %v3690 = vadd.f32 %v3627, %v3689
  %v3691 = vand.u32 %v1427, 4294901760
  %3692 = vmatmul.f32.gmra.mxu0 %v3691
  %v3693 = vpop.f32.mrf.mxu0
  %v3694 = vadd.f32 %v3633, %v3693
  %v3695 = vand.u32 %v1430, 4294901760
  %3696 = vmatmul.f32.gmra.mxu0 %v3695
  %v3697 = vpop.f32.mrf.mxu0
  %v3698 = vadd.f32 %v3639, %v3697
  %v3699 = vand.u32 %v1433, 4294901760
  %3700 = vmatmul.f32.gmra.mxu0 %v3699
  %v3701 = vpop.f32.mrf.mxu0
  %v3702 = vadd.f32 %v3645, %v3701
  %3703 = vdwg.mxu0
  %3704 = vmatpush.msra.mxu0 0.0
  %3705 = vmatpush.msra.mxu0 0.0
  %3706 = vmatpush.msra.mxu0 0.0
  %3707 = vmatpush.msra.mxu0 0.0
  %3708 = vmatpush.msra.mxu0 0.0
  %3709 = vmatpush.msra.mxu0 0.0
  %3710 = vmatpush.msra.mxu0 0.0
  %3711 = vmatpush.msra.mxu0 0.0
  %v3712 = vand.u32 %v287, 4294901760
  %3713 = vmatpush.msra.mxu0 %v3712
  %v3714 = vand.u32 %v283, 4294901760
  %3715 = vmatpush.msra.mxu0 %v3714
  %v3716 = vand.u32 %v279, 4294901760
  %3717 = vmatpush.msra.mxu0 %v3716
  %v3718 = vand.u32 %v275, 4294901760
  %3719 = vmatpush.msra.mxu0 %v3718
  %v3720 = vand.u32 %v271, 4294901760
  %3721 = vmatpush.msra.mxu0 %v3720
  %v3722 = vand.u32 %v267, 4294901760
  %3723 = vmatpush.msra.mxu0 %v3722
  %v3724 = vand.u32 %v263, 4294901760
  %3725 = vmatpush.msra.mxu0 %v3724
  %v3726 = vand.u32 %v259, 4294901760
  %3727 = vmatpush.msra.mxu0 %v3726
  %v3728 = vand.u32 %v1424, 4294901760
  %3729 = vmatmul.f32.gmra.mxu0 %v3728
  %v3730 = vpop.f32.mrf.mxu0
  %v3731 = vadd.f32 %v3690, %v3730
  %v3732 = vand.u32 %v1427, 4294901760
  %3733 = vmatmul.f32.gmra.mxu0 %v3732
  %v3734 = vpop.f32.mrf.mxu0
  %v3735 = vadd.f32 %v3694, %v3734
  %v3736 = vand.u32 %v1430, 4294901760
  %3737 = vmatmul.f32.gmra.mxu0 %v3736
  %v3738 = vpop.f32.mrf.mxu0
  %v3739 = vadd.f32 %v3698, %v3738
  %v3740 = vand.u32 %v1433, 4294901760
  %3741 = vmatmul.f32.gmra.mxu0 %v3740
  %v3742 = vpop.f32.mrf.mxu0
  %v3743 = vadd.f32 %v3702, %v3742
  %3744 = vdwg.mxu0
  %3745 = vmatpush.msra.mxu0 0.0
  %3746 = vmatpush.msra.mxu0 0.0
  %3747 = vmatpush.msra.mxu0 0.0
  %3748 = vmatpush.msra.mxu0 0.0
  %3749 = vmatpush.msra.mxu0 0.0
  %3750 = vmatpush.msra.mxu0 0.0
  %3751 = vmatpush.msra.mxu0 0.0
  %3752 = vmatpush.msra.mxu0 0.0
  %v3753 = vand.u32 %v288, 4294901760
  %3754 = vmatpush.msra.mxu0 %v3753
  %v3755 = vand.u32 %v284, 4294901760
  %3756 = vmatpush.msra.mxu0 %v3755
  %v3757 = vand.u32 %v280, 4294901760
  %3758 = vmatpush.msra.mxu0 %v3757
  %v3759 = vand.u32 %v276, 4294901760
  %3760 = vmatpush.msra.mxu0 %v3759
  %v3761 = vand.u32 %v272, 4294901760
  %3762 = vmatpush.msra.mxu0 %v3761
  %v3763 = vand.u32 %v268, 4294901760
  %3764 = vmatpush.msra.mxu0 %v3763
  %v3765 = vand.u32 %v264, 4294901760
  %3766 = vmatpush.msra.mxu0 %v3765
  %v3767 = vand.u32 %v260, 4294901760
  %3768 = vmatpush.msra.mxu0 %v3767
  %v3769 = vand.u32 %v1424, 4294901760
  %v3770 = vsub.f32 %v1424, %v3769
  %v3771 = vand.u32 %v3770, 4294901760
  %v3772 = vsub.f32 %v3770, %v3771
  %v3773 = vand.u32 %v3772, 4294901760
  %3774 = vmatmul.f32.gmra.mxu0 %v3773
  %v3775 = vpop.f32.mrf.mxu0
  %v3776 = vadd.f32 0.0, %v3775
  %v3777 = vand.u32 %v1427, 4294901760
  %v3778 = vsub.f32 %v1427, %v3777
  %v3779 = vand.u32 %v3778, 4294901760
  %v3780 = vsub.f32 %v3778, %v3779
  %v3781 = vand.u32 %v3780, 4294901760
  %3782 = vmatmul.f32.gmra.mxu0 %v3781
  %v3783 = vpop.f32.mrf.mxu0
  %v3784 = vadd.f32 0.0, %v3783
  %v3785 = vand.u32 %v1430, 4294901760
  %v3786 = vsub.f32 %v1430, %v3785
  %v3787 = vand.u32 %v3786, 4294901760
  %v3788 = vsub.f32 %v3786, %v3787
  %v3789 = vand.u32 %v3788, 4294901760
  %3790 = vmatmul.f32.gmra.mxu0 %v3789
  %v3791 = vpop.f32.mrf.mxu0
  %v3792 = vadd.f32 0.0, %v3791
  %v3793 = vand.u32 %v1433, 4294901760
  %v3794 = vsub.f32 %v1433, %v3793
  %v3795 = vand.u32 %v3794, 4294901760
  %v3796 = vsub.f32 %v3794, %v3795
  %v3797 = vand.u32 %v3796, 4294901760
  %3798 = vmatmul.f32.gmra.mxu0 %v3797
  %v3799 = vpop.f32.mrf.mxu0
  %v3800 = vadd.f32 0.0, %v3799
  %3801 = vdwg.mxu0
  %3802 = vmatpush.msra.mxu0 0.0
  %3803 = vmatpush.msra.mxu0 0.0
  %3804 = vmatpush.msra.mxu0 0.0
  %3805 = vmatpush.msra.mxu0 0.0
  %3806 = vmatpush.msra.mxu0 0.0
  %3807 = vmatpush.msra.mxu0 0.0
  %3808 = vmatpush.msra.mxu0 0.0
  %3809 = vmatpush.msra.mxu0 0.0
  %v3810 = vand.u32 %v288, 4294901760
  %v3811 = vsub.f32 %v288, %v3810
  %v3812 = vand.u32 %v3811, 4294901760
  %v3813 = vsub.f32 %v3811, %v3812
  %v3814 = vand.u32 %v3813, 4294901760
  %3815 = vmatpush.msra.mxu0 %v3814
  %v3816 = vand.u32 %v284, 4294901760
  %v3817 = vsub.f32 %v284, %v3816
  %v3818 = vand.u32 %v3817, 4294901760
  %v3819 = vsub.f32 %v3817, %v3818
  %v3820 = vand.u32 %v3819, 4294901760
  %3821 = vmatpush.msra.mxu0 %v3820
  %v3822 = vand.u32 %v280, 4294901760
  %v3823 = vsub.f32 %v280, %v3822
  %v3824 = vand.u32 %v3823, 4294901760
  %v3825 = vsub.f32 %v3823, %v3824
  %v3826 = vand.u32 %v3825, 4294901760
  %3827 = vmatpush.msra.mxu0 %v3826
  %v3828 = vand.u32 %v276, 4294901760
  %v3829 = vsub.f32 %v276, %v3828
  %v3830 = vand.u32 %v3829, 4294901760
  %v3831 = vsub.f32 %v3829, %v3830
  %v3832 = vand.u32 %v3831, 4294901760
  %3833 = vmatpush.msra.mxu0 %v3832
  %v3834 = vand.u32 %v272, 4294901760
  %v3835 = vsub.f32 %v272, %v3834
  %v3836 = vand.u32 %v3835, 4294901760
  %v3837 = vsub.f32 %v3835, %v3836
  %v3838 = vand.u32 %v3837, 4294901760
  %3839 = vmatpush.msra.mxu0 %v3838
  %v3840 = vand.u32 %v268, 4294901760
  %v3841 = vsub.f32 %v268, %v3840
  %v3842 = vand.u32 %v3841, 4294901760
  %v3843 = vsub.f32 %v3841, %v3842
  %v3844 = vand.u32 %v3843, 4294901760
  %3845 = vmatpush.msra.mxu0 %v3844
  %v3846 = vand.u32 %v264, 4294901760
  %v3847 = vsub.f32 %v264, %v3846
  %v3848 = vand.u32 %v3847, 4294901760
  %v3849 = vsub.f32 %v3847, %v3848
  %v3850 = vand.u32 %v3849, 4294901760
  %3851 = vmatpush.msra.mxu0 %v3850
  %v3852 = vand.u32 %v260, 4294901760
  %v3853 = vsub.f32 %v260, %v3852
  %v3854 = vand.u32 %v3853, 4294901760
  %v3855 = vsub.f32 %v3853, %v3854
  %v3856 = vand.u32 %v3855, 4294901760
  %3857 = vmatpush.msra.mxu0 %v3856
  %v3858 = vand.u32 %v1424, 4294901760
  %3859 = vmatmul.f32.gmra.mxu0 %v3858
  %v3860 = vpop.f32.mrf.mxu0
  %v3861 = vadd.f32 %v3776, %v3860
  %v3862 = vand.u32 %v1427, 4294901760
  %3863 = vmatmul.f32.gmra.mxu0 %v3862
  %v3864 = vpop.f32.mrf.mxu0
  %v3865 = vadd.f32 %v3784, %v3864
  %v3866 = vand.u32 %v1430, 4294901760
  %3867 = vmatmul.f32.gmra.mxu0 %v3866
  %v3868 = vpop.f32.mrf.mxu0
  %v3869 = vadd.f32 %v3792, %v3868
  %v3870 = vand.u32 %v1433, 4294901760
  %3871 = vmatmul.f32.gmra.mxu0 %v3870
  %v3872 = vpop.f32.mrf.mxu0
  %v3873 = vadd.f32 %v3800, %v3872
  %3874 = vdwg.mxu0
  %3875 = vmatpush.msra.mxu0 0.0
  %3876 = vmatpush.msra.mxu0 0.0
  %3877 = vmatpush.msra.mxu0 0.0
  %3878 = vmatpush.msra.mxu0 0.0
  %3879 = vmatpush.msra.mxu0 0.0
  %3880 = vmatpush.msra.mxu0 0.0
  %3881 = vmatpush.msra.mxu0 0.0
  %3882 = vmatpush.msra.mxu0 0.0
  %v3883 = vand.u32 %v288, 4294901760
  %v3884 = vsub.f32 %v288, %v3883
  %3885 = vmatpush.msra.mxu0 %v3884
  %v3886 = vand.u32 %v284, 4294901760
  %v3887 = vsub.f32 %v284, %v3886
  %3888 = vmatpush.msra.mxu0 %v3887
  %v3889 = vand.u32 %v280, 4294901760
  %v3890 = vsub.f32 %v280, %v3889
  %3891 = vmatpush.msra.mxu0 %v3890
  %v3892 = vand.u32 %v276, 4294901760
  %v3893 = vsub.f32 %v276, %v3892
  %3894 = vmatpush.msra.mxu0 %v3893
  %v3895 = vand.u32 %v272, 4294901760
  %v3896 = vsub.f32 %v272, %v3895
  %3897 = vmatpush.msra.mxu0 %v3896
  %v3898 = vand.u32 %v268, 4294901760
  %v3899 = vsub.f32 %v268, %v3898
  %3900 = vmatpush.msra.mxu0 %v3899
  %v3901 = vand.u32 %v264, 4294901760
  %v3902 = vsub.f32 %v264, %v3901
  %3903 = vmatpush.msra.mxu0 %v3902
  %v3904 = vand.u32 %v260, 4294901760
  %v3905 = vsub.f32 %v260, %v3904
  %3906 = vmatpush.msra.mxu0 %v3905
  %v3907 = vand.u32 %v1424, 4294901760
  %v3908 = vsub.f32 %v1424, %v3907
  %3909 = vmatmul.f32.gmra.mxu0 %v3908
  %v3910 = vpop.f32.mrf.mxu0
  %v3911 = vadd.f32 %v3861, %v3910
  %v3912 = vand.u32 %v1427, 4294901760
  %v3913 = vsub.f32 %v1427, %v3912
  %3914 = vmatmul.f32.gmra.mxu0 %v3913
  %v3915 = vpop.f32.mrf.mxu0
  %v3916 = vadd.f32 %v3865, %v3915
  %v3917 = vand.u32 %v1430, 4294901760
  %v3918 = vsub.f32 %v1430, %v3917
  %3919 = vmatmul.f32.gmra.mxu0 %v3918
  %v3920 = vpop.f32.mrf.mxu0
  %v3921 = vadd.f32 %v3869, %v3920
  %v3922 = vand.u32 %v1433, 4294901760
  %v3923 = vsub.f32 %v1433, %v3922
  %3924 = vmatmul.f32.gmra.mxu0 %v3923
  %v3925 = vpop.f32.mrf.mxu0
  %v3926 = vadd.f32 %v3873, %v3925
  %3927 = vdwg.mxu0
  %3928 = vmatpush.msra.mxu0 0.0
  %3929 = vmatpush.msra.mxu0 0.0
  %3930 = vmatpush.msra.mxu0 0.0
  %3931 = vmatpush.msra.mxu0 0.0
  %3932 = vmatpush.msra.mxu0 0.0
  %3933 = vmatpush.msra.mxu0 0.0
  %3934 = vmatpush.msra.mxu0 0.0
  %3935 = vmatpush.msra.mxu0 0.0
  %v3936 = vand.u32 %v288, 4294901760
  %3937 = vmatpush.msra.mxu0 %v3936
  %v3938 = vand.u32 %v284, 4294901760
  %3939 = vmatpush.msra.mxu0 %v3938
  %v3940 = vand.u32 %v280, 4294901760
  %3941 = vmatpush.msra.mxu0 %v3940
  %v3942 = vand.u32 %v276, 4294901760
  %3943 = vmatpush.msra.mxu0 %v3942
  %v3944 = vand.u32 %v272, 4294901760
  %3945 = vmatpush.msra.mxu0 %v3944
  %v3946 = vand.u32 %v268, 4294901760
  %3947 = vmatpush.msra.mxu0 %v3946
  %v3948 = vand.u32 %v264, 4294901760
  %3949 = vmatpush.msra.mxu0 %v3948
  %v3950 = vand.u32 %v260, 4294901760
  %3951 = vmatpush.msra.mxu0 %v3950
  %v3952 = vand.u32 %v1424, 4294901760
  %v3953 = vsub.f32 %v1424, %v3952
  %v3954 = vand.u32 %v3953, 4294901760
  %3955 = vmatmul.f32.gmra.mxu0 %v3954
  %v3956 = vpop.f32.mrf.mxu0
  %v3957 = vadd.f32 %v3911, %v3956
  %v3958 = vand.u32 %v1427, 4294901760
  %v3959 = vsub.f32 %v1427, %v3958
  %v3960 = vand.u32 %v3959, 4294901760
  %3961 = vmatmul.f32.gmra.mxu0 %v3960
  %v3962 = vpop.f32.mrf.mxu0
  %v3963 = vadd.f32 %v3916, %v3962
  %v3964 = vand.u32 %v1430, 4294901760
  %v3965 = vsub.f32 %v1430, %v3964
  %v3966 = vand.u32 %v3965, 4294901760
  %3967 = vmatmul.f32.gmra.mxu0 %v3966
  %v3968 = vpop.f32.mrf.mxu0
  %v3969 = vadd.f32 %v3921, %v3968
  %v3970 = vand.u32 %v1433, 4294901760
  %v3971 = vsub.f32 %v1433, %v3970
  %v3972 = vand.u32 %v3971, 4294901760
  %3973 = vmatmul.f32.gmra.mxu0 %v3972
  %v3974 = vpop.f32.mrf.mxu0
  %v3975 = vadd.f32 %v3926, %v3974
  %3976 = vdwg.mxu0
  %3977 = vmatpush.msra.mxu0 0.0
  %3978 = vmatpush.msra.mxu0 0.0
  %3979 = vmatpush.msra.mxu0 0.0
  %3980 = vmatpush.msra.mxu0 0.0
  %3981 = vmatpush.msra.mxu0 0.0
  %3982 = vmatpush.msra.mxu0 0.0
  %3983 = vmatpush.msra.mxu0 0.0
  %3984 = vmatpush.msra.mxu0 0.0
  %v3985 = vand.u32 %v288, 4294901760
  %v3986 = vsub.f32 %v288, %v3985
  %v3987 = vand.u32 %v3986, 4294901760
  %3988 = vmatpush.msra.mxu0 %v3987
  %v3989 = vand.u32 %v284, 4294901760
  %v3990 = vsub.f32 %v284, %v3989
  %v3991 = vand.u32 %v3990, 4294901760
  %3992 = vmatpush.msra.mxu0 %v3991
  %v3993 = vand.u32 %v280, 4294901760
  %v3994 = vsub.f32 %v280, %v3993
  %v3995 = vand.u32 %v3994, 4294901760
  %3996 = vmatpush.msra.mxu0 %v3995
  %v3997 = vand.u32 %v276, 4294901760
  %v3998 = vsub.f32 %v276, %v3997
  %v3999 = vand.u32 %v3998, 4294901760
  %4000 = vmatpush.msra.mxu0 %v3999
  %v4001 = vand.u32 %v272, 4294901760
  %v4002 = vsub.f32 %v272, %v4001
  %v4003 = vand.u32 %v4002, 4294901760
  %4004 = vmatpush.msra.mxu0 %v4003
  %v4005 = vand.u32 %v268, 4294901760
  %v4006 = vsub.f32 %v268, %v4005
  %v4007 = vand.u32 %v4006, 4294901760
  %4008 = vmatpush.msra.mxu0 %v4007
  %v4009 = vand.u32 %v264, 4294901760
  %v4010 = vsub.f32 %v264, %v4009
  %v4011 = vand.u32 %v4010, 4294901760
  %4012 = vmatpush.msra.mxu0 %v4011
  %v4013 = vand.u32 %v260, 4294901760
  %v4014 = vsub.f32 %v260, %v4013
  %v4015 = vand.u32 %v4014, 4294901760
  %4016 = vmatpush.msra.mxu0 %v4015
  %v4017 = vand.u32 %v1424, 4294901760
  %4018 = vmatmul.f32.gmra.mxu0 %v4017
  %v4019 = vpop.f32.mrf.mxu0
  %v4020 = vadd.f32 %v3957, %v4019
  %v4021 = vand.u32 %v1427, 4294901760
  %4022 = vmatmul.f32.gmra.mxu0 %v4021
  %v4023 = vpop.f32.mrf.mxu0
  %v4024 = vadd.f32 %v3963, %v4023
  %v4025 = vand.u32 %v1430, 4294901760
  %4026 = vmatmul.f32.gmra.mxu0 %v4025
  %v4027 = vpop.f32.mrf.mxu0
  %v4028 = vadd.f32 %v3969, %v4027
  %v4029 = vand.u32 %v1433, 4294901760
  %4030 = vmatmul.f32.gmra.mxu0 %v4029
  %v4031 = vpop.f32.mrf.mxu0
  %v4032 = vadd.f32 %v3975, %v4031
  %4033 = vdwg.mxu0
  %4034 = vmatpush.msra.mxu0 0.0
  %4035 = vmatpush.msra.mxu0 0.0
  %4036 = vmatpush.msra.mxu0 0.0
  %4037 = vmatpush.msra.mxu0 0.0
  %4038 = vmatpush.msra.mxu0 0.0
  %4039 = vmatpush.msra.mxu0 0.0
  %4040 = vmatpush.msra.mxu0 0.0
  %4041 = vmatpush.msra.mxu0 0.0
  %v4042 = vand.u32 %v288, 4294901760
  %4043 = vmatpush.msra.mxu0 %v4042
  %v4044 = vand.u32 %v284, 4294901760
  %4045 = vmatpush.msra.mxu0 %v4044
  %v4046 = vand.u32 %v280, 4294901760
  %4047 = vmatpush.msra.mxu0 %v4046
  %v4048 = vand.u32 %v276, 4294901760
  %4049 = vmatpush.msra.mxu0 %v4048
  %v4050 = vand.u32 %v272, 4294901760
  %4051 = vmatpush.msra.mxu0 %v4050
  %v4052 = vand.u32 %v268, 4294901760
  %4053 = vmatpush.msra.mxu0 %v4052
  %v4054 = vand.u32 %v264, 4294901760
  %4055 = vmatpush.msra.mxu0 %v4054
  %v4056 = vand.u32 %v260, 4294901760
  %4057 = vmatpush.msra.mxu0 %v4056
  %v4058 = vand.u32 %v1424, 4294901760
  %4059 = vmatmul.f32.gmra.mxu0 %v4058
  %v4060 = vpop.f32.mrf.mxu0
  %v4061 = vadd.f32 %v4020, %v4060
  %v4062 = vand.u32 %v1427, 4294901760
  %4063 = vmatmul.f32.gmra.mxu0 %v4062
  %v4064 = vpop.f32.mrf.mxu0
  %v4065 = vadd.f32 %v4024, %v4064
  %v4066 = vand.u32 %v1430, 4294901760
  %4067 = vmatmul.f32.gmra.mxu0 %v4066
  %v4068 = vpop.f32.mrf.mxu0
  %v4069 = vadd.f32 %v4028, %v4068
  %v4070 = vand.u32 %v1433, 4294901760
  %4071 = vmatmul.f32.gmra.mxu0 %v4070
  %v4072 = vpop.f32.mrf.mxu0
  %v4073 = vadd.f32 %v4032, %v4072
  %4074 = vdwg.mxu0
  %v4075 = vmul.f32 %v574, %v1751
  %v4076 = vmul.f32 %v852, %v2081
  %v4077 = vmul.f32 %v1130, %v2411
  %v4078 = vmul.f32 %v1408, %v2741
  %v4079 = vmul.f32 %v578, %v1755
  %v4080 = vmul.f32 %v856, %v2085
  %v4081 = vmul.f32 %v1134, %v2415
  %v4082 = vmul.f32 %v1412, %v2745
  %v4083 = vmul.f32 %v582, %v1759
  %v4084 = vmul.f32 %v860, %v2089
  %v4085 = vmul.f32 %v1138, %v2419
  %v4086 = vmul.f32 %v1416, %v2749
  %v4087 = vmul.f32 %v586, %v1763
  %v4088 = vmul.f32 %v864, %v2093
  %v4089 = vmul.f32 %v1142, %v2423
  %v4090 = vmul.f32 %v1420, %v2753
  %v4091 = vadd.f32 %v4075, %v4079
  %v4092 = vadd.f32 %v4091, %v4083
  %v4093 = vadd.f32 %v4092, %v4087
  %v4094 = vrot.slane %v4093, 4
  %v4095 = vadd.f32 %v4093, %v4094
  %v4096 = vrot.slane %v4095, 2
  %v4097 = vadd.f32 %v4095, %v4096
  %v4098 = vrot.slane %v4097, 1
  %v4099 = vadd.f32 %v4097, %v4098
  %v4100 = vadd.f32 %v4076, %v4080
  %v4101 = vadd.f32 %v4100, %v4084
  %v4102 = vadd.f32 %v4101, %v4088
  %v4103 = vrot.slane %v4102, 4
  %v4104 = vadd.f32 %v4102, %v4103
  %v4105 = vrot.slane %v4104, 2
  %v4106 = vadd.f32 %v4104, %v4105
  %v4107 = vrot.slane %v4106, 1
  %v4108 = vadd.f32 %v4106, %v4107
  %v4109 = vadd.f32 %v4077, %v4081
  %v4110 = vadd.f32 %v4109, %v4085
  %v4111 = vadd.f32 %v4110, %v4089
  %v4112 = vrot.slane %v4111, 4
  %v4113 = vadd.f32 %v4111, %v4112
  %v4114 = vrot.slane %v4113, 2
  %v4115 = vadd.f32 %v4113, %v4114
  %v4116 = vrot.slane %v4115, 1
  %v4117 = vadd.f32 %v4115, %v4116
  %v4118 = vadd.f32 %v4078, %v4082
  %v4119 = vadd.f32 %v4118, %v4086
  %v4120 = vadd.f32 %v4119, %v4090
  %v4121 = vrot.slane %v4120, 4
  %v4122 = vadd.f32 %v4120, %v4121
  %v4123 = vrot.slane %v4122, 2
  %v4124 = vadd.f32 %v4122, %v4123
  %v4125 = vrot.slane %v4124, 1
  %v4126 = vadd.f32 %v4124, %v4125
  %v4131 = vrot.slane %v4108, 7
  %v4132 = vrot.slane %v4117, 6
  %v4133 = vrot.slane %v4126, 5
  %vm4134 = vcmask 1040384
  %v4135 = vsel %vm4134, %v4099, %v4131
  %vm4136 = vcmask 1042434
  %v4137 = vsel %vm4136, %v4132, %v4133
  %vm4138 = vcmask 1041408
  %v4139 = vsel %vm4138, %v4135, %v4137
  %v4141 = vlaneseq
  %vm4142 = vcmp.ge.s32.totalorder %v4141, 0
  %vm4143 = vcmp.lt.s32.totalorder %v4141, 512
  %vm4144 = vmand %vm4142, %vm4143
  %4145 = vst.msk [vmem:[%s3] ss:$2 sm:$0xf] %vm4144, %v4139
  %v4146 = vmul.f32 %v574, %v3071
  %v4147 = vmul.f32 %v852, %v3401
  %v4148 = vmul.f32 %v1130, %v3731
  %v4149 = vmul.f32 %v1408, %v4061
  %v4150 = vmul.f32 %v578, %v3075
  %v4151 = vmul.f32 %v856, %v3405
  %v4152 = vmul.f32 %v1134, %v3735
  %v4153 = vmul.f32 %v1412, %v4065
  %v4154 = vmul.f32 %v582, %v3079
  %v4155 = vmul.f32 %v860, %v3409
  %v4156 = vmul.f32 %v1138, %v3739
  %v4157 = vmul.f32 %v1416, %v4069
  %v4158 = vmul.f32 %v586, %v3083
  %v4159 = vmul.f32 %v864, %v3413
  %v4160 = vmul.f32 %v1142, %v3743
  %v4161 = vmul.f32 %v1420, %v4073
  %v4162 = vadd.f32 %v4146, %v4150
  %v4163 = vadd.f32 %v4162, %v4154
  %v4164 = vadd.f32 %v4163, %v4158
  %v4165 = vrot.slane %v4164, 4
  %v4166 = vadd.f32 %v4164, %v4165
  %v4167 = vrot.slane %v4166, 2
  %v4168 = vadd.f32 %v4166, %v4167
  %v4169 = vrot.slane %v4168, 1
  %v4170 = vadd.f32 %v4168, %v4169
  %v4171 = vadd.f32 %v4147, %v4151
  %v4172 = vadd.f32 %v4171, %v4155
  %v4173 = vadd.f32 %v4172, %v4159
  %v4174 = vrot.slane %v4173, 4
  %v4175 = vadd.f32 %v4173, %v4174
  %v4176 = vrot.slane %v4175, 2
  %v4177 = vadd.f32 %v4175, %v4176
  %v4178 = vrot.slane %v4177, 1
  %v4179 = vadd.f32 %v4177, %v4178
  %v4180 = vadd.f32 %v4148, %v4152
  %v4181 = vadd.f32 %v4180, %v4156
  %v4182 = vadd.f32 %v4181, %v4160
  %v4183 = vrot.slane %v4182, 4
  %v4184 = vadd.f32 %v4182, %v4183
  %v4185 = vrot.slane %v4184, 2
  %v4186 = vadd.f32 %v4184, %v4185
  %v4187 = vrot.slane %v4186, 1
  %v4188 = vadd.f32 %v4186, %v4187
  %v4189 = vadd.f32 %v4149, %v4153
  %v4190 = vadd.f32 %v4189, %v4157
  %v4191 = vadd.f32 %v4190, %v4161
  %v4192 = vrot.slane %v4191, 4
  %v4193 = vadd.f32 %v4191, %v4192
  %v4194 = vrot.slane %v4193, 2
  %v4195 = vadd.f32 %v4193, %v4194
  %v4196 = vrot.slane %v4195, 1
  %v4197 = vadd.f32 %v4195, %v4196
  %v4202 = vrot.slane %v4179, 7
  %v4203 = vrot.slane %v4188, 6
  %v4204 = vrot.slane %v4197, 5
  %v4205 = vsel %vm4134, %v4170, %v4202
  %v4206 = vsel %vm4136, %v4203, %v4204
  %v4207 = vsel %vm4138, %v4205, %v4206
  %s4209 = scalar_lea.vmem %s3, 1
  %4210 = vst.msk [vmem:[%s4209] ss:$2 sm:$0xf] %vm4144, %v4207
  // Predicated region
  $region14: #{bpr_forward.1} parent=0 // pred_check
    _
  $region15: #{bpr_forward.1} parent=0 // pred_check_branch
    %4212 = sbr.rel (0) target = $region17
  $region16: #{bpr_forward.1} parent=0 // pred_region
    _
  $region17: #{bpr_forward.1} parent=0 // pred_fallthru
    _
  // Predicated region
  $region18: #{bpr_forward.1} parent=0 // pred_check
    _
  $region19: #{bpr_forward.1} parent=0 // pred_check_branch
    %4214 = sbr.rel (0) target = $region21
  $region20: #{bpr_forward.1} parent=0 // pred_region
    _
  $region21: #{bpr_forward.1} parent=0 // pred_fallthru
    _

</llo_original>
